<compile_context>
chip_gen: v5e
topology: v5e:2x2
jax: 0.10.0
libtpu: 0.0.40
codegen_flags: <defaults>
</compile_context>

<pallas_src>
import jax
import jax.numpy as jnp
from jax import lax
from jax.experimental import pallas as pl
from jax.experimental.pallas import tpu as pltpu

# Problem sizes implied by the module (conv1 takes 1 input channel).
N, CIN, H, W = 2, 1, 16, 16
K = 5
C1, C2 = 6, 3
H1, W1 = H - K + 1, W - K + 1      # 12, 12 after conv1
H2, W2 = H1 - K + 1, W1 - K + 1    # 8, 8  after conv2
EPS = 1e-5

# Lane-dense layout constants: lane = n*IMG + r*ROW + c on a padded 16x16 canvas.
ROW = 16
IMG = ROW * ROW                    # 256 lanes per image
LANES = N * IMG                    # 512 lanes (4 full vregs)
PAD = 128                          # slack so every shifted conv2 window slice stays in-bounds
LANES1 = LANES + PAD               # 640 lanes (layer-1 buffers)
NV1 = N * H1 * W1                  # 288 valid conv1 outputs per channel
NV2 = N * H2 * W2                  # 128 valid conv2 outputs per channel


def net3_kernel(xcol_ref, w1_ref, b1_ref, g1_ref, bt1_ref, m1_ref,
                w2_ref, b2_ref, g2_ref, bt2_ref, m2_ref,
                o_ref, h1_ref):
    f32 = jnp.float32

    # ---- layer 1: Conv2d(1,6,5) as one MXU matmul over the wrapper-built im2col ----
    d1 = jnp.dot(w1_ref[...], xcol_ref[...], preferred_element_type=f32)   # (C1, 640)
    d1 = d1 + b1_ref[...]                                                   # (C1,1) bcast

    # BatchNorm2d(6), training mode: batch stats over (N,H1,W1), fused scale/shift.
    m1 = m1_ref[...]                                                        # (1, 640) 0/1 mask of 288 valid lanes
    dm = d1 * m1
    mu1 = jnp.sum(dm, axis=1, keepdims=True) * (1.0 / NV1)                  # (C1,1)
    ex1 = jnp.sum(dm * d1, axis=1, keepdims=True) * (1.0 / NV1)
    var1 = ex1 - mu1 * mu1                                                  # biased variance
    sc1 = g1_ref[...] * lax.rsqrt(var1 + EPS)
    sh1 = bt1_ref[...] - mu1 * sc1
    h1 = jnp.maximum(d1 * sc1 + sh1, 0.0)                                   # (C1, 640)

    # Stage the dense padded activation once; the 25 shifted window views below are
    # plain dense static ref slices (no per-channel masked round trips).
    h1_ref[...] = h1

    # ---- layer 2: Conv2d(6,3,5) as 25 tap matmuls on lane-shifted dense views ----
    acc = jnp.zeros((C2, LANES), f32)
    for kh in range(K):
        for kw in range(K):
            t = kh * K + kw
            s = kh * ROW + kw                                # lane shift of this tap
            win = h1_ref[:, s:s + LANES]                     # (C1, 512) dense view
            wt = w2_ref[:, t * C1:(t + 1) * C1]              # (C2, C1) weights of this tap
            acc = acc + jnp.dot(wt, win, preferred_element_type=f32)
    acc = acc + b2_ref[...]                                  # (C2,1) bcast

    # BatchNorm2d(3) + ReLU, same fused form; stats over the 128 valid lanes.
    m2 = m2_ref[...]                                         # (1, 512)
    am = acc * m2
    mu2 = jnp.sum(am, axis=1, keepdims=True) * (1.0 / NV2)
    ex2 = jnp.sum(am * acc, axis=1, keepdims=True) * (1.0 / NV2)
    var2 = ex2 - mu2 * mu2
    sc2 = g2_ref[...] * lax.rsqrt(var2 + EPS)
    sh2 = bt2_ref[...] - mu2 * sc2
    o_ref[...] = jnp.maximum(acc * sc2 + sh2, 0.0)           # one dense (C2, 512) store


def _im2col_l1(x):
    """(K*K, 640) patches of x on the padded lane layout n*256 + r*16 + c (zeros elsewhere)."""
    cols = []
    for kh in range(K):
        for kw in range(K):
            canvas = jnp.zeros((N, ROW, ROW), jnp.float32)
            canvas = canvas.at[:, :H1, :W1].set(x[:, 0, kh:kh + H1, kw:kw + W1])  # CIN == 1
            cols.append(canvas.reshape(-1))
    xcol = jnp.stack(cols, axis=0)                           # (25, 512)
    return jnp.pad(xcol, ((0, 0), (0, PAD)))                 # (25, 640)


def _valid_mask(hv, wv, width):
    m = jnp.zeros((N, ROW, ROW), jnp.float32).at[:, :hv, :wv].set(1.0).reshape(-1)
    if width > LANES:
        m = jnp.pad(m, (0, width - LANES))
    return m.reshape(1, width)


def net3_forward(x, w1, b1, g1, bt1, w2, b2, g2, bt2):
    xcol = _im2col_l1(x.astype(jnp.float32))                                   # (25, 640)
    w1m = w1.reshape(C1, CIN * K * K).astype(jnp.float32)                      # (6, 25)
    # Layer-2 weights laid out so each tap is a contiguous (C2, C1) lane block.
    w2m = jnp.transpose(w2, (0, 2, 3, 1)).reshape(C2, K * K * C1)              # (3, 150)
    w2m = w2m.astype(jnp.float32)
    col = lambda v: v.astype(jnp.float32).reshape(-1, 1)
    mask1 = _valid_mask(H1, W1, LANES1)                                        # (1, 640)
    mask2 = _valid_mask(H2, W2, LANES)                                         # (1, 512)

    vmem = pl.BlockSpec(memory_space=pltpu.MemorySpace.VMEM)
    out_flat = pl.pallas_call(
        net3_kernel,
        out_shape=jax.ShapeDtypeStruct((C2, LANES), jnp.float32),
        in_specs=[vmem] * 11,
        out_specs=vmem,
        scratch_shapes=[pltpu.VMEM((C1, LANES1), jnp.float32)],
    )(xcol, w1m, col(b1), col(g1), col(bt1), mask1,
      w2m, col(b2), col(g2), col(bt2), mask2)

    # (C2, n*256 + h*16 + w) -> crop valid 8x8 region -> (N, C2, H2, W2)
    out = out_flat.reshape(C2, N, ROW, ROW)[:, :, :H2, :W2]
    return jnp.transpose(out, (1, 0, 2, 3))


def ref_forward(x, w1, b1, g1, bt1, w2, b2, g2, bt2):
    """Pure-JAX reference (matches PyTorch Net3 forward in training mode)."""
    def layer(x, w, b, g, bt):
        y = lax.conv_general_dilated(
            x, w, window_strides=(1, 1), padding='VALID',
            dimension_numbers=('NCHW', 'OIHW', 'NCHW'),
            precision=lax.Precision.HIGHEST)
        y = y + b[None, :, None, None]
        mu = jnp.mean(y, axis=(0, 2, 3), keepdims=True)
        var = jnp.mean((y - mu) ** 2, axis=(0, 2, 3), keepdims=True)
        y = (y - mu) * lax.rsqrt(var + EPS) * g[None, :, None, None] \
            + bt[None, :, None, None]
        return jnp.maximum(y, 0.0)
    return layer(layer(x, w1, b1, g1, bt1), w2, b2, g2, bt2)


if __name__ == "__main__":
    key = jax.random.PRNGKey(0)
    kx, kw1, kb1, kw2, kb2 = jax.random.split(key, 5)

    x = jax.random.normal(kx, (N, CIN, H, W), jnp.float32)

    # Deterministic synthetic parameters (shapes per the module's __init__).
    w1 = 0.2 * jax.random.normal(kw1, (C1, CIN, K, K), jnp.float32)   # Conv2dCOB(1, 6, 5)
    b1 = 0.1 * jax.random.normal(kb1, (C1,), jnp.float32)
    w2 = 0.2 * jax.random.normal(kw2, (C2, C1, K, K), jnp.float32)    # Conv2dCOB(6, 3, 5)
    b2 = 0.1 * jax.random.normal(kb2, (C2,), jnp.float32)
    g1 = 1.0 + 0.1 * jnp.arange(C1, dtype=jnp.float32)                # BatchNorm2dCOB(6)
    bt1 = 0.05 * jnp.arange(C1, dtype=jnp.float32)
    g2 = 1.0 + 0.1 * jnp.arange(C2, dtype=jnp.float32)                # BatchNorm2dCOB(3)
    bt2 = 0.05 * jnp.arange(C2, dtype=jnp.float32)

    out = net3_forward(x, w1, b1, g1, bt1, w2, b2, g2, bt2)
    out = jax.block_until_ready(out)

    ref = ref_forward(x, w1, b1, g1, bt1, w2, b2, g2, bt2)
    assert out.shape == (N, C2, H2, W2)
    assert jnp.allclose(out, ref, atol=5e-4, rtol=5e-4), \
        f"max abs err = {jnp.max(jnp.abs(out - ref))}"

    print("KERNEL_OK")
</pallas_src>

<mosaic_0001>
module attributes {stable_mosaic.version = 11 : i64} {
  func.func @net3_kernel(%arg0: memref<25x640xf32, #tpu.memory_space<vmem>>, %arg1: memref<6x25xf32, #tpu.memory_space<vmem>>, %arg2: memref<6x1xf32, #tpu.memory_space<vmem>>, %arg3: memref<6x1xf32, #tpu.memory_space<vmem>>, %arg4: memref<6x1xf32, #tpu.memory_space<vmem>>, %arg5: memref<1x640xf32, #tpu.memory_space<vmem>>, %arg6: memref<3x150xf32, #tpu.memory_space<vmem>>, %arg7: memref<3x1xf32, #tpu.memory_space<vmem>>, %arg8: memref<3x1xf32, #tpu.memory_space<vmem>>, %arg9: memref<3x1xf32, #tpu.memory_space<vmem>>, %arg10: memref<1x512xf32, #tpu.memory_space<vmem>>, %arg11: memref<3x512xf32, #tpu.memory_space<vmem>>, %arg12: memref<6x640xf32, #tpu.memory_space<vmem>>) attributes {dimension_semantics = [], scalar_prefetch = 0 : i64, scratch_operands = 1 : i64, tpu.core_type = #tpu.core_type<tc>} {
    %c0 = arith.constant 0 : index
    %c0_0 = arith.constant 0 : index
    %0 = vector.load %arg1[%c0, %c0_0] : memref<6x25xf32, #tpu.memory_space<vmem>>, vector<6x25xf32>
    %c0_1 = arith.constant 0 : index
    %c0_2 = arith.constant 0 : index
    %1 = vector.load %arg0[%c0_1, %c0_2] : memref<25x640xf32, #tpu.memory_space<vmem>>, vector<25x640xf32>
    %cst = arith.constant dense<0.000000e+00> : vector<6x640xf32>
    %2 = tpu.matmul %0, %1, %cst {dimension_numbers = #tpu.dot_dimension_numbers<[1], [0], [0], [1], [0, 0, 1, 1], [], []>} : vector<6x25xf32>, vector<25x640xf32>, vector<6x640xf32> -> vector<6x640xf32>
    %c0_3 = arith.constant 0 : index
    %c0_4 = arith.constant 0 : index
    %3 = vector.load %arg2[%c0_3, %c0_4] : memref<6x1xf32, #tpu.memory_space<vmem>>, vector<6x1xf32>
    %4 = vector.broadcast %3 : vector<6x1xf32> to vector<6x640xf32>
    %5 = arith.addf %2, %4 : vector<6x640xf32>
    %c0_5 = arith.constant 0 : index
    %c0_6 = arith.constant 0 : index
    %6 = vector.load %arg5[%c0_5, %c0_6] : memref<1x640xf32, #tpu.memory_space<vmem>>, vector<1x640xf32>
    %7 = vector.broadcast %6 : vector<1x640xf32> to vector<6x640xf32>
    %8 = arith.mulf %5, %7 : vector<6x640xf32>
    %cst_7 = arith.constant dense<0.000000e+00> : vector<6xf32>
    %9 = vector.multi_reduction <add>, %8, %cst_7 [1] : vector<6x640xf32> to vector<6xf32>
    %10 = vector.shape_cast %9 : vector<6xf32> to vector<6x1xf32>
    %cst_8 = arith.constant 0.00347222225 : f32
    %11 = vector.broadcast %cst_8 : f32 to vector<6x1xf32>
    %12 = arith.mulf %10, %11 : vector<6x1xf32>
    %13 = arith.mulf %8, %5 : vector<6x640xf32>
    %cst_9 = arith.constant dense<0.000000e+00> : vector<6xf32>
    %14 = vector.multi_reduction <add>, %13, %cst_9 [1] : vector<6x640xf32> to vector<6xf32>
    %15 = vector.shape_cast %14 : vector<6xf32> to vector<6x1xf32>
    %cst_10 = arith.constant 0.00347222225 : f32
    %16 = vector.broadcast %cst_10 : f32 to vector<6x1xf32>
    %17 = arith.mulf %15, %16 : vector<6x1xf32>
    %18 = arith.mulf %12, %12 : vector<6x1xf32>
    %19 = arith.subf %17, %18 : vector<6x1xf32>
    %c0_11 = arith.constant 0 : index
    %c0_12 = arith.constant 0 : index
    %20 = vector.load %arg3[%c0_11, %c0_12] : memref<6x1xf32, #tpu.memory_space<vmem>>, vector<6x1xf32>
    %cst_13 = arith.constant 9.99999974E-6 : f32
    %21 = vector.broadcast %cst_13 : f32 to vector<6x1xf32>
    %22 = arith.addf %19, %21 : vector<6x1xf32>
    %23 = math.rsqrt %22 : vector<6x1xf32>
    %24 = arith.mulf %20, %23 : vector<6x1xf32>
    %c0_14 = arith.constant 0 : index
    %c0_15 = arith.constant 0 : index
    %25 = vector.load %arg4[%c0_14, %c0_15] : memref<6x1xf32, #tpu.memory_space<vmem>>, vector<6x1xf32>
    %26 = arith.mulf %12, %24 : vector<6x1xf32>
    %27 = arith.subf %25, %26 : vector<6x1xf32>
    %28 = vector.broadcast %24 : vector<6x1xf32> to vector<6x640xf32>
    %29 = arith.mulf %5, %28 : vector<6x640xf32>
    %30 = vector.broadcast %27 : vector<6x1xf32> to vector<6x640xf32>
    %31 = arith.addf %29, %30 : vector<6x640xf32>
    %cst_16 = arith.constant 0.000000e+00 : f32
    %32 = vector.broadcast %cst_16 : f32 to vector<6x640xf32>
    %33 = arith.maximumf %31, %32 : vector<6x640xf32>
    %c0_17 = arith.constant 0 : index
    %c0_18 = arith.constant 0 : index
    %34 = vector.load %arg12[%c0_17, %c0_18] : memref<6x640xf32, #tpu.memory_space<vmem>>, vector<6x640xf32>
    tpu.vector_store %arg12[%c0_17, %c0_18], %33 {strides = array<i32>} : memref<6x640xf32, #tpu.memory_space<vmem>>, vector<6x640xf32>,
    %cst_19 = arith.constant 0.000000e+00 : f32
    %35 = vector.broadcast %cst_19 : f32 to vector<3x512xf32>
    %c0_20 = arith.constant 0 : index
    %c0_21 = arith.constant 0 : index
    %36 = vector.load %arg12[%c0_20, %c0_21] : memref<6x640xf32, #tpu.memory_space<vmem>>, vector<6x512xf32>
    %c0_22 = arith.constant 0 : index
    %c0_23 = arith.constant 0 : index
    %37 = vector.load %arg6[%c0_22, %c0_23] : memref<3x150xf32, #tpu.memory_space<vmem>>, vector<3x6xf32>
    %cst_24 = arith.constant dense<0.000000e+00> : vector<3x512xf32>
    %38 = tpu.matmul %37, %36, %cst_24 {dimension_numbers = #tpu.dot_dimension_numbers<[1], [0], [0], [1], [0, 0, 1, 1], [], []>} : vector<3x6xf32>, vector<6x512xf32>, vector<3x512xf32> -> vector<3x512xf32>
    %39 = arith.addf %35, %38 : vector<3x512xf32>
    %c0_25 = arith.constant 0 : index
    %c1 = arith.constant 1 : index
    %40 = vector.load %arg12[%c0_25, %c1] : memref<6x640xf32, #tpu.memory_space<vmem>>, vector<6x512xf32>
    %c0_26 = arith.constant 0 : index
    %c6 = arith.constant 6 : index
    %41 = vector.load %arg6[%c0_26, %c6] : memref<3x150xf32, #tpu.memory_space<vmem>>, vector<3x6xf32>
    %cst_27 = arith.constant dense<0.000000e+00> : vector<3x512xf32>
    %42 = tpu.matmul %41, %40, %cst_27 {dimension_numbers = #tpu.dot_dimension_numbers<[1], [0], [0], [1], [0, 0, 1, 1], [], []>} : vector<3x6xf32>, vector<6x512xf32>, vector<3x512xf32> -> vector<3x512xf32>
    %43 = arith.addf %39, %42 : vector<3x512xf32>
    %c0_28 = arith.constant 0 : index
    %c2 = arith.constant 2 : index
    %44 = vector.load %arg12[%c0_28, %c2] : memref<6x640xf32, #tpu.memory_space<vmem>>, vector<6x512xf32>
    %c0_29 = arith.constant 0 : index
    %c12 = arith.constant 12 : index
    %45 = vector.load %arg6[%c0_29, %c12] : memref<3x150xf32, #tpu.memory_space<vmem>>, vector<3x6xf32>
    %cst_30 = arith.constant dense<0.000000e+00> : vector<3x512xf32>
    %46 = tpu.matmul %45, %44, %cst_30 {dimension_numbers = #tpu.dot_dimension_numbers<[1], [0], [0], [1], [0, 0, 1, 1], [], []>} : vector<3x6xf32>, vector<6x512xf32>, vector<3x512xf32> -> vector<3x512xf32>
    %47 = arith.addf %43, %46 : vector<3x512xf32>
    %c0_31 = arith.constant 0 : index
    %c3 = arith.constant 3 : index
    %48 = vector.load %arg12[%c0_31, %c3] : memref<6x640xf32, #tpu.memory_space<vmem>>, vector<6x512xf32>
    %c0_32 = arith.constant 0 : index
    %c18 = arith.constant 18 : index
    %49 = vector.load %arg6[%c0_32, %c18] : memref<3x150xf32, #tpu.memory_space<vmem>>, vector<3x6xf32>
    %cst_33 = arith.constant dense<0.000000e+00> : vector<3x512xf32>
    %50 = tpu.matmul %49, %48, %cst_33 {dimension_numbers = #tpu.dot_dimension_numbers<[1], [0], [0], [1], [0, 0, 1, 1], [], []>} : vector<3x6xf32>, vector<6x512xf32>, vector<3x512xf32> -> vector<3x512xf32>
    %51 = arith.addf %47, %50 : vector<3x512xf32>
    %c0_34 = arith.constant 0 : index
    %c4 = arith.constant 4 : index
    %52 = vector.load %arg12[%c0_34, %c4] : memref<6x640xf32, #tpu.memory_space<vmem>>, vector<6x512xf32>
    %c0_35 = arith.constant 0 : index
    %c24 = arith.constant 24 : index
    %53 = vector.load %arg6[%c0_35, %c24] : memref<3x150xf32, #tpu.memory_space<vmem>>, vector<3x6xf32>
    %cst_36 = arith.constant dense<0.000000e+00> : vector<3x512xf32>
    %54 = tpu.matmul %53, %52, %cst_36 {dimension_numbers = #tpu.dot_dimension_numbers<[1], [0], [0], [1], [0, 0, 1, 1], [], []>} : vector<3x6xf32>, vector<6x512xf32>, vector<3x512xf32> -> vector<3x512xf32>
    %55 = arith.addf %51, %54 : vector<3x512xf32>
    %c0_37 = arith.constant 0 : index
    %c16 = arith.constant 16 : index
    %56 = vector.load %arg12[%c0_37, %c16] : memref<6x640xf32, #tpu.memory_space<vmem>>, vector<6x512xf32>
    %c0_38 = arith.constant 0 : index
    %c30 = arith.constant 30 : index
    %57 = vector.load %arg6[%c0_38, %c30] : memref<3x150xf32, #tpu.memory_space<vmem>>, vector<3x6xf32>
    %cst_39 = arith.constant dense<0.000000e+00> : vector<3x512xf32>
    %58 = tpu.matmul %57, %56, %cst_39 {dimension_numbers = #tpu.dot_dimension_numbers<[1], [0], [0], [1], [0, 0, 1, 1], [], []>} : vector<3x6xf32>, vector<6x512xf32>, vector<3x512xf32> -> vector<3x512xf32>
    %59 = arith.addf %55, %58 : vector<3x512xf32>
    %c0_40 = arith.constant 0 : index
    %c17 = arith.constant 17 : index
    %60 = vector.load %arg12[%c0_40, %c17] : memref<6x640xf32, #tpu.memory_space<vmem>>, vector<6x512xf32>
    %c0_41 = arith.constant 0 : index
    %c36 = arith.constant 36 : index
    %61 = vector.load %arg6[%c0_41, %c36] : memref<3x150xf32, #tpu.memory_space<vmem>>, vector<3x6xf32>
    %cst_42 = arith.constant dense<0.000000e+00> : vector<3x512xf32>
    %62 = tpu.matmul %61, %60, %cst_42 {dimension_numbers = #tpu.dot_dimension_numbers<[1], [0], [0], [1], [0, 0, 1, 1], [], []>} : vector<3x6xf32>, vector<6x512xf32>, vector<3x512xf32> -> vector<3x512xf32>
    %63 = arith.addf %59, %62 : vector<3x512xf32>
    %c0_43 = arith.constant 0 : index
    %c18_44 = arith.constant 18 : index
    %64 = vector.load %arg12[%c0_43, %c18_44] : memref<6x640xf32, #tpu.memory_space<vmem>>, vector<6x512xf32>
    %c0_45 = arith.constant 0 : index
    %c42 = arith.constant 42 : index
    %65 = vector.load %arg6[%c0_45, %c42] : memref<3x150xf32, #tpu.memory_space<vmem>>, vector<3x6xf32>
    %cst_46 = arith.constant dense<0.000000e+00> : vector<3x512xf32>
    %66 = tpu.matmul %65, %64, %cst_46 {dimension_numbers = #tpu.dot_dimension_numbers<[1], [0], [0], [1], [0, 0, 1, 1], [], []>} : vector<3x6xf32>, vector<6x512xf32>, vector<3x512xf32> -> vector<3x512xf32>
    %67 = arith.addf %63, %66 : vector<3x512xf32>
    %c0_47 = arith.constant 0 : index
    %c19 = arith.constant 19 : index
    %68 = vector.load %arg12[%c0_47, %c19] : memref<6x640xf32, #tpu.memory_space<vmem>>, vector<6x512xf32>
    %c0_48 = arith.constant 0 : index
    %c48 = arith.constant 48 : index
    %69 = vector.load %arg6[%c0_48, %c48] : memref<3x150xf32, #tpu.memory_space<vmem>>, vector<3x6xf32>
    %cst_49 = arith.constant dense<0.000000e+00> : vector<3x512xf32>
    %70 = tpu.matmul %69, %68, %cst_49 {dimension_numbers = #tpu.dot_dimension_numbers<[1], [0], [0], [1], [0, 0, 1, 1], [], []>} : vector<3x6xf32>, vector<6x512xf32>, vector<3x512xf32> -> vector<3x512xf32>
    %71 = arith.addf %67, %70 : vector<3x512xf32>
    %c0_50 = arith.constant 0 : index
    %c20 = arith.constant 20 : index
    %72 = vector.load %arg12[%c0_50, %c20] : memref<6x640xf32, #tpu.memory_space<vmem>>, vector<6x512xf32>
    %c0_51 = arith.constant 0 : index
    %c54 = arith.constant 54 : index
    %73 = vector.load %arg6[%c0_51, %c54] : memref<3x150xf32, #tpu.memory_space<vmem>>, vector<3x6xf32>
    %cst_52 = arith.constant dense<0.000000e+00> : vector<3x512xf32>
    %74 = tpu.matmul %73, %72, %cst_52 {dimension_numbers = #tpu.dot_dimension_numbers<[1], [0], [0], [1], [0, 0, 1, 1], [], []>} : vector<3x6xf32>, vector<6x512xf32>, vector<3x512xf32> -> vector<3x512xf32>
    %75 = arith.addf %71, %74 : vector<3x512xf32>
    %c0_53 = arith.constant 0 : index
    %c32 = arith.constant 32 : index
    %76 = vector.load %arg12[%c0_53, %c32] : memref<6x640xf32, #tpu.memory_space<vmem>>, vector<6x512xf32>
    %c0_54 = arith.constant 0 : index
    %c60 = arith.constant 60 : index
    %77 = vector.load %arg6[%c0_54, %c60] : memref<3x150xf32, #tpu.memory_space<vmem>>, vector<3x6xf32>
    %cst_55 = arith.constant dense<0.000000e+00> : vector<3x512xf32>
    %78 = tpu.matmul %77, %76, %cst_55 {dimension_numbers = #tpu.dot_dimension_numbers<[1], [0], [0], [1], [0, 0, 1, 1], [], []>} : vector<3x6xf32>, vector<6x512xf32>, vector<3x512xf32> -> vector<3x512xf32>
    %79 = arith.addf %75, %78 : vector<3x512xf32>
    %c0_56 = arith.constant 0 : index
    %c33 = arith.constant 33 : index
    %80 = vector.load %arg12[%c0_56, %c33] : memref<6x640xf32, #tpu.memory_space<vmem>>, vector<6x512xf32>
    %c0_57 = arith.constant 0 : index
    %c66 = arith.constant 66 : index
    %81 = vector.load %arg6[%c0_57, %c66] : memref<3x150xf32, #tpu.memory_space<vmem>>, vector<3x6xf32>
    %cst_58 = arith.constant dense<0.000000e+00> : vector<3x512xf32>
    %82 = tpu.matmul %81, %80, %cst_58 {dimension_numbers = #tpu.dot_dimension_numbers<[1], [0], [0], [1], [0, 0, 1, 1], [], []>} : vector<3x6xf32>, vector<6x512xf32>, vector<3x512xf32> -> vector<3x512xf32>
    %83 = arith.addf %79, %82 : vector<3x512xf32>
    %c0_59 = arith.constant 0 : index
    %c34 = arith.constant 34 : index
    %84 = vector.load %arg12[%c0_59, %c34] : memref<6x640xf32, #tpu.memory_space<vmem>>, vector<6x512xf32>
    %c0_60 = arith.constant 0 : index
    %c72 = arith.constant 72 : index
    %85 = vector.load %arg6[%c0_60, %c72] : memref<3x150xf32, #tpu.memory_space<vmem>>, vector<3x6xf32>
    %cst_61 = arith.constant dense<0.000000e+00> : vector<3x512xf32>
    %86 = tpu.matmul %85, %84, %cst_61 {dimension_numbers = #tpu.dot_dimension_numbers<[1], [0], [0], [1], [0, 0, 1, 1], [], []>} : vector<3x6xf32>, vector<6x512xf32>, vector<3x512xf32> -> vector<3x512xf32>
    %87 = arith.addf %83, %86 : vector<3x512xf32>
    %c0_62 = arith.constant 0 : index
    %c35 = arith.constant 35 : index
    %88 = vector.load %arg12[%c0_62, %c35] : memref<6x640xf32, #tpu.memory_space<vmem>>, vector<6x512xf32>
    %c0_63 = arith.constant 0 : index
    %c78 = arith.constant 78 : index
    %89 = vector.load %arg6[%c0_63, %c78] : memref<3x150xf32, #tpu.memory_space<vmem>>, vector<3x6xf32>
    %cst_64 = arith.constant dense<0.000000e+00> : vector<3x512xf32>
    %90 = tpu.matmul %89, %88, %cst_64 {dimension_numbers = #tpu.dot_dimension_numbers<[1], [0], [0], [1], [0, 0, 1, 1], [], []>} : vector<3x6xf32>, vector<6x512xf32>, vector<3x512xf32> -> vector<3x512xf32>
    %91 = arith.addf %87, %90 : vector<3x512xf32>
    %c0_65 = arith.constant 0 : index
    %c36_66 = arith.constant 36 : index
    %92 = vector.load %arg12[%c0_65, %c36_66] : memref<6x640xf32, #tpu.memory_space<vmem>>, vector<6x512xf32>
    %c0_67 = arith.constant 0 : index
    %c84 = arith.constant 84 : index
    %93 = vector.load %arg6[%c0_67, %c84] : memref<3x150xf32, #tpu.memory_space<vmem>>, vector<3x6xf32>
    %cst_68 = arith.constant dense<0.000000e+00> : vector<3x512xf32>
    %94 = tpu.matmul %93, %92, %cst_68 {dimension_numbers = #tpu.dot_dimension_numbers<[1], [0], [0], [1], [0, 0, 1, 1], [], []>} : vector<3x6xf32>, vector<6x512xf32>, vector<3x512xf32> -> vector<3x512xf32>
    %95 = arith.addf %91, %94 : vector<3x512xf32>
    %c0_69 = arith.constant 0 : index
    %c48_70 = arith.constant 48 : index
    %96 = vector.load %arg12[%c0_69, %c48_70] : memref<6x640xf32, #tpu.memory_space<vmem>>, vector<6x512xf32>
    %c0_71 = arith.constant 0 : index
    %c90 = arith.constant 90 : index
    %97 = vector.load %arg6[%c0_71, %c90] : memref<3x150xf32, #tpu.memory_space<vmem>>, vector<3x6xf32>
    %cst_72 = arith.constant dense<0.000000e+00> : vector<3x512xf32>
    %98 = tpu.matmul %97, %96, %cst_72 {dimension_numbers = #tpu.dot_dimension_numbers<[1], [0], [0], [1], [0, 0, 1, 1], [], []>} : vector<3x6xf32>, vector<6x512xf32>, vector<3x512xf32> -> vector<3x512xf32>
    %99 = arith.addf %95, %98 : vector<3x512xf32>
    %c0_73 = arith.constant 0 : index
    %c49 = arith.constant 49 : index
    %100 = vector.load %arg12[%c0_73, %c49] : memref<6x640xf32, #tpu.memory_space<vmem>>, vector<6x512xf32>
    %c0_74 = arith.constant 0 : index
    %c96 = arith.constant 96 : index
    %101 = vector.load %arg6[%c0_74, %c96] : memref<3x150xf32, #tpu.memory_space<vmem>>, vector<3x6xf32>
    %cst_75 = arith.constant dense<0.000000e+00> : vector<3x512xf32>
    %102 = tpu.matmul %101, %100, %cst_75 {dimension_numbers = #tpu.dot_dimension_numbers<[1], [0], [0], [1], [0, 0, 1, 1], [], []>} : vector<3x6xf32>, vector<6x512xf32>, vector<3x512xf32> -> vector<3x512xf32>
    %103 = arith.addf %99, %102 : vector<3x512xf32>
    %c0_76 = arith.constant 0 : index
    %c50 = arith.constant 50 : index
    %104 = vector.load %arg12[%c0_76, %c50] : memref<6x640xf32, #tpu.memory_space<vmem>>, vector<6x512xf32>
    %c0_77 = arith.constant 0 : index
    %c102 = arith.constant 102 : index
    %105 = vector.load %arg6[%c0_77, %c102] : memref<3x150xf32, #tpu.memory_space<vmem>>, vector<3x6xf32>
    %cst_78 = arith.constant dense<0.000000e+00> : vector<3x512xf32>
    %106 = tpu.matmul %105, %104, %cst_78 {dimension_numbers = #tpu.dot_dimension_numbers<[1], [0], [0], [1], [0, 0, 1, 1], [], []>} : vector<3x6xf32>, vector<6x512xf32>, vector<3x512xf32> -> vector<3x512xf32>
    %107 = arith.addf %103, %106 : vector<3x512xf32>
    %c0_79 = arith.constant 0 : index
    %c51 = arith.constant 51 : index
    %108 = vector.load %arg12[%c0_79, %c51] : memref<6x640xf32, #tpu.memory_space<vmem>>, vector<6x512xf32>
    %c0_80 = arith.constant 0 : index
    %c108 = arith.constant 108 : index
    %109 = vector.load %arg6[%c0_80, %c108] : memref<3x150xf32, #tpu.memory_space<vmem>>, vector<3x6xf32>
    %cst_81 = arith.constant dense<0.000000e+00> : vector<3x512xf32>
    %110 = tpu.matmul %109, %108, %cst_81 {dimension_numbers = #tpu.dot_dimension_numbers<[1], [0], [0], [1], [0, 0, 1, 1], [], []>} : vector<3x6xf32>, vector<6x512xf32>, vector<3x512xf32> -> vector<3x512xf32>
    %111 = arith.addf %107, %110 : vector<3x512xf32>
    %c0_82 = arith.constant 0 : index
    %c52 = arith.constant 52 : index
    %112 = vector.load %arg12[%c0_82, %c52] : memref<6x640xf32, #tpu.memory_space<vmem>>, vector<6x512xf32>
    %c0_83 = arith.constant 0 : index
    %c114 = arith.constant 114 : index
    %113 = vector.load %arg6[%c0_83, %c114] : memref<3x150xf32, #tpu.memory_space<vmem>>, vector<3x6xf32>
    %cst_84 = arith.constant dense<0.000000e+00> : vector<3x512xf32>
    %114 = tpu.matmul %113, %112, %cst_84 {dimension_numbers = #tpu.dot_dimension_numbers<[1], [0], [0], [1], [0, 0, 1, 1], [], []>} : vector<3x6xf32>, vector<6x512xf32>, vector<3x512xf32> -> vector<3x512xf32>
    %115 = arith.addf %111, %114 : vector<3x512xf32>
    %c0_85 = arith.constant 0 : index
    %c64 = arith.constant 64 : index
    %116 = vector.load %arg12[%c0_85, %c64] : memref<6x640xf32, #tpu.memory_space<vmem>>, vector<6x512xf32>
    %c0_86 = arith.constant 0 : index
    %c120 = arith.constant 120 : index
    %117 = vector.load %arg6[%c0_86, %c120] : memref<3x150xf32, #tpu.memory_space<vmem>>, vector<3x6xf32>
    %cst_87 = arith.constant dense<0.000000e+00> : vector<3x512xf32>
    %118 = tpu.matmul %117, %116, %cst_87 {dimension_numbers = #tpu.dot_dimension_numbers<[1], [0], [0], [1], [0, 0, 1, 1], [], []>} : vector<3x6xf32>, vector<6x512xf32>, vector<3x512xf32> -> vector<3x512xf32>
    %119 = arith.addf %115, %118 : vector<3x512xf32>
    %c0_88 = arith.constant 0 : index
    %c65 = arith.constant 65 : index
    %120 = vector.load %arg12[%c0_88, %c65] : memref<6x640xf32, #tpu.memory_space<vmem>>, vector<6x512xf32>
    %c0_89 = arith.constant 0 : index
    %c126 = arith.constant 126 : index
    %121 = vector.load %arg6[%c0_89, %c126] : memref<3x150xf32, #tpu.memory_space<vmem>>, vector<3x6xf32>
    %cst_90 = arith.constant dense<0.000000e+00> : vector<3x512xf32>
    %122 = tpu.matmul %121, %120, %cst_90 {dimension_numbers = #tpu.dot_dimension_numbers<[1], [0], [0], [1], [0, 0, 1, 1], [], []>} : vector<3x6xf32>, vector<6x512xf32>, vector<3x512xf32> -> vector<3x512xf32>
    %123 = arith.addf %119, %122 : vector<3x512xf32>
    %c0_91 = arith.constant 0 : index
    %c66_92 = arith.constant 66 : index
    %124 = vector.load %arg12[%c0_91, %c66_92] : memref<6x640xf32, #tpu.memory_space<vmem>>, vector<6x512xf32>
    %c0_93 = arith.constant 0 : index
    %c132 = arith.constant 132 : index
    %125 = vector.load %arg6[%c0_93, %c132] : memref<3x150xf32, #tpu.memory_space<vmem>>, vector<3x6xf32>
    %cst_94 = arith.constant dense<0.000000e+00> : vector<3x512xf32>
    %126 = tpu.matmul %125, %124, %cst_94 {dimension_numbers = #tpu.dot_dimension_numbers<[1], [0], [0], [1], [0, 0, 1, 1], [], []>} : vector<3x6xf32>, vector<6x512xf32>, vector<3x512xf32> -> vector<3x512xf32>
    %127 = arith.addf %123, %126 : vector<3x512xf32>
    %c0_95 = arith.constant 0 : index
    %c67 = arith.constant 67 : index
    %128 = vector.load %arg12[%c0_95, %c67] : memref<6x640xf32, #tpu.memory_space<vmem>>, vector<6x512xf32>
    %c0_96 = arith.constant 0 : index
    %c138 = arith.constant 138 : index
    %129 = vector.load %arg6[%c0_96, %c138] : memref<3x150xf32, #tpu.memory_space<vmem>>, vector<3x6xf32>
    %cst_97 = arith.constant dense<0.000000e+00> : vector<3x512xf32>
    %130 = tpu.matmul %129, %128, %cst_97 {dimension_numbers = #tpu.dot_dimension_numbers<[1], [0], [0], [1], [0, 0, 1, 1], [], []>} : vector<3x6xf32>, vector<6x512xf32>, vector<3x512xf32> -> vector<3x512xf32>
    %131 = arith.addf %127, %130 : vector<3x512xf32>
    %c0_98 = arith.constant 0 : index
    %c68 = arith.constant 68 : index
    %132 = vector.load %arg12[%c0_98, %c68] : memref<6x640xf32, #tpu.memory_space<vmem>>, vector<6x512xf32>
    %c0_99 = arith.constant 0 : index
    %c144 = arith.constant 144 : index
    %133 = vector.load %arg6[%c0_99, %c144] : memref<3x150xf32, #tpu.memory_space<vmem>>, vector<3x6xf32>
    %cst_100 = arith.constant dense<0.000000e+00> : vector<3x512xf32>
    %134 = tpu.matmul %133, %132, %cst_100 {dimension_numbers = #tpu.dot_dimension_numbers<[1], [0], [0], [1], [0, 0, 1, 1], [], []>} : vector<3x6xf32>, vector<6x512xf32>, vector<3x512xf32> -> vector<3x512xf32>
    %135 = arith.addf %131, %134 : vector<3x512xf32>
    %c0_101 = arith.constant 0 : index
    %c0_102 = arith.constant 0 : index
    %136 = vector.load %arg7[%c0_101, %c0_102] : memref<3x1xf32, #tpu.memory_space<vmem>>, vector<3x1xf32>
    %137 = vector.broadcast %136 : vector<3x1xf32> to vector<3x512xf32>
    %138 = arith.addf %135, %137 : vector<3x512xf32>
    %c0_103 = arith.constant 0 : index
    %c0_104 = arith.constant 0 : index
    %139 = vector.load %arg10[%c0_103, %c0_104] : memref<1x512xf32, #tpu.memory_space<vmem>>, vector<1x512xf32>
    %140 = vector.broadcast %139 : vector<1x512xf32> to vector<3x512xf32>
    %141 = arith.mulf %138, %140 : vector<3x512xf32>
    %cst_105 = arith.constant dense<0.000000e+00> : vector<3xf32>
    %142 = vector.multi_reduction <add>, %141, %cst_105 [1] : vector<3x512xf32> to vector<3xf32>
    %143 = vector.shape_cast %142 : vector<3xf32> to vector<3x1xf32>
    %cst_106 = arith.constant 7.812500e-03 : f32
    %144 = vector.broadcast %cst_106 : f32 to vector<3x1xf32>
    %145 = arith.mulf %143, %144 : vector<3x1xf32>
    %146 = arith.mulf %141, %138 : vector<3x512xf32>
    %cst_107 = arith.constant dense<0.000000e+00> : vector<3xf32>
    %147 = vector.multi_reduction <add>, %146, %cst_107 [1] : vector<3x512xf32> to vector<3xf32>
    %148 = vector.shape_cast %147 : vector<3xf32> to vector<3x1xf32>
    %cst_108 = arith.constant 7.812500e-03 : f32
    %149 = vector.broadcast %cst_108 : f32 to vector<3x1xf32>
    %150 = arith.mulf %148, %149 : vector<3x1xf32>
    %151 = arith.mulf %145, %145 : vector<3x1xf32>
    %152 = arith.subf %150, %151 : vector<3x1xf32>
    %c0_109 = arith.constant 0 : index
    %c0_110 = arith.constant 0 : index
    %153 = vector.load %arg8[%c0_109, %c0_110] : memref<3x1xf32, #tpu.memory_space<vmem>>, vector<3x1xf32>
    %cst_111 = arith.constant 9.99999974E-6 : f32
    %154 = vector.broadcast %cst_111 : f32 to vector<3x1xf32>
    %155 = arith.addf %152, %154 : vector<3x1xf32>
    %156 = math.rsqrt %155 : vector<3x1xf32>
    %157 = arith.mulf %153, %156 : vector<3x1xf32>
    %c0_112 = arith.constant 0 : index
    %c0_113 = arith.constant 0 : index
    %158 = vector.load %arg9[%c0_112, %c0_113] : memref<3x1xf32, #tpu.memory_space<vmem>>, vector<3x1xf32>
    %159 = arith.mulf %145, %157 : vector<3x1xf32>
    %160 = arith.subf %158, %159 : vector<3x1xf32>
    %161 = vector.broadcast %157 : vector<3x1xf32> to vector<3x512xf32>
    %162 = arith.mulf %138, %161 : vector<3x512xf32>
    %163 = vector.broadcast %160 : vector<3x1xf32> to vector<3x512xf32>
    %164 = arith.addf %162, %163 : vector<3x512xf32>
    %cst_114 = arith.constant 0.000000e+00 : f32
    %165 = vector.broadcast %cst_114 : f32 to vector<3x512xf32>
    %166 = arith.maximumf %164, %165 : vector<3x512xf32>
    %c0_115 = arith.constant 0 : index
    %c0_116 = arith.constant 0 : index
    %167 = vector.load %arg11[%c0_115, %c0_116] : memref<3x512xf32, #tpu.memory_space<vmem>>, vector<3x512xf32>
    tpu.vector_store %arg11[%c0_115, %c0_116], %166 {strides = array<i32>} : memref<3x512xf32, #tpu.memory_space<vmem>>, vector<3x512xf32>,
    return
  }
}

</mosaic_0001>

<llo_original>
// kernel: tpu_custom_call.1
$region0: #{tpu_custom_call.1}
  #allocation0 [shape = 'u32[]', space=smem, size = 0x4, offset = 0x4, fixed_abs, tag = 'smem constant byte address 0x4 - core index']
  #allocation1 [shape = 'u32[72,128]{1,0:T(1,128)}', space=vmem, size = 0x9000, scoped, tag = 'internal scratch']
  #allocation2 [shape = 'f32[6,640]{1,0:T(8,128)}', space=vmem, size = 0x5000, scoped, tag = 'scratch operand']
  %s0 = inlined_call_operand.hbm [shape: f32[25,640], index: 0, kind: input, shape index: {}]
  %s1 = inlined_call_operand.vmem [shape: f32[6,25], index: 1, kind: input, shape index: {}]
  %s2 = inlined_call_operand.vmem [shape: f32[6,1], index: 2, kind: input, shape index: {}]
  %s3 = inlined_call_operand.vmem [shape: f32[6,1], index: 3, kind: input, shape index: {}]
  %s4 = inlined_call_operand.vmem [shape: f32[6,1], index: 4, kind: input, shape index: {}]
  %s5 = inlined_call_operand.vmem [shape: f32[1,640], index: 5, kind: input, shape index: {}]
  %s6 = inlined_call_operand.vmem [shape: f32[3,150], index: 6, kind: input, shape index: {}]
  %s7 = inlined_call_operand.vmem [shape: f32[3,1], index: 7, kind: input, shape index: {}]
  %s8 = inlined_call_operand.vmem [shape: f32[3,1], index: 8, kind: input, shape index: {}]
  %s9 = inlined_call_operand.vmem [shape: f32[3,1], index: 9, kind: input, shape index: {}]
  %s10 = inlined_call_operand.vmem [shape: f32[1,512], index: 10, kind: input, shape index: {}]
  %s11 = inlined_call_operand.hbm [shape: f32[3,512], index: 11, kind: output, shape index: {}]
  %s12 = sld [smem:[#allocation0]]
  $region58: #{tpu_custom_call.1} parent=0
    _
  %s14 = ssub.s32 1, %s12
  %s15 = scalar_select 0, %s14, %s12
  $region1: #{tpu_custom_call.1} parent=0
    #allocation3 [shape = 'u8[81920]{0}', space=vmem, size = 0x14000, scoped, tag = 'input window, operand 0, single buffered']
    #allocation4 [shape = 's32[1]{0}', space=sflag, size = 0x4, scoped, tag = 'scoped memory for tpu_custom_call.1']
    #allocation5 [shape = 's32[1]{0}', space=sflag, size = 0x4, scoped, tag = 'scoped memory for tpu_custom_call.1']
    #allocation6 [shape = 'u8[8192]{0}', space=vmem, size = 0x2000, scoped, tag = 'output window, operand 0, single buffered']
    %16 = vsyncpa [#allocation4], 0
    %17 = vsyncpa [#allocation5], 0
    // Predicated region
    $region2: #{tpu_custom_call.1} parent=1 // pred_check
      _
    $region3: #{tpu_custom_call.1} parent=1 // pred_check_branch
      %19 = sbr.rel (0) target = $region5
    $region4: #{tpu_custom_call.1} parent=1 // pred_region
      %21 = vsyncadd [#allocation4], 0
      %s22 = sshll.u32 %s0, 4
      %s23 = int_to_ptr.hbm [resolvable:$true] %s22
      %s24 = sshll.u32 [#allocation3], 4
      %s25 = int_to_ptr.vmem [resolvable:$true] %s24
      %30 = dma.hbm_to_vmem [thread:$0]  %s23, 2560, %s25, [#allocation4], 640, 640, 40
    $region5: #{tpu_custom_call.1} parent=1 // pred_fallthru
      _
    // Predicated region
    $region6: #{tpu_custom_call.1} parent=1 // pred_check
      _
    $region7: #{tpu_custom_call.1} parent=1 // pred_check_branch
      %32 = sbr.rel (0) target = $region9
    $region8: #{tpu_custom_call.1} parent=1 // pred_region
      _
    $region9: #{tpu_custom_call.1} parent=1 // pred_fallthru
      _
    // Predicated region
    $region10: #{tpu_custom_call.1} parent=1 // pred_check
      _
    $region11: #{tpu_custom_call.1} parent=1 // pred_check_branch
      %34 = sbr.rel (0) target = $region13
    $region12: #{tpu_custom_call.1} parent=1 // pred_region
      _
    $region13: #{tpu_custom_call.1} parent=1 // pred_fallthru
      _
    // Predicated region
    $region14: #{tpu_custom_call.1} parent=1 // pred_check
      _
    $region15: #{tpu_custom_call.1} parent=1 // pred_check_branch
      %36 = sbr.rel (0) target = $region17
    $region16: #{tpu_custom_call.1} parent=1 // pred_region
      _
    $region17: #{tpu_custom_call.1} parent=1 // pred_fallthru
      _
    // Predicated region
    $region18: #{tpu_custom_call.1} parent=1 // pred_check
      _
    $region19: #{tpu_custom_call.1} parent=1 // pred_check_branch
      %38 = sbr.rel (0) target = $region21
    $region20: #{tpu_custom_call.1} parent=1 // pred_region
      _
    $region21: #{tpu_custom_call.1} parent=1 // pred_fallthru
      _
    // Predicated region
    $region22: #{tpu_custom_call.1} parent=1 // pred_check
      _
    $region23: #{tpu_custom_call.1} parent=1 // pred_check_branch
      %40 = sbr.rel (0) target = $region25
    $region24: #{tpu_custom_call.1} parent=1 // pred_region
      _
    $region25: #{tpu_custom_call.1} parent=1 // pred_fallthru
      _
    // Predicated region
    $region26: #{tpu_custom_call.1} parent=1 // pred_check
      _
    $region27: #{tpu_custom_call.1} parent=1 // pred_check_branch
      %42 = sbr.rel (0) target = $region29
    $region28: #{tpu_custom_call.1} parent=1 // pred_region
      _
    $region29: #{tpu_custom_call.1} parent=1 // pred_fallthru
      _
    // Predicated region
    $region30: #{tpu_custom_call.1} parent=1 // pred_check
      _
    $region31: #{tpu_custom_call.1} parent=1 // pred_check_branch
      %44 = sbr.rel (0) target = $region33
    $region32: #{tpu_custom_call.1} parent=1 // pred_region
      _
    $region33: #{tpu_custom_call.1} parent=1 // pred_fallthru
      _
    // Predicated region
    $region34: #{tpu_custom_call.1} parent=1 // pred_check
      _
    $region35: #{tpu_custom_call.1} parent=1 // pred_check_branch
      %46 = sbr.rel (0) target = $region37
    $region36: #{tpu_custom_call.1} parent=1 // pred_region
      _
    $region37: #{tpu_custom_call.1} parent=1 // pred_fallthru
      _
    // Predicated region
    $region38: #{tpu_custom_call.1} parent=1 // pred_check
      _
    $region39: #{tpu_custom_call.1} parent=1 // pred_check_branch
      %48 = sbr.rel (0) target = $region41
    $region40: #{tpu_custom_call.1} parent=1 // pred_region
      _
    $region41: #{tpu_custom_call.1} parent=1 // pred_fallthru
      _
    // Predicated region
    $region42: #{tpu_custom_call.1} parent=1 // pred_check
      _
    $region43: #{tpu_custom_call.1} parent=1 // pred_check_branch
      %50 = sbr.rel (0) target = $region45
    $region44: #{tpu_custom_call.1} parent=1 // pred_region
      _
    $region45: #{tpu_custom_call.1} parent=1 // pred_fallthru
      _
    // Predicated region
    $region46: #{tpu_custom_call.1} parent=1 // pred_check
      _
    $region47: #{tpu_custom_call.1} parent=1 // pred_check_branch
      %52 = sbr.rel (0) target = $region49
    $region48: #{tpu_custom_call.1} parent=1 // pred_region
      %54 = dma.done [#allocation4], 2560
    $region49: #{tpu_custom_call.1} parent=1 // pred_fallthru
      _
    %v55 = vld [vmem:[%s1] sm:$0x3f]
    %v56 = vld [vmem:[#allocation3] sm:$0xff]
    %v57 = vld [vmem:[#allocation3 + $0x8] sm:$0xff]
    %v58 = vld [vmem:[#allocation3 + $0x10] sm:$0xff]
    %v59 = vld [vmem:[#allocation3 + $0x18] sm:$0xff]
    %v60 = vld [vmem:[#allocation3 + $0x20] sm:$0xff]
    %v61 = vld [vmem:[#allocation3 + $0x28] sm:$0xff]
    %v62 = vld [vmem:[#allocation3 + $0x30] sm:$0xff]
    %v63 = vld [vmem:[#allocation3 + $0x38] sm:$0xff]
    %v64 = vld [vmem:[#allocation3 + $0x40] sm:$0xff]
    %v65 = vld [vmem:[#allocation3 + $0x48] sm:$0xff]
    %v66 = vld [vmem:[#allocation3 + $0x50] sm:$0xff]
    %v67 = vld [vmem:[#allocation3 + $0x58] sm:$0xff]
    %v68 = vld [vmem:[#allocation3 + $0x60] sm:$0xff]
    %v69 = vld [vmem:[#allocation3 + $0x68] sm:$0xff]
    %v70 = vld [vmem:[#allocation3 + $0x70] sm:$0xff]
    %v71 = vld [vmem:[#allocation3 + $0x78] sm:$0x1]
    %v72 = vld [vmem:[#allocation3 + $0x80] sm:$0x1]
    %v73 = vld [vmem:[#allocation3 + $0x88] sm:$0x1]
    %v74 = vld [vmem:[#allocation3 + $0x90] sm:$0x1]
    %v75 = vld [vmem:[#allocation3 + $0x98] sm:$0x1]
    %v76 = vld [vmem:[%s2] sm:$0x3f]
    %78 = vset.pattern.permute.xlu0 0
    %79 = vperm.xlu0 %78, %v76
    %v80 = vpop.permute.xlu0 %79
    %vm82 = vcmask 203776
    %v84 = vsel %vm82, %v55, 0
    %vm86 = vcmask 1040384
    %v88 = vsel %vm86, %v71, 0
    %v91 = vsel %vm86, %v72, 0
    %v94 = vsel %vm86, %v73, 0
    %v97 = vsel %vm86, %v74, 0
    %v100 = vsel %vm86, %v75, 0
    %102 = vmatpush.msra.mxu0 0.0
    %103 = vmatpush.msra.mxu0 0.0
    %104 = vmatpush.msra.mxu0 0.0
    %105 = vmatpush.msra.mxu0 0.0
    %106 = vmatpush.msra.mxu0 0.0
    %107 = vmatpush.msra.mxu0 0.0
    %108 = vmatpush.msra.mxu0 0.0
    %109 = vmatpush.msra.mxu0 0.0
    %110 = vmatpush.msra.mxu0 0.0
    %111 = vmatpush.msra.mxu0 0.0
    %112 = vmatpush.msra.mxu0 0.0
    %113 = vmatpush.msra.mxu0 0.0
    %114 = vmatpush.msra.mxu0 %v88
    %115 = vmatpush.msra.mxu0 %v66
    %116 = vmatpush.msra.mxu0 %v61
    %117 = vmatpush.msra.mxu0 %v56
    %118 = vmatmul.f32.gmra.mxu0 %v84
    %v119 = vpop.f32.mrf.mxu0
    %v120 = vadd.f32 %v80, %v119
    %121 = vdwg.mxu0
    %122 = vmatpush.msra.mxu0 0.0
    %123 = vmatpush.msra.mxu0 0.0
    %124 = vmatpush.msra.mxu0 0.0
    %125 = vmatpush.msra.mxu0 0.0
    %126 = vmatpush.msra.mxu0 0.0
    %127 = vmatpush.msra.mxu0 0.0
    %128 = vmatpush.msra.mxu0 0.0
    %129 = vmatpush.msra.mxu0 0.0
    %130 = vmatpush.msra.mxu0 0.0
    %131 = vmatpush.msra.mxu0 0.0
    %132 = vmatpush.msra.mxu0 0.0
    %133 = vmatpush.msra.mxu0 0.0
    %134 = vmatpush.msra.mxu0 %v91
    %135 = vmatpush.msra.mxu0 %v67
    %136 = vmatpush.msra.mxu0 %v62
    %137 = vmatpush.msra.mxu0 %v57
    %138 = vmatmul.f32.gmra.mxu0 %v84
    %v139 = vpop.f32.mrf.mxu0
    %v140 = vadd.f32 %v80, %v139
    %141 = vdwg.mxu0
    %142 = vmatpush.msra.mxu0 0.0
    %143 = vmatpush.msra.mxu0 0.0
    %144 = vmatpush.msra.mxu0 0.0
    %145 = vmatpush.msra.mxu0 0.0
    %146 = vmatpush.msra.mxu0 0.0
    %147 = vmatpush.msra.mxu0 0.0
    %148 = vmatpush.msra.mxu0 0.0
    %149 = vmatpush.msra.mxu0 0.0
    %150 = vmatpush.msra.mxu0 0.0
    %151 = vmatpush.msra.mxu0 0.0
    %152 = vmatpush.msra.mxu0 0.0
    %153 = vmatpush.msra.mxu0 0.0
    %154 = vmatpush.msra.mxu0 %v94
    %155 = vmatpush.msra.mxu0 %v68
    %156 = vmatpush.msra.mxu0 %v63
    %157 = vmatpush.msra.mxu0 %v58
    %158 = vmatmul.f32.gmra.mxu0 %v84
    %v159 = vpop.f32.mrf.mxu0
    %v160 = vadd.f32 %v80, %v159
    %161 = vdwg.mxu0
    %162 = vmatpush.msra.mxu0 0.0
    %163 = vmatpush.msra.mxu0 0.0
    %164 = vmatpush.msra.mxu0 0.0
    %165 = vmatpush.msra.mxu0 0.0
    %166 = vmatpush.msra.mxu0 0.0
    %167 = vmatpush.msra.mxu0 0.0
    %168 = vmatpush.msra.mxu0 0.0
    %169 = vmatpush.msra.mxu0 0.0
    %170 = vmatpush.msra.mxu0 0.0
    %171 = vmatpush.msra.mxu0 0.0
    %172 = vmatpush.msra.mxu0 0.0
    %173 = vmatpush.msra.mxu0 0.0
    %174 = vmatpush.msra.mxu0 %v97
    %175 = vmatpush.msra.mxu0 %v69
    %176 = vmatpush.msra.mxu0 %v64
    %177 = vmatpush.msra.mxu0 %v59
    %178 = vmatmul.f32.gmra.mxu0 %v84
    %v179 = vpop.f32.mrf.mxu0
    %v180 = vadd.f32 %v80, %v179
    %181 = vdwg.mxu0
    %182 = vmatpush.msra.mxu0 0.0
    %183 = vmatpush.msra.mxu0 0.0
    %184 = vmatpush.msra.mxu0 0.0
    %185 = vmatpush.msra.mxu0 0.0
    %186 = vmatpush.msra.mxu0 0.0
    %187 = vmatpush.msra.mxu0 0.0
    %188 = vmatpush.msra.mxu0 0.0
    %189 = vmatpush.msra.mxu0 0.0
    %190 = vmatpush.msra.mxu0 0.0
    %191 = vmatpush.msra.mxu0 0.0
    %192 = vmatpush.msra.mxu0 0.0
    %193 = vmatpush.msra.mxu0 0.0
    %194 = vmatpush.msra.mxu0 %v100
    %195 = vmatpush.msra.mxu0 %v70
    %196 = vmatpush.msra.mxu0 %v65
    %197 = vmatpush.msra.mxu0 %v60
    %198 = vmatmul.f32.gmra.mxu0 %v84
    %v199 = vpop.f32.mrf.mxu0
    %v200 = vadd.f32 %v80, %v199
    %201 = vdwg.mxu0
    %v202 = vld [vmem:[%s5] sm:$0x1f]
    %v204 = vperm.slane %v202, 0
    %v205 = vperm.slane %v202, 1
    %v206 = vperm.slane %v202, 2
    %v207 = vperm.slane %v202, 3
    %v208 = vperm.slane %v202, 4
    %v214 = vmul.f32 %v120, %v204
    %v215 = vmul.f32 %v140, %v205
    %v216 = vmul.f32 %v160, %v206
    %v217 = vmul.f32 %v180, %v207
    %v218 = vmul.f32 %v200, %v208
    %vm219 = vcmask 1045504
    %v220 = vsel %vm219, %v214, 0.0
    %v221 = vsel %vm219, %v215, 0.0
    %v222 = vadd.f32 %v220, %v221
    %v223 = vsel %vm219, %v216, 0.0
    %v224 = vadd.f32 %v222, %v223
    %v225 = vsel %vm219, %v217, 0.0
    %v226 = vadd.f32 %v224, %v225
    %v227 = vsel %vm219, %v218, 0.0
    %v228 = vadd.f32 %v226, %v227
    %229 = vadd.xlane.f32.xlu0 %v228
    %v230 = vpop.xlane.xlu0 %229
    %v231 = vmul.f32 %v230, 0.0034722222
    %v232 = vmul.f32 %v214, %v120
    %v233 = vmul.f32 %v215, %v140
    %v234 = vmul.f32 %v216, %v160
    %v235 = vmul.f32 %v217, %v180
    %v236 = vmul.f32 %v218, %v200
    %v237 = vsel %vm219, %v232, 0.0
    %v238 = vsel %vm219, %v233, 0.0
    %v239 = vadd.f32 %v237, %v238
    %v240 = vsel %vm219, %v234, 0.0
    %v241 = vadd.f32 %v239, %v240
    %v242 = vsel %vm219, %v235, 0.0
    %v243 = vadd.f32 %v241, %v242
    %v244 = vsel %vm219, %v236, 0.0
    %v245 = vadd.f32 %v243, %v244
    %246 = vadd.xlane.f32.xlu0 %v245
    %v247 = vpop.xlane.xlu0 %246
    %v248 = vmul.f32 %v247, 0.0034722222
    %v249 = vmul.f32 %v231, %v231
    %v250 = vsub.f32 %v248, %v249
    %v251 = vld [vmem:[%s3] sm:$0x3f]
    %v252 = vadd.f32 %v250, 1e-05
    %v253 = vrsqrt.pop %v252
    %v254 = vmul.f32 %v253, %v252
    %v255 = vmul.f32 %v254, %v253
    %v256 = vmul.f32 0.5, %v255
    %v257 = vsub.f32 1.5, %v256
    %v258 = vmul.f32 %v253, %v257
    %vm259 = vweird.f32 %v252
    %vm260 = vweird.f32 %v253
    %vm261 = vmor %vm259, %vm260
    %v262 = vsel %vm261, %v253, %v258
    %v263 = vmul.f32 %v251, %v262
    %v264 = vld [vmem:[%s4] sm:$0x3f]
    %v265 = vmul.f32 %v231, %v263
    %v266 = vsub.f32 %v264, %v265
    %268 = vset.pattern.permute.xlu0 0
    %269 = vperm.xlu0 %268, %v263
    %v270 = vpop.permute.xlu0 %269
    %v272 = vmul.f32 %v120, %v270
    %v273 = vmul.f32 %v140, %v270
    %v274 = vmul.f32 %v160, %v270
    %v275 = vmul.f32 %v180, %v270
    %v276 = vmul.f32 %v200, %v270
    %278 = vset.pattern.permute.xlu0 0
    %279 = vperm.xlu0 %278, %v266
    %v280 = vpop.permute.xlu0 %279
    %v282 = vadd.f32 %v272, %v280
    %v283 = vadd.f32 %v273, %v280
    %v284 = vadd.f32 %v274, %v280
    %v285 = vadd.f32 %v275, %v280
    %v286 = vadd.f32 %v276, %v280
    %v287 = vmax.f32 %v282, 0.0
    %v288 = vmax.f32 %v283, 0.0
    %v289 = vmax.f32 %v284, 0.0
    %v290 = vmax.f32 %v285, 0.0
    %v291 = vmax.f32 %v286, 0.0
    %292 = vst [vmem:[#allocation2] sm:$0x3f] %v287
    %293 = vst [vmem:[#allocation2 + $0x8] sm:$0x3f] %v288
    %294 = vst [vmem:[#allocation2 + $0x10] sm:$0x3f] %v289
    %295 = vst [vmem:[#allocation2 + $0x18] sm:$0x3f] %v290
    %296 = vst [vmem:[#allocation2 + $0x20] sm:$0x3f] %v291
    %v297 = vld [vmem:[#allocation2] sm:$0x3f]
    %v298 = vld [vmem:[#allocation2 + $0x8] sm:$0x3f]
    %v299 = vld [vmem:[#allocation2 + $0x10] sm:$0x3f]
    %v300 = vld [vmem:[#allocation2 + $0x18] sm:$0x3f]
    %v301 = vld [vmem:[%s6] sm:$0x7]
    %v302 = vld [vmem:[#allocation2 + $0x20] sm:$0x3f]
    %304 = vst [vmem:[#allocation1] ss:$2 sm:$0xff] %v301
    %v305 = vld.sshfl [vmem:[#allocation1] sm:$0xff pattern:$0x75316420]
    %306 = vrot.lane.b32.xlu0 %v305, 122
    %v307 = vpop.permute.xlu0 %306
    %313 = vrot.lane.b32.xlu0 %v297, 127
    %v314 = vpop.permute.xlu0 %313
    %315 = vrot.lane.b32.xlu0 %v298, 127
    %v316 = vpop.permute.xlu0 %315
    %317 = vrot.lane.b32.xlu0 %v299, 127
    %v318 = vpop.permute.xlu0 %317
    %319 = vrot.lane.b32.xlu0 %v300, 127
    %v320 = vpop.permute.xlu0 %319
    %321 = vrot.lane.b32.xlu0 %v302, 127
    %v322 = vpop.permute.xlu0 %321
    %vm323 = vcmask 1039360
    %v324 = vsel %vm323, %v314, %v316
    %v325 = vsel %vm323, %v316, %v318
    %v326 = vsel %vm323, %v318, %v320
    %v327 = vsel %vm323, %v320, %v322
    %vm328 = vcmask 48128
    %v329 = vsel %vm328, %v307, 0
    %v331 = vsel %vm219, %v324, 0
    %v333 = vsel %vm219, %v325, 0
    %v335 = vsel %vm219, %v326, 0
    %v337 = vsel %vm219, %v327, 0
    %339 = vmatpush.msra.mxu0 0.0
    %340 = vmatpush.msra.mxu0 0.0
    %341 = vmatpush.msra.mxu0 0.0
    %342 = vmatpush.msra.mxu0 0.0
    %343 = vmatpush.msra.mxu0 0.0
    %344 = vmatpush.msra.mxu0 0.0
    %345 = vmatpush.msra.mxu0 0.0
    %346 = vmatpush.msra.mxu0 0.0
    %347 = vmatpush.msra.mxu0 0.0
    %348 = vmatpush.msra.mxu0 0.0
    %349 = vmatpush.msra.mxu0 0.0
    %350 = vmatpush.msra.mxu0 0.0
    %351 = vmatpush.msra.mxu0 0.0
    %352 = vmatpush.msra.mxu0 0.0
    %353 = vmatpush.msra.mxu0 0.0
    %354 = vmatpush.msra.mxu0 %v331
    %355 = vmatmul.f32.gmra.mxu0 %v329
    %v356 = vpop.f32.mrf.mxu0
    %v357 = vadd.f32 0.0, %v356
    %358 = vdwg.mxu0
    %359 = vmatpush.msra.mxu0 0.0
    %360 = vmatpush.msra.mxu0 0.0
    %361 = vmatpush.msra.mxu0 0.0
    %362 = vmatpush.msra.mxu0 0.0
    %363 = vmatpush.msra.mxu0 0.0
    %364 = vmatpush.msra.mxu0 0.0
    %365 = vmatpush.msra.mxu0 0.0
    %366 = vmatpush.msra.mxu0 0.0
    %367 = vmatpush.msra.mxu0 0.0
    %368 = vmatpush.msra.mxu0 0.0
    %369 = vmatpush.msra.mxu0 0.0
    %370 = vmatpush.msra.mxu0 0.0
    %371 = vmatpush.msra.mxu0 0.0
    %372 = vmatpush.msra.mxu0 0.0
    %373 = vmatpush.msra.mxu0 0.0
    %374 = vmatpush.msra.mxu0 %v333
    %375 = vmatmul.f32.gmra.mxu0 %v329
    %v376 = vpop.f32.mrf.mxu0
    %v377 = vadd.f32 0.0, %v376
    %378 = vdwg.mxu0
    %379 = vmatpush.msra.mxu0 0.0
    %380 = vmatpush.msra.mxu0 0.0
    %381 = vmatpush.msra.mxu0 0.0
    %382 = vmatpush.msra.mxu0 0.0
    %383 = vmatpush.msra.mxu0 0.0
    %384 = vmatpush.msra.mxu0 0.0
    %385 = vmatpush.msra.mxu0 0.0
    %386 = vmatpush.msra.mxu0 0.0
    %387 = vmatpush.msra.mxu0 0.0
    %388 = vmatpush.msra.mxu0 0.0
    %389 = vmatpush.msra.mxu0 0.0
    %390 = vmatpush.msra.mxu0 0.0
    %391 = vmatpush.msra.mxu0 0.0
    %392 = vmatpush.msra.mxu0 0.0
    %393 = vmatpush.msra.mxu0 0.0
    %394 = vmatpush.msra.mxu0 %v335
    %395 = vmatmul.f32.gmra.mxu0 %v329
    %v396 = vpop.f32.mrf.mxu0
    %v397 = vadd.f32 0.0, %v396
    %398 = vdwg.mxu0
    %399 = vmatpush.msra.mxu0 0.0
    %400 = vmatpush.msra.mxu0 0.0
    %401 = vmatpush.msra.mxu0 0.0
    %402 = vmatpush.msra.mxu0 0.0
    %403 = vmatpush.msra.mxu0 0.0
    %404 = vmatpush.msra.mxu0 0.0
    %405 = vmatpush.msra.mxu0 0.0
    %406 = vmatpush.msra.mxu0 0.0
    %407 = vmatpush.msra.mxu0 0.0
    %408 = vmatpush.msra.mxu0 0.0
    %409 = vmatpush.msra.mxu0 0.0
    %410 = vmatpush.msra.mxu0 0.0
    %411 = vmatpush.msra.mxu0 0.0
    %412 = vmatpush.msra.mxu0 0.0
    %413 = vmatpush.msra.mxu0 0.0
    %414 = vmatpush.msra.mxu0 %v337
    %415 = vmatmul.f32.gmra.mxu0 %v329
    %v416 = vpop.f32.mrf.mxu0
    %v417 = vadd.f32 0.0, %v416
    %418 = vdwg.mxu0
    %v419 = vsel %vm328, %v301, 0
    %v421 = vsel %vm219, %v297, 0
    %v423 = vsel %vm219, %v298, 0
    %v425 = vsel %vm219, %v299, 0
    %v427 = vsel %vm219, %v300, 0
    %429 = vmatpush.msra.mxu0 0.0
    %430 = vmatpush.msra.mxu0 0.0
    %431 = vmatpush.msra.mxu0 0.0
    %432 = vmatpush.msra.mxu0 0.0
    %433 = vmatpush.msra.mxu0 0.0
    %434 = vmatpush.msra.mxu0 0.0
    %435 = vmatpush.msra.mxu0 0.0
    %436 = vmatpush.msra.mxu0 0.0
    %437 = vmatpush.msra.mxu0 0.0
    %438 = vmatpush.msra.mxu0 0.0
    %439 = vmatpush.msra.mxu0 0.0
    %440 = vmatpush.msra.mxu0 0.0
    %441 = vmatpush.msra.mxu0 0.0
    %442 = vmatpush.msra.mxu0 0.0
    %443 = vmatpush.msra.mxu0 0.0
    %444 = vmatpush.msra.mxu0 %v421
    %445 = vmatmul.f32.gmra.mxu0 %v419
    %v446 = vpop.f32.mrf.mxu0
    %v447 = vadd.f32 %v357, %v446
    %448 = vdwg.mxu0
    %449 = vmatpush.msra.mxu0 0.0
    %450 = vmatpush.msra.mxu0 0.0
    %451 = vmatpush.msra.mxu0 0.0
    %452 = vmatpush.msra.mxu0 0.0
    %453 = vmatpush.msra.mxu0 0.0
    %454 = vmatpush.msra.mxu0 0.0
    %455 = vmatpush.msra.mxu0 0.0
    %456 = vmatpush.msra.mxu0 0.0
    %457 = vmatpush.msra.mxu0 0.0
    %458 = vmatpush.msra.mxu0 0.0
    %459 = vmatpush.msra.mxu0 0.0
    %460 = vmatpush.msra.mxu0 0.0
    %461 = vmatpush.msra.mxu0 0.0
    %462 = vmatpush.msra.mxu0 0.0
    %463 = vmatpush.msra.mxu0 0.0
    %464 = vmatpush.msra.mxu0 %v423
    %465 = vmatmul.f32.gmra.mxu0 %v419
    %v466 = vpop.f32.mrf.mxu0
    %v467 = vadd.f32 %v377, %v466
    %468 = vdwg.mxu0
    %469 = vmatpush.msra.mxu0 0.0
    %470 = vmatpush.msra.mxu0 0.0
    %471 = vmatpush.msra.mxu0 0.0
    %472 = vmatpush.msra.mxu0 0.0
    %473 = vmatpush.msra.mxu0 0.0
    %474 = vmatpush.msra.mxu0 0.0
    %475 = vmatpush.msra.mxu0 0.0
    %476 = vmatpush.msra.mxu0 0.0
    %477 = vmatpush.msra.mxu0 0.0
    %478 = vmatpush.msra.mxu0 0.0
    %479 = vmatpush.msra.mxu0 0.0
    %480 = vmatpush.msra.mxu0 0.0
    %481 = vmatpush.msra.mxu0 0.0
    %482 = vmatpush.msra.mxu0 0.0
    %483 = vmatpush.msra.mxu0 0.0
    %484 = vmatpush.msra.mxu0 %v425
    %485 = vmatmul.f32.gmra.mxu0 %v419
    %v486 = vpop.f32.mrf.mxu0
    %v487 = vadd.f32 %v397, %v486
    %488 = vdwg.mxu0
    %489 = vmatpush.msra.mxu0 0.0
    %490 = vmatpush.msra.mxu0 0.0
    %491 = vmatpush.msra.mxu0 0.0
    %492 = vmatpush.msra.mxu0 0.0
    %493 = vmatpush.msra.mxu0 0.0
    %494 = vmatpush.msra.mxu0 0.0
    %495 = vmatpush.msra.mxu0 0.0
    %496 = vmatpush.msra.mxu0 0.0
    %497 = vmatpush.msra.mxu0 0.0
    %498 = vmatpush.msra.mxu0 0.0
    %499 = vmatpush.msra.mxu0 0.0
    %500 = vmatpush.msra.mxu0 0.0
    %501 = vmatpush.msra.mxu0 0.0
    %502 = vmatpush.msra.mxu0 0.0
    %503 = vmatpush.msra.mxu0 0.0
    %504 = vmatpush.msra.mxu0 %v427
    %505 = vmatmul.f32.gmra.mxu0 %v419
    %v506 = vpop.f32.mrf.mxu0
    %v507 = vadd.f32 %v417, %v506
    %508 = vdwg.mxu0
    %v509 = vld [vmem:[#allocation2] sm:$0x3f]
    %v510 = vld [vmem:[#allocation2 + $0x8] sm:$0x3f]
    %v511 = vld [vmem:[#allocation2 + $0x10] sm:$0x3f]
    %v512 = vld [vmem:[#allocation2 + $0x18] sm:$0x3f]
    %v513 = vld [vmem:[#allocation2 + $0x20] sm:$0x3f]
    %v514 = vld [vmem:[%s6] sm:$0x7]
    %516 = vst [vmem:[#allocation1] ss:$2 sm:$0xff] %v514
    %v517 = vld.sshfl [vmem:[#allocation1] sm:$0xff pattern:$0x75316420]
    %518 = vrot.lane.b32.xlu0 %v517, 116
    %v519 = vpop.permute.xlu0 %518
    %525 = vrot.lane.b32.xlu0 %v509, 126
    %v526 = vpop.permute.xlu0 %525
    %527 = vrot.lane.b32.xlu0 %v510, 126
    %v528 = vpop.permute.xlu0 %527
    %529 = vrot.lane.b32.xlu0 %v511, 126
    %v530 = vpop.permute.xlu0 %529
    %531 = vrot.lane.b32.xlu0 %v512, 126
    %v532 = vpop.permute.xlu0 %531
    %533 = vrot.lane.b32.xlu0 %v513, 126
    %v534 = vpop.permute.xlu0 %533
    %vm535 = vcmask 1031168
    %v536 = vsel %vm535, %v526, %v528
    %v537 = vsel %vm535, %v528, %v530
    %v538 = vsel %vm535, %v530, %v532
    %v539 = vsel %vm535, %v532, %v534
    %v540 = vsel %vm328, %v519, 0
    %v542 = vsel %vm219, %v536, 0
    %v544 = vsel %vm219, %v537, 0
    %v546 = vsel %vm219, %v538, 0
    %v548 = vsel %vm219, %v539, 0
    %550 = vmatpush.msra.mxu0 0.0
    %551 = vmatpush.msra.mxu0 0.0
    %552 = vmatpush.msra.mxu0 0.0
    %553 = vmatpush.msra.mxu0 0.0
    %554 = vmatpush.msra.mxu0 0.0
    %555 = vmatpush.msra.mxu0 0.0
    %556 = vmatpush.msra.mxu0 0.0
    %557 = vmatpush.msra.mxu0 0.0
    %558 = vmatpush.msra.mxu0 0.0
    %559 = vmatpush.msra.mxu0 0.0
    %560 = vmatpush.msra.mxu0 0.0
    %561 = vmatpush.msra.mxu0 0.0
    %562 = vmatpush.msra.mxu0 0.0
    %563 = vmatpush.msra.mxu0 0.0
    %564 = vmatpush.msra.mxu0 0.0
    %565 = vmatpush.msra.mxu0 %v542
    %566 = vmatmul.f32.gmra.mxu0 %v540
    %v567 = vpop.f32.mrf.mxu0
    %v568 = vadd.f32 0.0, %v567
    %569 = vdwg.mxu0
    %570 = vmatpush.msra.mxu0 0.0
    %571 = vmatpush.msra.mxu0 0.0
    %572 = vmatpush.msra.mxu0 0.0
    %573 = vmatpush.msra.mxu0 0.0
    %574 = vmatpush.msra.mxu0 0.0
    %575 = vmatpush.msra.mxu0 0.0
    %576 = vmatpush.msra.mxu0 0.0
    %577 = vmatpush.msra.mxu0 0.0
    %578 = vmatpush.msra.mxu0 0.0
    %579 = vmatpush.msra.mxu0 0.0
    %580 = vmatpush.msra.mxu0 0.0
    %581 = vmatpush.msra.mxu0 0.0
    %582 = vmatpush.msra.mxu0 0.0
    %583 = vmatpush.msra.mxu0 0.0
    %584 = vmatpush.msra.mxu0 0.0
    %585 = vmatpush.msra.mxu0 %v544
    %586 = vmatmul.f32.gmra.mxu0 %v540
    %v587 = vpop.f32.mrf.mxu0
    %v588 = vadd.f32 0.0, %v587
    %589 = vdwg.mxu0
    %590 = vmatpush.msra.mxu0 0.0
    %591 = vmatpush.msra.mxu0 0.0
    %592 = vmatpush.msra.mxu0 0.0
    %593 = vmatpush.msra.mxu0 0.0
    %594 = vmatpush.msra.mxu0 0.0
    %595 = vmatpush.msra.mxu0 0.0
    %596 = vmatpush.msra.mxu0 0.0
    %597 = vmatpush.msra.mxu0 0.0
    %598 = vmatpush.msra.mxu0 0.0
    %599 = vmatpush.msra.mxu0 0.0
    %600 = vmatpush.msra.mxu0 0.0
    %601 = vmatpush.msra.mxu0 0.0
    %602 = vmatpush.msra.mxu0 0.0
    %603 = vmatpush.msra.mxu0 0.0
    %604 = vmatpush.msra.mxu0 0.0
    %605 = vmatpush.msra.mxu0 %v546
    %606 = vmatmul.f32.gmra.mxu0 %v540
    %v607 = vpop.f32.mrf.mxu0
    %v608 = vadd.f32 0.0, %v607
    %609 = vdwg.mxu0
    %610 = vmatpush.msra.mxu0 0.0
    %611 = vmatpush.msra.mxu0 0.0
    %612 = vmatpush.msra.mxu0 0.0
    %613 = vmatpush.msra.mxu0 0.0
    %614 = vmatpush.msra.mxu0 0.0
    %615 = vmatpush.msra.mxu0 0.0
    %616 = vmatpush.msra.mxu0 0.0
    %617 = vmatpush.msra.mxu0 0.0
    %618 = vmatpush.msra.mxu0 0.0
    %619 = vmatpush.msra.mxu0 0.0
    %620 = vmatpush.msra.mxu0 0.0
    %621 = vmatpush.msra.mxu0 0.0
    %622 = vmatpush.msra.mxu0 0.0
    %623 = vmatpush.msra.mxu0 0.0
    %624 = vmatpush.msra.mxu0 0.0
    %625 = vmatpush.msra.mxu0 %v548
    %626 = vmatmul.f32.gmra.mxu0 %v540
    %v627 = vpop.f32.mrf.mxu0
    %v628 = vadd.f32 0.0, %v627
    %629 = vdwg.mxu0
    %v630 = vadd.f32 %v447, %v568
    %v631 = vadd.f32 %v467, %v588
    %v632 = vadd.f32 %v487, %v608
    %v633 = vadd.f32 %v507, %v628
    %v634 = vld [vmem:[#allocation2] sm:$0x3f]
    %v635 = vld [vmem:[#allocation2 + $0x8] sm:$0x3f]
    %v636 = vld [vmem:[#allocation2 + $0x10] sm:$0x3f]
    %v637 = vld [vmem:[#allocation2 + $0x18] sm:$0x3f]
    %v638 = vld [vmem:[#allocation2 + $0x20] sm:$0x3f]
    %v639 = vld [vmem:[%s6] sm:$0x7]
    %641 = vst [vmem:[#allocation1] ss:$2 sm:$0xff] %v639
    %v642 = vld.sshfl [vmem:[#allocation1] sm:$0xff pattern:$0x75316420]
    %643 = vrot.lane.b32.xlu0 %v642, 110
    %v644 = vpop.permute.xlu0 %643
    %650 = vrot.lane.b32.xlu0 %v634, 125
    %v651 = vpop.permute.xlu0 %650
    %652 = vrot.lane.b32.xlu0 %v635, 125
    %v653 = vpop.permute.xlu0 %652
    %654 = vrot.lane.b32.xlu0 %v636, 125
    %v655 = vpop.permute.xlu0 %654
    %656 = vrot.lane.b32.xlu0 %v637, 125
    %v657 = vpop.permute.xlu0 %656
    %658 = vrot.lane.b32.xlu0 %v638, 125
    %v659 = vpop.permute.xlu0 %658
    %vm660 = vcmask 1022976
    %v661 = vsel %vm660, %v651, %v653
    %v662 = vsel %vm660, %v653, %v655
    %v663 = vsel %vm660, %v655, %v657
    %v664 = vsel %vm660, %v657, %v659
    %v665 = vsel %vm328, %v644, 0
    %v667 = vsel %vm219, %v661, 0
    %v669 = vsel %vm219, %v662, 0
    %v671 = vsel %vm219, %v663, 0
    %v673 = vsel %vm219, %v664, 0
    %675 = vmatpush.msra.mxu0 0.0
    %676 = vmatpush.msra.mxu0 0.0
    %677 = vmatpush.msra.mxu0 0.0
    %678 = vmatpush.msra.mxu0 0.0
    %679 = vmatpush.msra.mxu0 0.0
    %680 = vmatpush.msra.mxu0 0.0
    %681 = vmatpush.msra.mxu0 0.0
    %682 = vmatpush.msra.mxu0 0.0
    %683 = vmatpush.msra.mxu0 0.0
    %684 = vmatpush.msra.mxu0 0.0
    %685 = vmatpush.msra.mxu0 0.0
    %686 = vmatpush.msra.mxu0 0.0
    %687 = vmatpush.msra.mxu0 0.0
    %688 = vmatpush.msra.mxu0 0.0
    %689 = vmatpush.msra.mxu0 0.0
    %690 = vmatpush.msra.mxu0 %v667
    %691 = vmatmul.f32.gmra.mxu0 %v665
    %v692 = vpop.f32.mrf.mxu0
    %v693 = vadd.f32 0.0, %v692
    %694 = vdwg.mxu0
    %695 = vmatpush.msra.mxu0 0.0
    %696 = vmatpush.msra.mxu0 0.0
    %697 = vmatpush.msra.mxu0 0.0
    %698 = vmatpush.msra.mxu0 0.0
    %699 = vmatpush.msra.mxu0 0.0
    %700 = vmatpush.msra.mxu0 0.0
    %701 = vmatpush.msra.mxu0 0.0
    %702 = vmatpush.msra.mxu0 0.0
    %703 = vmatpush.msra.mxu0 0.0
    %704 = vmatpush.msra.mxu0 0.0
    %705 = vmatpush.msra.mxu0 0.0
    %706 = vmatpush.msra.mxu0 0.0
    %707 = vmatpush.msra.mxu0 0.0
    %708 = vmatpush.msra.mxu0 0.0
    %709 = vmatpush.msra.mxu0 0.0
    %710 = vmatpush.msra.mxu0 %v669
    %711 = vmatmul.f32.gmra.mxu0 %v665
    %v712 = vpop.f32.mrf.mxu0
    %v713 = vadd.f32 0.0, %v712
    %714 = vdwg.mxu0
    %715 = vmatpush.msra.mxu0 0.0
    %716 = vmatpush.msra.mxu0 0.0
    %717 = vmatpush.msra.mxu0 0.0
    %718 = vmatpush.msra.mxu0 0.0
    %719 = vmatpush.msra.mxu0 0.0
    %720 = vmatpush.msra.mxu0 0.0
    %721 = vmatpush.msra.mxu0 0.0
    %722 = vmatpush.msra.mxu0 0.0
    %723 = vmatpush.msra.mxu0 0.0
    %724 = vmatpush.msra.mxu0 0.0
    %725 = vmatpush.msra.mxu0 0.0
    %726 = vmatpush.msra.mxu0 0.0
    %727 = vmatpush.msra.mxu0 0.0
    %728 = vmatpush.msra.mxu0 0.0
    %729 = vmatpush.msra.mxu0 0.0
    %730 = vmatpush.msra.mxu0 %v671
    %731 = vmatmul.f32.gmra.mxu0 %v665
    %v732 = vpop.f32.mrf.mxu0
    %v733 = vadd.f32 0.0, %v732
    %734 = vdwg.mxu0
    %735 = vmatpush.msra.mxu0 0.0
    %736 = vmatpush.msra.mxu0 0.0
    %737 = vmatpush.msra.mxu0 0.0
    %738 = vmatpush.msra.mxu0 0.0
    %739 = vmatpush.msra.mxu0 0.0
    %740 = vmatpush.msra.mxu0 0.0
    %741 = vmatpush.msra.mxu0 0.0
    %742 = vmatpush.msra.mxu0 0.0
    %743 = vmatpush.msra.mxu0 0.0
    %744 = vmatpush.msra.mxu0 0.0
    %745 = vmatpush.msra.mxu0 0.0
    %746 = vmatpush.msra.mxu0 0.0
    %747 = vmatpush.msra.mxu0 0.0
    %748 = vmatpush.msra.mxu0 0.0
    %749 = vmatpush.msra.mxu0 0.0
    %750 = vmatpush.msra.mxu0 %v673
    %751 = vmatmul.f32.gmra.mxu0 %v665
    %v752 = vpop.f32.mrf.mxu0
    %v753 = vadd.f32 0.0, %v752
    %754 = vdwg.mxu0
    %v755 = vadd.f32 %v630, %v693
    %v756 = vadd.f32 %v631, %v713
    %v757 = vadd.f32 %v632, %v733
    %v758 = vadd.f32 %v633, %v753
    %v759 = vld [vmem:[#allocation2] sm:$0x3f]
    %v760 = vld [vmem:[#allocation2 + $0x8] sm:$0x3f]
    %v761 = vld [vmem:[#allocation2 + $0x10] sm:$0x3f]
    %v762 = vld [vmem:[#allocation2 + $0x18] sm:$0x3f]
    %v763 = vld [vmem:[#allocation2 + $0x20] sm:$0x3f]
    %v764 = vld [vmem:[%s6] sm:$0x7]
    %766 = vst [vmem:[#allocation1] ss:$2 sm:$0xff] %v764
    %v767 = vld.sshfl [vmem:[#allocation1] sm:$0xff pattern:$0x75316420]
    %768 = vrot.lane.b32.xlu0 %v767, 104
    %v769 = vpop.permute.xlu0 %768
    %775 = vrot.lane.b32.xlu0 %v759, 124
    %v776 = vpop.permute.xlu0 %775
    %777 = vrot.lane.b32.xlu0 %v760, 124
    %v778 = vpop.permute.xlu0 %777
    %779 = vrot.lane.b32.xlu0 %v761, 124
    %v780 = vpop.permute.xlu0 %779
    %781 = vrot.lane.b32.xlu0 %v762, 124
    %v782 = vpop.permute.xlu0 %781
    %783 = vrot.lane.b32.xlu0 %v763, 124
    %v784 = vpop.permute.xlu0 %783
    %vm785 = vcmask 1014784
    %v786 = vsel %vm785, %v776, %v778
    %v787 = vsel %vm785, %v778, %v780
    %v788 = vsel %vm785, %v780, %v782
    %v789 = vsel %vm785, %v782, %v784
    %v790 = vsel %vm328, %v769, 0
    %v792 = vsel %vm219, %v786, 0
    %v794 = vsel %vm219, %v787, 0
    %v796 = vsel %vm219, %v788, 0
    %v798 = vsel %vm219, %v789, 0
    %800 = vmatpush.msra.mxu0 0.0
    %801 = vmatpush.msra.mxu0 0.0
    %802 = vmatpush.msra.mxu0 0.0
    %803 = vmatpush.msra.mxu0 0.0
    %804 = vmatpush.msra.mxu0 0.0
    %805 = vmatpush.msra.mxu0 0.0
    %806 = vmatpush.msra.mxu0 0.0
    %807 = vmatpush.msra.mxu0 0.0
    %808 = vmatpush.msra.mxu0 0.0
    %809 = vmatpush.msra.mxu0 0.0
    %810 = vmatpush.msra.mxu0 0.0
    %811 = vmatpush.msra.mxu0 0.0
    %812 = vmatpush.msra.mxu0 0.0
    %813 = vmatpush.msra.mxu0 0.0
    %814 = vmatpush.msra.mxu0 0.0
    %815 = vmatpush.msra.mxu0 %v792
    %816 = vmatmul.f32.gmra.mxu0 %v790
    %v817 = vpop.f32.mrf.mxu0
    %v818 = vadd.f32 0.0, %v817
    %819 = vdwg.mxu0
    %820 = vmatpush.msra.mxu0 0.0
    %821 = vmatpush.msra.mxu0 0.0
    %822 = vmatpush.msra.mxu0 0.0
    %823 = vmatpush.msra.mxu0 0.0
    %824 = vmatpush.msra.mxu0 0.0
    %825 = vmatpush.msra.mxu0 0.0
    %826 = vmatpush.msra.mxu0 0.0
    %827 = vmatpush.msra.mxu0 0.0
    %828 = vmatpush.msra.mxu0 0.0
    %829 = vmatpush.msra.mxu0 0.0
    %830 = vmatpush.msra.mxu0 0.0
    %831 = vmatpush.msra.mxu0 0.0
    %832 = vmatpush.msra.mxu0 0.0
    %833 = vmatpush.msra.mxu0 0.0
    %834 = vmatpush.msra.mxu0 0.0
    %835 = vmatpush.msra.mxu0 %v794
    %836 = vmatmul.f32.gmra.mxu0 %v790
    %v837 = vpop.f32.mrf.mxu0
    %v838 = vadd.f32 0.0, %v837
    %839 = vdwg.mxu0
    %840 = vmatpush.msra.mxu0 0.0
    %841 = vmatpush.msra.mxu0 0.0
    %842 = vmatpush.msra.mxu0 0.0
    %843 = vmatpush.msra.mxu0 0.0
    %844 = vmatpush.msra.mxu0 0.0
    %845 = vmatpush.msra.mxu0 0.0
    %846 = vmatpush.msra.mxu0 0.0
    %847 = vmatpush.msra.mxu0 0.0
    %848 = vmatpush.msra.mxu0 0.0
    %849 = vmatpush.msra.mxu0 0.0
    %850 = vmatpush.msra.mxu0 0.0
    %851 = vmatpush.msra.mxu0 0.0
    %852 = vmatpush.msra.mxu0 0.0
    %853 = vmatpush.msra.mxu0 0.0
    %854 = vmatpush.msra.mxu0 0.0
    %855 = vmatpush.msra.mxu0 %v796
    %856 = vmatmul.f32.gmra.mxu0 %v790
    %v857 = vpop.f32.mrf.mxu0
    %v858 = vadd.f32 0.0, %v857
    %859 = vdwg.mxu0
    %860 = vmatpush.msra.mxu0 0.0
    %861 = vmatpush.msra.mxu0 0.0
    %862 = vmatpush.msra.mxu0 0.0
    %863 = vmatpush.msra.mxu0 0.0
    %864 = vmatpush.msra.mxu0 0.0
    %865 = vmatpush.msra.mxu0 0.0
    %866 = vmatpush.msra.mxu0 0.0
    %867 = vmatpush.msra.mxu0 0.0
    %868 = vmatpush.msra.mxu0 0.0
    %869 = vmatpush.msra.mxu0 0.0
    %870 = vmatpush.msra.mxu0 0.0
    %871 = vmatpush.msra.mxu0 0.0
    %872 = vmatpush.msra.mxu0 0.0
    %873 = vmatpush.msra.mxu0 0.0
    %874 = vmatpush.msra.mxu0 0.0
    %875 = vmatpush.msra.mxu0 %v798
    %876 = vmatmul.f32.gmra.mxu0 %v790
    %v877 = vpop.f32.mrf.mxu0
    %v878 = vadd.f32 0.0, %v877
    %879 = vdwg.mxu0
    %v880 = vadd.f32 %v755, %v818
    %v881 = vadd.f32 %v756, %v838
    %v882 = vadd.f32 %v757, %v858
    %v883 = vadd.f32 %v758, %v878
    %v884 = vld [vmem:[#allocation2] sm:$0x3f]
    %v885 = vld [vmem:[#allocation2 + $0x8] sm:$0x3f]
    %v886 = vld [vmem:[#allocation2 + $0x10] sm:$0x3f]
    %v887 = vld [vmem:[#allocation2 + $0x18] sm:$0x3f]
    %v888 = vld [vmem:[#allocation2 + $0x20] sm:$0x3f]
    %v889 = vld [vmem:[%s6] sm:$0x7]
    %891 = vst [vmem:[#allocation1] ss:$2 sm:$0xff] %v889
    %v892 = vld.sshfl [vmem:[#allocation1] sm:$0xff pattern:$0x75316420]
    %893 = vrot.lane.b32.xlu0 %v892, 98
    %v894 = vpop.permute.xlu0 %893
    %900 = vrot.lane.b32.xlu0 %v884, 112
    %v901 = vpop.permute.xlu0 %900
    %902 = vrot.lane.b32.xlu0 %v885, 112
    %v903 = vpop.permute.xlu0 %902
    %904 = vrot.lane.b32.xlu0 %v886, 112
    %v905 = vpop.permute.xlu0 %904
    %906 = vrot.lane.b32.xlu0 %v887, 112
    %v907 = vpop.permute.xlu0 %906
    %908 = vrot.lane.b32.xlu0 %v888, 112
    %v909 = vpop.permute.xlu0 %908
    %vm910 = vcmask 916480
    %v911 = vsel %vm910, %v901, %v903
    %v912 = vsel %vm910, %v903, %v905
    %v913 = vsel %vm910, %v905, %v907
    %v914 = vsel %vm910, %v907, %v909
    %v915 = vsel %vm328, %v894, 0
    %v917 = vsel %vm219, %v911, 0
    %v919 = vsel %vm219, %v912, 0
    %v921 = vsel %vm219, %v913, 0
    %v923 = vsel %vm219, %v914, 0
    %925 = vmatpush.msra.mxu0 0.0
    %926 = vmatpush.msra.mxu0 0.0
    %927 = vmatpush.msra.mxu0 0.0
    %928 = vmatpush.msra.mxu0 0.0
    %929 = vmatpush.msra.mxu0 0.0
    %930 = vmatpush.msra.mxu0 0.0
    %931 = vmatpush.msra.mxu0 0.0
    %932 = vmatpush.msra.mxu0 0.0
    %933 = vmatpush.msra.mxu0 0.0
    %934 = vmatpush.msra.mxu0 0.0
    %935 = vmatpush.msra.mxu0 0.0
    %936 = vmatpush.msra.mxu0 0.0
    %937 = vmatpush.msra.mxu0 0.0
    %938 = vmatpush.msra.mxu0 0.0
    %939 = vmatpush.msra.mxu0 0.0
    %940 = vmatpush.msra.mxu0 %v917
    %941 = vmatmul.f32.gmra.mxu0 %v915
    %v942 = vpop.f32.mrf.mxu0
    %v943 = vadd.f32 0.0, %v942
    %944 = vdwg.mxu0
    %945 = vmatpush.msra.mxu0 0.0
    %946 = vmatpush.msra.mxu0 0.0
    %947 = vmatpush.msra.mxu0 0.0
    %948 = vmatpush.msra.mxu0 0.0
    %949 = vmatpush.msra.mxu0 0.0
    %950 = vmatpush.msra.mxu0 0.0
    %951 = vmatpush.msra.mxu0 0.0
    %952 = vmatpush.msra.mxu0 0.0
    %953 = vmatpush.msra.mxu0 0.0
    %954 = vmatpush.msra.mxu0 0.0
    %955 = vmatpush.msra.mxu0 0.0
    %956 = vmatpush.msra.mxu0 0.0
    %957 = vmatpush.msra.mxu0 0.0
    %958 = vmatpush.msra.mxu0 0.0
    %959 = vmatpush.msra.mxu0 0.0
    %960 = vmatpush.msra.mxu0 %v919
    %961 = vmatmul.f32.gmra.mxu0 %v915
    %v962 = vpop.f32.mrf.mxu0
    %v963 = vadd.f32 0.0, %v962
    %964 = vdwg.mxu0
    %965 = vmatpush.msra.mxu0 0.0
    %966 = vmatpush.msra.mxu0 0.0
    %967 = vmatpush.msra.mxu0 0.0
    %968 = vmatpush.msra.mxu0 0.0
    %969 = vmatpush.msra.mxu0 0.0
    %970 = vmatpush.msra.mxu0 0.0
    %971 = vmatpush.msra.mxu0 0.0
    %972 = vmatpush.msra.mxu0 0.0
    %973 = vmatpush.msra.mxu0 0.0
    %974 = vmatpush.msra.mxu0 0.0
    %975 = vmatpush.msra.mxu0 0.0
    %976 = vmatpush.msra.mxu0 0.0
    %977 = vmatpush.msra.mxu0 0.0
    %978 = vmatpush.msra.mxu0 0.0
    %979 = vmatpush.msra.mxu0 0.0
    %980 = vmatpush.msra.mxu0 %v921
    %981 = vmatmul.f32.gmra.mxu0 %v915
    %v982 = vpop.f32.mrf.mxu0
    %v983 = vadd.f32 0.0, %v982
    %984 = vdwg.mxu0
    %985 = vmatpush.msra.mxu0 0.0
    %986 = vmatpush.msra.mxu0 0.0
    %987 = vmatpush.msra.mxu0 0.0
    %988 = vmatpush.msra.mxu0 0.0
    %989 = vmatpush.msra.mxu0 0.0
    %990 = vmatpush.msra.mxu0 0.0
    %991 = vmatpush.msra.mxu0 0.0
    %992 = vmatpush.msra.mxu0 0.0
    %993 = vmatpush.msra.mxu0 0.0
    %994 = vmatpush.msra.mxu0 0.0
    %995 = vmatpush.msra.mxu0 0.0
    %996 = vmatpush.msra.mxu0 0.0
    %997 = vmatpush.msra.mxu0 0.0
    %998 = vmatpush.msra.mxu0 0.0
    %999 = vmatpush.msra.mxu0 0.0
    %1000 = vmatpush.msra.mxu0 %v923
    %1001 = vmatmul.f32.gmra.mxu0 %v915
    %v1002 = vpop.f32.mrf.mxu0
    %v1003 = vadd.f32 0.0, %v1002
    %1004 = vdwg.mxu0
    %v1005 = vadd.f32 %v880, %v943
    %v1006 = vadd.f32 %v881, %v963
    %v1007 = vadd.f32 %v882, %v983
    %v1008 = vadd.f32 %v883, %v1003
    %v1009 = vld [vmem:[#allocation2] sm:$0x3f]
    %v1010 = vld [vmem:[#allocation2 + $0x8] sm:$0x3f]
    %v1011 = vld [vmem:[#allocation2 + $0x10] sm:$0x3f]
    %v1012 = vld [vmem:[#allocation2 + $0x18] sm:$0x3f]
    %v1013 = vld [vmem:[#allocation2 + $0x20] sm:$0x3f]
    %v1014 = vld [vmem:[%s6] sm:$0x7]
    %1016 = vst [vmem:[#allocation1] ss:$2 sm:$0xff] %v1014
    %v1017 = vld.sshfl [vmem:[#allocation1] sm:$0xff pattern:$0x75316420]
    %1018 = vrot.lane.b32.xlu0 %v1017, 92
    %v1019 = vpop.permute.xlu0 %1018
    %1025 = vrot.lane.b32.xlu0 %v1009, 111
    %v1026 = vpop.permute.xlu0 %1025
    %1027 = vrot.lane.b32.xlu0 %v1010, 111
    %v1028 = vpop.permute.xlu0 %1027
    %1029 = vrot.lane.b32.xlu0 %v1011, 111
    %v1030 = vpop.permute.xlu0 %1029
    %1031 = vrot.lane.b32.xlu0 %v1012, 111
    %v1032 = vpop.permute.xlu0 %1031
    %1033 = vrot.lane.b32.xlu0 %v1013, 111
    %v1034 = vpop.permute.xlu0 %1033
    %vm1035 = vcmask 908288
    %v1036 = vsel %vm1035, %v1026, %v1028
    %v1037 = vsel %vm1035, %v1028, %v1030
    %v1038 = vsel %vm1035, %v1030, %v1032
    %v1039 = vsel %vm1035, %v1032, %v1034
    %v1040 = vsel %vm328, %v1019, 0
    %v1042 = vsel %vm219, %v1036, 0
    %v1044 = vsel %vm219, %v1037, 0
    %v1046 = vsel %vm219, %v1038, 0
    %v1048 = vsel %vm219, %v1039, 0
    %1050 = vmatpush.msra.mxu0 0.0
    %1051 = vmatpush.msra.mxu0 0.0
    %1052 = vmatpush.msra.mxu0 0.0
    %1053 = vmatpush.msra.mxu0 0.0
    %1054 = vmatpush.msra.mxu0 0.0
    %1055 = vmatpush.msra.mxu0 0.0
    %1056 = vmatpush.msra.mxu0 0.0
    %1057 = vmatpush.msra.mxu0 0.0
    %1058 = vmatpush.msra.mxu0 0.0
    %1059 = vmatpush.msra.mxu0 0.0
    %1060 = vmatpush.msra.mxu0 0.0
    %1061 = vmatpush.msra.mxu0 0.0
    %1062 = vmatpush.msra.mxu0 0.0
    %1063 = vmatpush.msra.mxu0 0.0
    %1064 = vmatpush.msra.mxu0 0.0
    %1065 = vmatpush.msra.mxu0 %v1042
    %1066 = vmatmul.f32.gmra.mxu0 %v1040
    %v1067 = vpop.f32.mrf.mxu0
    %v1068 = vadd.f32 0.0, %v1067
    %1069 = vdwg.mxu0
    %1070 = vmatpush.msra.mxu0 0.0
    %1071 = vmatpush.msra.mxu0 0.0
    %1072 = vmatpush.msra.mxu0 0.0
    %1073 = vmatpush.msra.mxu0 0.0
    %1074 = vmatpush.msra.mxu0 0.0
    %1075 = vmatpush.msra.mxu0 0.0
    %1076 = vmatpush.msra.mxu0 0.0
    %1077 = vmatpush.msra.mxu0 0.0
    %1078 = vmatpush.msra.mxu0 0.0
    %1079 = vmatpush.msra.mxu0 0.0
    %1080 = vmatpush.msra.mxu0 0.0
    %1081 = vmatpush.msra.mxu0 0.0
    %1082 = vmatpush.msra.mxu0 0.0
    %1083 = vmatpush.msra.mxu0 0.0
    %1084 = vmatpush.msra.mxu0 0.0
    %1085 = vmatpush.msra.mxu0 %v1044
    %1086 = vmatmul.f32.gmra.mxu0 %v1040
    %v1087 = vpop.f32.mrf.mxu0
    %v1088 = vadd.f32 0.0, %v1087
    %1089 = vdwg.mxu0
    %1090 = vmatpush.msra.mxu0 0.0
    %1091 = vmatpush.msra.mxu0 0.0
    %1092 = vmatpush.msra.mxu0 0.0
    %1093 = vmatpush.msra.mxu0 0.0
    %1094 = vmatpush.msra.mxu0 0.0
    %1095 = vmatpush.msra.mxu0 0.0
    %1096 = vmatpush.msra.mxu0 0.0
    %1097 = vmatpush.msra.mxu0 0.0
    %1098 = vmatpush.msra.mxu0 0.0
    %1099 = vmatpush.msra.mxu0 0.0
    %1100 = vmatpush.msra.mxu0 0.0
    %1101 = vmatpush.msra.mxu0 0.0
    %1102 = vmatpush.msra.mxu0 0.0
    %1103 = vmatpush.msra.mxu0 0.0
    %1104 = vmatpush.msra.mxu0 0.0
    %1105 = vmatpush.msra.mxu0 %v1046
    %1106 = vmatmul.f32.gmra.mxu0 %v1040
    %v1107 = vpop.f32.mrf.mxu0
    %v1108 = vadd.f32 0.0, %v1107
    %1109 = vdwg.mxu0
    %1110 = vmatpush.msra.mxu0 0.0
    %1111 = vmatpush.msra.mxu0 0.0
    %1112 = vmatpush.msra.mxu0 0.0
    %1113 = vmatpush.msra.mxu0 0.0
    %1114 = vmatpush.msra.mxu0 0.0
    %1115 = vmatpush.msra.mxu0 0.0
    %1116 = vmatpush.msra.mxu0 0.0
    %1117 = vmatpush.msra.mxu0 0.0
    %1118 = vmatpush.msra.mxu0 0.0
    %1119 = vmatpush.msra.mxu0 0.0
    %1120 = vmatpush.msra.mxu0 0.0
    %1121 = vmatpush.msra.mxu0 0.0
    %1122 = vmatpush.msra.mxu0 0.0
    %1123 = vmatpush.msra.mxu0 0.0
    %1124 = vmatpush.msra.mxu0 0.0
    %1125 = vmatpush.msra.mxu0 %v1048
    %1126 = vmatmul.f32.gmra.mxu0 %v1040
    %v1127 = vpop.f32.mrf.mxu0
    %v1128 = vadd.f32 0.0, %v1127
    %1129 = vdwg.mxu0
    %v1130 = vadd.f32 %v1005, %v1068
    %v1131 = vadd.f32 %v1006, %v1088
    %v1132 = vadd.f32 %v1007, %v1108
    %v1133 = vadd.f32 %v1008, %v1128
    %v1134 = vld [vmem:[#allocation2] sm:$0x3f]
    %v1135 = vld [vmem:[#allocation2 + $0x8] sm:$0x3f]
    %v1136 = vld [vmem:[#allocation2 + $0x10] sm:$0x3f]
    %v1137 = vld [vmem:[#allocation2 + $0x18] sm:$0x3f]
    %v1138 = vld [vmem:[#allocation2 + $0x20] sm:$0x3f]
    %v1139 = vld [vmem:[%s6] sm:$0x7]
    %1141 = vst [vmem:[#allocation1] ss:$2 sm:$0xff] %v1139
    %v1142 = vld.sshfl [vmem:[#allocation1] sm:$0xff pattern:$0x75316420]
    %1143 = vrot.lane.b32.xlu0 %v1142, 86
    %v1144 = vpop.permute.xlu0 %1143
    %1150 = vrot.lane.b32.xlu0 %v1134, 110
    %v1151 = vpop.permute.xlu0 %1150
    %1152 = vrot.lane.b32.xlu0 %v1135, 110
    %v1153 = vpop.permute.xlu0 %1152
    %1154 = vrot.lane.b32.xlu0 %v1136, 110
    %v1155 = vpop.permute.xlu0 %1154
    %1156 = vrot.lane.b32.xlu0 %v1137, 110
    %v1157 = vpop.permute.xlu0 %1156
    %1158 = vrot.lane.b32.xlu0 %v1138, 110
    %v1159 = vpop.permute.xlu0 %1158
    %vm1160 = vcmask 900096
    %v1161 = vsel %vm1160, %v1151, %v1153
    %v1162 = vsel %vm1160, %v1153, %v1155
    %v1163 = vsel %vm1160, %v1155, %v1157
    %v1164 = vsel %vm1160, %v1157, %v1159
    %v1165 = vsel %vm328, %v1144, 0
    %v1167 = vsel %vm219, %v1161, 0
    %v1169 = vsel %vm219, %v1162, 0
    %v1171 = vsel %vm219, %v1163, 0
    %v1173 = vsel %vm219, %v1164, 0
    %1175 = vmatpush.msra.mxu0 0.0
    %1176 = vmatpush.msra.mxu0 0.0
    %1177 = vmatpush.msra.mxu0 0.0
    %1178 = vmatpush.msra.mxu0 0.0
    %1179 = vmatpush.msra.mxu0 0.0
    %1180 = vmatpush.msra.mxu0 0.0
    %1181 = vmatpush.msra.mxu0 0.0
    %1182 = vmatpush.msra.mxu0 0.0
    %1183 = vmatpush.msra.mxu0 0.0
    %1184 = vmatpush.msra.mxu0 0.0
    %1185 = vmatpush.msra.mxu0 0.0
    %1186 = vmatpush.msra.mxu0 0.0
    %1187 = vmatpush.msra.mxu0 0.0
    %1188 = vmatpush.msra.mxu0 0.0
    %1189 = vmatpush.msra.mxu0 0.0
    %1190 = vmatpush.msra.mxu0 %v1167
    %1191 = vmatmul.f32.gmra.mxu0 %v1165
    %v1192 = vpop.f32.mrf.mxu0
    %v1193 = vadd.f32 0.0, %v1192
    %1194 = vdwg.mxu0
    %1195 = vmatpush.msra.mxu0 0.0
    %1196 = vmatpush.msra.mxu0 0.0
    %1197 = vmatpush.msra.mxu0 0.0
    %1198 = vmatpush.msra.mxu0 0.0
    %1199 = vmatpush.msra.mxu0 0.0
    %1200 = vmatpush.msra.mxu0 0.0
    %1201 = vmatpush.msra.mxu0 0.0
    %1202 = vmatpush.msra.mxu0 0.0
    %1203 = vmatpush.msra.mxu0 0.0
    %1204 = vmatpush.msra.mxu0 0.0
    %1205 = vmatpush.msra.mxu0 0.0
    %1206 = vmatpush.msra.mxu0 0.0
    %1207 = vmatpush.msra.mxu0 0.0
    %1208 = vmatpush.msra.mxu0 0.0
    %1209 = vmatpush.msra.mxu0 0.0
    %1210 = vmatpush.msra.mxu0 %v1169
    %1211 = vmatmul.f32.gmra.mxu0 %v1165
    %v1212 = vpop.f32.mrf.mxu0
    %v1213 = vadd.f32 0.0, %v1212
    %1214 = vdwg.mxu0
    %1215 = vmatpush.msra.mxu0 0.0
    %1216 = vmatpush.msra.mxu0 0.0
    %1217 = vmatpush.msra.mxu0 0.0
    %1218 = vmatpush.msra.mxu0 0.0
    %1219 = vmatpush.msra.mxu0 0.0
    %1220 = vmatpush.msra.mxu0 0.0
    %1221 = vmatpush.msra.mxu0 0.0
    %1222 = vmatpush.msra.mxu0 0.0
    %1223 = vmatpush.msra.mxu0 0.0
    %1224 = vmatpush.msra.mxu0 0.0
    %1225 = vmatpush.msra.mxu0 0.0
    %1226 = vmatpush.msra.mxu0 0.0
    %1227 = vmatpush.msra.mxu0 0.0
    %1228 = vmatpush.msra.mxu0 0.0
    %1229 = vmatpush.msra.mxu0 0.0
    %1230 = vmatpush.msra.mxu0 %v1171
    %1231 = vmatmul.f32.gmra.mxu0 %v1165
    %v1232 = vpop.f32.mrf.mxu0
    %v1233 = vadd.f32 0.0, %v1232
    %1234 = vdwg.mxu0
    %1235 = vmatpush.msra.mxu0 0.0
    %1236 = vmatpush.msra.mxu0 0.0
    %1237 = vmatpush.msra.mxu0 0.0
    %1238 = vmatpush.msra.mxu0 0.0
    %1239 = vmatpush.msra.mxu0 0.0
    %1240 = vmatpush.msra.mxu0 0.0
    %1241 = vmatpush.msra.mxu0 0.0
    %1242 = vmatpush.msra.mxu0 0.0
    %1243 = vmatpush.msra.mxu0 0.0
    %1244 = vmatpush.msra.mxu0 0.0
    %1245 = vmatpush.msra.mxu0 0.0
    %1246 = vmatpush.msra.mxu0 0.0
    %1247 = vmatpush.msra.mxu0 0.0
    %1248 = vmatpush.msra.mxu0 0.0
    %1249 = vmatpush.msra.mxu0 0.0
    %1250 = vmatpush.msra.mxu0 %v1173
    %1251 = vmatmul.f32.gmra.mxu0 %v1165
    %v1252 = vpop.f32.mrf.mxu0
    %v1253 = vadd.f32 0.0, %v1252
    %1254 = vdwg.mxu0
    %v1255 = vadd.f32 %v1130, %v1193
    %v1256 = vadd.f32 %v1131, %v1213
    %v1257 = vadd.f32 %v1132, %v1233
    %v1258 = vadd.f32 %v1133, %v1253
    %v1259 = vld [vmem:[#allocation2] sm:$0x3f]
    %v1260 = vld [vmem:[#allocation2 + $0x8] sm:$0x3f]
    %v1261 = vld [vmem:[#allocation2 + $0x10] sm:$0x3f]
    %v1262 = vld [vmem:[#allocation2 + $0x18] sm:$0x3f]
    %v1263 = vld [vmem:[#allocation2 + $0x20] sm:$0x3f]
    %v1264 = vld [vmem:[%s6] sm:$0x7]
    %1266 = vst [vmem:[#allocation1] ss:$2 sm:$0xff] %v1264
    %v1267 = vld.sshfl [vmem:[#allocation1] sm:$0xff pattern:$0x75316420]
    %1268 = vrot.lane.b32.xlu0 %v1267, 80
    %v1269 = vpop.permute.xlu0 %1268
    %1275 = vrot.lane.b32.xlu0 %v1259, 109
    %v1276 = vpop.permute.xlu0 %1275
    %1277 = vrot.lane.b32.xlu0 %v1260, 109
    %v1278 = vpop.permute.xlu0 %1277
    %1279 = vrot.lane.b32.xlu0 %v1261, 109
    %v1280 = vpop.permute.xlu0 %1279
    %1281 = vrot.lane.b32.xlu0 %v1262, 109
    %v1282 = vpop.permute.xlu0 %1281
    %1283 = vrot.lane.b32.xlu0 %v1263, 109
    %v1284 = vpop.permute.xlu0 %1283
    %vm1285 = vcmask 891904
    %v1286 = vsel %vm1285, %v1276, %v1278
    %v1287 = vsel %vm1285, %v1278, %v1280
    %v1288 = vsel %vm1285, %v1280, %v1282
    %v1289 = vsel %vm1285, %v1282, %v1284
    %v1290 = vsel %vm328, %v1269, 0
    %v1292 = vsel %vm219, %v1286, 0
    %v1294 = vsel %vm219, %v1287, 0
    %v1296 = vsel %vm219, %v1288, 0
    %v1298 = vsel %vm219, %v1289, 0
    %1300 = vmatpush.msra.mxu0 0.0
    %1301 = vmatpush.msra.mxu0 0.0
    %1302 = vmatpush.msra.mxu0 0.0
    %1303 = vmatpush.msra.mxu0 0.0
    %1304 = vmatpush.msra.mxu0 0.0
    %1305 = vmatpush.msra.mxu0 0.0
    %1306 = vmatpush.msra.mxu0 0.0
    %1307 = vmatpush.msra.mxu0 0.0
    %1308 = vmatpush.msra.mxu0 0.0
    %1309 = vmatpush.msra.mxu0 0.0
    %1310 = vmatpush.msra.mxu0 0.0
    %1311 = vmatpush.msra.mxu0 0.0
    %1312 = vmatpush.msra.mxu0 0.0
    %1313 = vmatpush.msra.mxu0 0.0
    %1314 = vmatpush.msra.mxu0 0.0
    %1315 = vmatpush.msra.mxu0 %v1292
    %1316 = vmatmul.f32.gmra.mxu0 %v1290
    %v1317 = vpop.f32.mrf.mxu0
    %v1318 = vadd.f32 0.0, %v1317
    %1319 = vdwg.mxu0
    %1320 = vmatpush.msra.mxu0 0.0
    %1321 = vmatpush.msra.mxu0 0.0
    %1322 = vmatpush.msra.mxu0 0.0
    %1323 = vmatpush.msra.mxu0 0.0
    %1324 = vmatpush.msra.mxu0 0.0
    %1325 = vmatpush.msra.mxu0 0.0
    %1326 = vmatpush.msra.mxu0 0.0
    %1327 = vmatpush.msra.mxu0 0.0
    %1328 = vmatpush.msra.mxu0 0.0
    %1329 = vmatpush.msra.mxu0 0.0
    %1330 = vmatpush.msra.mxu0 0.0
    %1331 = vmatpush.msra.mxu0 0.0
    %1332 = vmatpush.msra.mxu0 0.0
    %1333 = vmatpush.msra.mxu0 0.0
    %1334 = vmatpush.msra.mxu0 0.0
    %1335 = vmatpush.msra.mxu0 %v1294
    %1336 = vmatmul.f32.gmra.mxu0 %v1290
    %v1337 = vpop.f32.mrf.mxu0
    %v1338 = vadd.f32 0.0, %v1337
    %1339 = vdwg.mxu0
    %1340 = vmatpush.msra.mxu0 0.0
    %1341 = vmatpush.msra.mxu0 0.0
    %1342 = vmatpush.msra.mxu0 0.0
    %1343 = vmatpush.msra.mxu0 0.0
    %1344 = vmatpush.msra.mxu0 0.0
    %1345 = vmatpush.msra.mxu0 0.0
    %1346 = vmatpush.msra.mxu0 0.0
    %1347 = vmatpush.msra.mxu0 0.0
    %1348 = vmatpush.msra.mxu0 0.0
    %1349 = vmatpush.msra.mxu0 0.0
    %1350 = vmatpush.msra.mxu0 0.0
    %1351 = vmatpush.msra.mxu0 0.0
    %1352 = vmatpush.msra.mxu0 0.0
    %1353 = vmatpush.msra.mxu0 0.0
    %1354 = vmatpush.msra.mxu0 0.0
    %1355 = vmatpush.msra.mxu0 %v1296
    %1356 = vmatmul.f32.gmra.mxu0 %v1290
    %v1357 = vpop.f32.mrf.mxu0
    %v1358 = vadd.f32 0.0, %v1357
    %1359 = vdwg.mxu0
    %1360 = vmatpush.msra.mxu0 0.0
    %1361 = vmatpush.msra.mxu0 0.0
    %1362 = vmatpush.msra.mxu0 0.0
    %1363 = vmatpush.msra.mxu0 0.0
    %1364 = vmatpush.msra.mxu0 0.0
    %1365 = vmatpush.msra.mxu0 0.0
    %1366 = vmatpush.msra.mxu0 0.0
    %1367 = vmatpush.msra.mxu0 0.0
    %1368 = vmatpush.msra.mxu0 0.0
    %1369 = vmatpush.msra.mxu0 0.0
    %1370 = vmatpush.msra.mxu0 0.0
    %1371 = vmatpush.msra.mxu0 0.0
    %1372 = vmatpush.msra.mxu0 0.0
    %1373 = vmatpush.msra.mxu0 0.0
    %1374 = vmatpush.msra.mxu0 0.0
    %1375 = vmatpush.msra.mxu0 %v1298
    %1376 = vmatmul.f32.gmra.mxu0 %v1290
    %v1377 = vpop.f32.mrf.mxu0
    %v1378 = vadd.f32 0.0, %v1377
    %1379 = vdwg.mxu0
    %v1380 = vadd.f32 %v1255, %v1318
    %v1381 = vadd.f32 %v1256, %v1338
    %v1382 = vadd.f32 %v1257, %v1358
    %v1383 = vadd.f32 %v1258, %v1378
    %v1384 = vld [vmem:[#allocation2] sm:$0x3f]
    %v1385 = vld [vmem:[#allocation2 + $0x8] sm:$0x3f]
    %v1386 = vld [vmem:[#allocation2 + $0x10] sm:$0x3f]
    %v1387 = vld [vmem:[#allocation2 + $0x18] sm:$0x3f]
    %v1388 = vld [vmem:[#allocation2 + $0x20] sm:$0x3f]
    %v1389 = vld [vmem:[%s6] sm:$0x7]
    %1391 = vst [vmem:[#allocation1] ss:$2 sm:$0xff] %v1389
    %v1392 = vld.sshfl [vmem:[#allocation1] sm:$0xff pattern:$0x75316420]
    %1393 = vrot.lane.b32.xlu0 %v1392, 74
    %v1394 = vpop.permute.xlu0 %1393
    %1400 = vrot.lane.b32.xlu0 %v1384, 108
    %v1401 = vpop.permute.xlu0 %1400
    %1402 = vrot.lane.b32.xlu0 %v1385, 108
    %v1403 = vpop.permute.xlu0 %1402
    %1404 = vrot.lane.b32.xlu0 %v1386, 108
    %v1405 = vpop.permute.xlu0 %1404
    %1406 = vrot.lane.b32.xlu0 %v1387, 108
    %v1407 = vpop.permute.xlu0 %1406
    %1408 = vrot.lane.b32.xlu0 %v1388, 108
    %v1409 = vpop.permute.xlu0 %1408
    %vm1410 = vcmask 883712
    %v1411 = vsel %vm1410, %v1401, %v1403
    %v1412 = vsel %vm1410, %v1403, %v1405
    %v1413 = vsel %vm1410, %v1405, %v1407
    %v1414 = vsel %vm1410, %v1407, %v1409
    %v1415 = vsel %vm328, %v1394, 0
    %v1417 = vsel %vm219, %v1411, 0
    %v1419 = vsel %vm219, %v1412, 0
    %v1421 = vsel %vm219, %v1413, 0
    %v1423 = vsel %vm219, %v1414, 0
    %1425 = vmatpush.msra.mxu0 0.0
    %1426 = vmatpush.msra.mxu0 0.0
    %1427 = vmatpush.msra.mxu0 0.0
    %1428 = vmatpush.msra.mxu0 0.0
    %1429 = vmatpush.msra.mxu0 0.0
    %1430 = vmatpush.msra.mxu0 0.0
    %1431 = vmatpush.msra.mxu0 0.0
    %1432 = vmatpush.msra.mxu0 0.0
    %1433 = vmatpush.msra.mxu0 0.0
    %1434 = vmatpush.msra.mxu0 0.0
    %1435 = vmatpush.msra.mxu0 0.0
    %1436 = vmatpush.msra.mxu0 0.0
    %1437 = vmatpush.msra.mxu0 0.0
    %1438 = vmatpush.msra.mxu0 0.0
    %1439 = vmatpush.msra.mxu0 0.0
    %1440 = vmatpush.msra.mxu0 %v1417
    %1441 = vmatmul.f32.gmra.mxu0 %v1415
    %v1442 = vpop.f32.mrf.mxu0
    %v1443 = vadd.f32 0.0, %v1442
    %1444 = vdwg.mxu0
    %1445 = vmatpush.msra.mxu0 0.0
    %1446 = vmatpush.msra.mxu0 0.0
    %1447 = vmatpush.msra.mxu0 0.0
    %1448 = vmatpush.msra.mxu0 0.0
    %1449 = vmatpush.msra.mxu0 0.0
    %1450 = vmatpush.msra.mxu0 0.0
    %1451 = vmatpush.msra.mxu0 0.0
    %1452 = vmatpush.msra.mxu0 0.0
    %1453 = vmatpush.msra.mxu0 0.0
    %1454 = vmatpush.msra.mxu0 0.0
    %1455 = vmatpush.msra.mxu0 0.0
    %1456 = vmatpush.msra.mxu0 0.0
    %1457 = vmatpush.msra.mxu0 0.0
    %1458 = vmatpush.msra.mxu0 0.0
    %1459 = vmatpush.msra.mxu0 0.0
    %1460 = vmatpush.msra.mxu0 %v1419
    %1461 = vmatmul.f32.gmra.mxu0 %v1415
    %v1462 = vpop.f32.mrf.mxu0
    %v1463 = vadd.f32 0.0, %v1462
    %1464 = vdwg.mxu0
    %1465 = vmatpush.msra.mxu0 0.0
    %1466 = vmatpush.msra.mxu0 0.0
    %1467 = vmatpush.msra.mxu0 0.0
    %1468 = vmatpush.msra.mxu0 0.0
    %1469 = vmatpush.msra.mxu0 0.0
    %1470 = vmatpush.msra.mxu0 0.0
    %1471 = vmatpush.msra.mxu0 0.0
    %1472 = vmatpush.msra.mxu0 0.0
    %1473 = vmatpush.msra.mxu0 0.0
    %1474 = vmatpush.msra.mxu0 0.0
    %1475 = vmatpush.msra.mxu0 0.0
    %1476 = vmatpush.msra.mxu0 0.0
    %1477 = vmatpush.msra.mxu0 0.0
    %1478 = vmatpush.msra.mxu0 0.0
    %1479 = vmatpush.msra.mxu0 0.0
    %1480 = vmatpush.msra.mxu0 %v1421
    %1481 = vmatmul.f32.gmra.mxu0 %v1415
    %v1482 = vpop.f32.mrf.mxu0
    %v1483 = vadd.f32 0.0, %v1482
    %1484 = vdwg.mxu0
    %1485 = vmatpush.msra.mxu0 0.0
    %1486 = vmatpush.msra.mxu0 0.0
    %1487 = vmatpush.msra.mxu0 0.0
    %1488 = vmatpush.msra.mxu0 0.0
    %1489 = vmatpush.msra.mxu0 0.0
    %1490 = vmatpush.msra.mxu0 0.0
    %1491 = vmatpush.msra.mxu0 0.0
    %1492 = vmatpush.msra.mxu0 0.0
    %1493 = vmatpush.msra.mxu0 0.0
    %1494 = vmatpush.msra.mxu0 0.0
    %1495 = vmatpush.msra.mxu0 0.0
    %1496 = vmatpush.msra.mxu0 0.0
    %1497 = vmatpush.msra.mxu0 0.0
    %1498 = vmatpush.msra.mxu0 0.0
    %1499 = vmatpush.msra.mxu0 0.0
    %1500 = vmatpush.msra.mxu0 %v1423
    %1501 = vmatmul.f32.gmra.mxu0 %v1415
    %v1502 = vpop.f32.mrf.mxu0
    %v1503 = vadd.f32 0.0, %v1502
    %1504 = vdwg.mxu0
    %v1505 = vadd.f32 %v1380, %v1443
    %v1506 = vadd.f32 %v1381, %v1463
    %v1507 = vadd.f32 %v1382, %v1483
    %v1508 = vadd.f32 %v1383, %v1503
    %v1509 = vld [vmem:[#allocation2] sm:$0x3f]
    %v1510 = vld [vmem:[#allocation2 + $0x8] sm:$0x3f]
    %v1511 = vld [vmem:[#allocation2 + $0x10] sm:$0x3f]
    %v1512 = vld [vmem:[#allocation2 + $0x18] sm:$0x3f]
    %v1513 = vld [vmem:[#allocation2 + $0x20] sm:$0x3f]
    %v1514 = vld [vmem:[%s6] sm:$0x7]
    %1516 = vst [vmem:[#allocation1] ss:$2 sm:$0xff] %v1514
    %v1517 = vld.sshfl [vmem:[#allocation1] sm:$0xff pattern:$0x75316420]
    %1518 = vrot.lane.b32.xlu0 %v1517, 68
    %v1519 = vpop.permute.xlu0 %1518
    %1525 = vrot.lane.b32.xlu0 %v1509, 96
    %v1526 = vpop.permute.xlu0 %1525
    %1527 = vrot.lane.b32.xlu0 %v1510, 96
    %v1528 = vpop.permute.xlu0 %1527
    %1529 = vrot.lane.b32.xlu0 %v1511, 96
    %v1530 = vpop.permute.xlu0 %1529
    %1531 = vrot.lane.b32.xlu0 %v1512, 96
    %v1532 = vpop.permute.xlu0 %1531
    %1533 = vrot.lane.b32.xlu0 %v1513, 96
    %v1534 = vpop.permute.xlu0 %1533
    %vm1535 = vcmask 785408
    %v1536 = vsel %vm1535, %v1526, %v1528
    %v1537 = vsel %vm1535, %v1528, %v1530
    %v1538 = vsel %vm1535, %v1530, %v1532
    %v1539 = vsel %vm1535, %v1532, %v1534
    %v1540 = vsel %vm328, %v1519, 0
    %v1542 = vsel %vm219, %v1536, 0
    %v1544 = vsel %vm219, %v1537, 0
    %v1546 = vsel %vm219, %v1538, 0
    %v1548 = vsel %vm219, %v1539, 0
    %1550 = vmatpush.msra.mxu0 0.0
    %1551 = vmatpush.msra.mxu0 0.0
    %1552 = vmatpush.msra.mxu0 0.0
    %1553 = vmatpush.msra.mxu0 0.0
    %1554 = vmatpush.msra.mxu0 0.0
    %1555 = vmatpush.msra.mxu0 0.0
    %1556 = vmatpush.msra.mxu0 0.0
    %1557 = vmatpush.msra.mxu0 0.0
    %1558 = vmatpush.msra.mxu0 0.0
    %1559 = vmatpush.msra.mxu0 0.0
    %1560 = vmatpush.msra.mxu0 0.0
    %1561 = vmatpush.msra.mxu0 0.0
    %1562 = vmatpush.msra.mxu0 0.0
    %1563 = vmatpush.msra.mxu0 0.0
    %1564 = vmatpush.msra.mxu0 0.0
    %1565 = vmatpush.msra.mxu0 %v1542
    %1566 = vmatmul.f32.gmra.mxu0 %v1540
    %v1567 = vpop.f32.mrf.mxu0
    %v1568 = vadd.f32 0.0, %v1567
    %1569 = vdwg.mxu0
    %1570 = vmatpush.msra.mxu0 0.0
    %1571 = vmatpush.msra.mxu0 0.0
    %1572 = vmatpush.msra.mxu0 0.0
    %1573 = vmatpush.msra.mxu0 0.0
    %1574 = vmatpush.msra.mxu0 0.0
    %1575 = vmatpush.msra.mxu0 0.0
    %1576 = vmatpush.msra.mxu0 0.0
    %1577 = vmatpush.msra.mxu0 0.0
    %1578 = vmatpush.msra.mxu0 0.0
    %1579 = vmatpush.msra.mxu0 0.0
    %1580 = vmatpush.msra.mxu0 0.0
    %1581 = vmatpush.msra.mxu0 0.0
    %1582 = vmatpush.msra.mxu0 0.0
    %1583 = vmatpush.msra.mxu0 0.0
    %1584 = vmatpush.msra.mxu0 0.0
    %1585 = vmatpush.msra.mxu0 %v1544
    %1586 = vmatmul.f32.gmra.mxu0 %v1540
    %v1587 = vpop.f32.mrf.mxu0
    %v1588 = vadd.f32 0.0, %v1587
    %1589 = vdwg.mxu0
    %1590 = vmatpush.msra.mxu0 0.0
    %1591 = vmatpush.msra.mxu0 0.0
    %1592 = vmatpush.msra.mxu0 0.0
    %1593 = vmatpush.msra.mxu0 0.0
    %1594 = vmatpush.msra.mxu0 0.0
    %1595 = vmatpush.msra.mxu0 0.0
    %1596 = vmatpush.msra.mxu0 0.0
    %1597 = vmatpush.msra.mxu0 0.0
    %1598 = vmatpush.msra.mxu0 0.0
    %1599 = vmatpush.msra.mxu0 0.0
    %1600 = vmatpush.msra.mxu0 0.0
    %1601 = vmatpush.msra.mxu0 0.0
    %1602 = vmatpush.msra.mxu0 0.0
    %1603 = vmatpush.msra.mxu0 0.0
    %1604 = vmatpush.msra.mxu0 0.0
    %1605 = vmatpush.msra.mxu0 %v1546
    %1606 = vmatmul.f32.gmra.mxu0 %v1540
    %v1607 = vpop.f32.mrf.mxu0
    %v1608 = vadd.f32 0.0, %v1607
    %1609 = vdwg.mxu0
    %1610 = vmatpush.msra.mxu0 0.0
    %1611 = vmatpush.msra.mxu0 0.0
    %1612 = vmatpush.msra.mxu0 0.0
    %1613 = vmatpush.msra.mxu0 0.0
    %1614 = vmatpush.msra.mxu0 0.0
    %1615 = vmatpush.msra.mxu0 0.0
    %1616 = vmatpush.msra.mxu0 0.0
    %1617 = vmatpush.msra.mxu0 0.0
    %1618 = vmatpush.msra.mxu0 0.0
    %1619 = vmatpush.msra.mxu0 0.0
    %1620 = vmatpush.msra.mxu0 0.0
    %1621 = vmatpush.msra.mxu0 0.0
    %1622 = vmatpush.msra.mxu0 0.0
    %1623 = vmatpush.msra.mxu0 0.0
    %1624 = vmatpush.msra.mxu0 0.0
    %1625 = vmatpush.msra.mxu0 %v1548
    %1626 = vmatmul.f32.gmra.mxu0 %v1540
    %v1627 = vpop.f32.mrf.mxu0
    %v1628 = vadd.f32 0.0, %v1627
    %1629 = vdwg.mxu0
    %v1630 = vadd.f32 %v1505, %v1568
    %v1631 = vadd.f32 %v1506, %v1588
    %v1632 = vadd.f32 %v1507, %v1608
    %v1633 = vadd.f32 %v1508, %v1628
    %v1634 = vld [vmem:[#allocation2] sm:$0x3f]
    %v1635 = vld [vmem:[#allocation2 + $0x8] sm:$0x3f]
    %v1636 = vld [vmem:[#allocation2 + $0x10] sm:$0x3f]
    %v1637 = vld [vmem:[#allocation2 + $0x18] sm:$0x3f]
    %v1638 = vld [vmem:[#allocation2 + $0x20] sm:$0x3f]
    %v1639 = vld [vmem:[%s6] sm:$0x7]
    %1641 = vst [vmem:[#allocation1] ss:$2 sm:$0xff] %v1639
    %v1642 = vld.sshfl [vmem:[#allocation1] sm:$0xff pattern:$0x75316420]
    %1643 = vrot.lane.b32.xlu0 %v1642, 62
    %v1644 = vpop.permute.xlu0 %1643
    %1650 = vrot.lane.b32.xlu0 %v1634, 95
    %v1651 = vpop.permute.xlu0 %1650
    %1652 = vrot.lane.b32.xlu0 %v1635, 95
    %v1653 = vpop.permute.xlu0 %1652
    %1654 = vrot.lane.b32.xlu0 %v1636, 95
    %v1655 = vpop.permute.xlu0 %1654
    %1656 = vrot.lane.b32.xlu0 %v1637, 95
    %v1657 = vpop.permute.xlu0 %1656
    %1658 = vrot.lane.b32.xlu0 %v1638, 95
    %v1659 = vpop.permute.xlu0 %1658
    %vm1660 = vcmask 777216
    %v1661 = vsel %vm1660, %v1651, %v1653
    %v1662 = vsel %vm1660, %v1653, %v1655
    %v1663 = vsel %vm1660, %v1655, %v1657
    %v1664 = vsel %vm1660, %v1657, %v1659
    %v1665 = vsel %vm328, %v1644, 0
    %v1667 = vsel %vm219, %v1661, 0
    %v1669 = vsel %vm219, %v1662, 0
    %v1671 = vsel %vm219, %v1663, 0
    %v1673 = vsel %vm219, %v1664, 0
    %1675 = vmatpush.msra.mxu0 0.0
    %1676 = vmatpush.msra.mxu0 0.0
    %1677 = vmatpush.msra.mxu0 0.0
    %1678 = vmatpush.msra.mxu0 0.0
    %1679 = vmatpush.msra.mxu0 0.0
    %1680 = vmatpush.msra.mxu0 0.0
    %1681 = vmatpush.msra.mxu0 0.0
    %1682 = vmatpush.msra.mxu0 0.0
    %1683 = vmatpush.msra.mxu0 0.0
    %1684 = vmatpush.msra.mxu0 0.0
    %1685 = vmatpush.msra.mxu0 0.0
    %1686 = vmatpush.msra.mxu0 0.0
    %1687 = vmatpush.msra.mxu0 0.0
    %1688 = vmatpush.msra.mxu0 0.0
    %1689 = vmatpush.msra.mxu0 0.0
    %1690 = vmatpush.msra.mxu0 %v1667
    %1691 = vmatmul.f32.gmra.mxu0 %v1665
    %v1692 = vpop.f32.mrf.mxu0
    %v1693 = vadd.f32 0.0, %v1692
    %1694 = vdwg.mxu0
    %1695 = vmatpush.msra.mxu0 0.0
    %1696 = vmatpush.msra.mxu0 0.0
    %1697 = vmatpush.msra.mxu0 0.0
    %1698 = vmatpush.msra.mxu0 0.0
    %1699 = vmatpush.msra.mxu0 0.0
    %1700 = vmatpush.msra.mxu0 0.0
    %1701 = vmatpush.msra.mxu0 0.0
    %1702 = vmatpush.msra.mxu0 0.0
    %1703 = vmatpush.msra.mxu0 0.0
    %1704 = vmatpush.msra.mxu0 0.0
    %1705 = vmatpush.msra.mxu0 0.0
    %1706 = vmatpush.msra.mxu0 0.0
    %1707 = vmatpush.msra.mxu0 0.0
    %1708 = vmatpush.msra.mxu0 0.0
    %1709 = vmatpush.msra.mxu0 0.0
    %1710 = vmatpush.msra.mxu0 %v1669
    %1711 = vmatmul.f32.gmra.mxu0 %v1665
    %v1712 = vpop.f32.mrf.mxu0
    %v1713 = vadd.f32 0.0, %v1712
    %1714 = vdwg.mxu0
    %1715 = vmatpush.msra.mxu0 0.0
    %1716 = vmatpush.msra.mxu0 0.0
    %1717 = vmatpush.msra.mxu0 0.0
    %1718 = vmatpush.msra.mxu0 0.0
    %1719 = vmatpush.msra.mxu0 0.0
    %1720 = vmatpush.msra.mxu0 0.0
    %1721 = vmatpush.msra.mxu0 0.0
    %1722 = vmatpush.msra.mxu0 0.0
    %1723 = vmatpush.msra.mxu0 0.0
    %1724 = vmatpush.msra.mxu0 0.0
    %1725 = vmatpush.msra.mxu0 0.0
    %1726 = vmatpush.msra.mxu0 0.0
    %1727 = vmatpush.msra.mxu0 0.0
    %1728 = vmatpush.msra.mxu0 0.0
    %1729 = vmatpush.msra.mxu0 0.0
    %1730 = vmatpush.msra.mxu0 %v1671
    %1731 = vmatmul.f32.gmra.mxu0 %v1665
    %v1732 = vpop.f32.mrf.mxu0
    %v1733 = vadd.f32 0.0, %v1732
    %1734 = vdwg.mxu0
    %1735 = vmatpush.msra.mxu0 0.0
    %1736 = vmatpush.msra.mxu0 0.0
    %1737 = vmatpush.msra.mxu0 0.0
    %1738 = vmatpush.msra.mxu0 0.0
    %1739 = vmatpush.msra.mxu0 0.0
    %1740 = vmatpush.msra.mxu0 0.0
    %1741 = vmatpush.msra.mxu0 0.0
    %1742 = vmatpush.msra.mxu0 0.0
    %1743 = vmatpush.msra.mxu0 0.0
    %1744 = vmatpush.msra.mxu0 0.0
    %1745 = vmatpush.msra.mxu0 0.0
    %1746 = vmatpush.msra.mxu0 0.0
    %1747 = vmatpush.msra.mxu0 0.0
    %1748 = vmatpush.msra.mxu0 0.0
    %1749 = vmatpush.msra.mxu0 0.0
    %1750 = vmatpush.msra.mxu0 %v1673
    %1751 = vmatmul.f32.gmra.mxu0 %v1665
    %v1752 = vpop.f32.mrf.mxu0
    %v1753 = vadd.f32 0.0, %v1752
    %1754 = vdwg.mxu0
    %v1755 = vadd.f32 %v1630, %v1693
    %v1756 = vadd.f32 %v1631, %v1713
    %v1757 = vadd.f32 %v1632, %v1733
    %v1758 = vadd.f32 %v1633, %v1753
    %v1759 = vld [vmem:[#allocation2] sm:$0x3f]
    %v1760 = vld [vmem:[#allocation2 + $0x8] sm:$0x3f]
    %v1761 = vld [vmem:[#allocation2 + $0x10] sm:$0x3f]
    %v1762 = vld [vmem:[#allocation2 + $0x18] sm:$0x3f]
    %v1763 = vld [vmem:[#allocation2 + $0x20] sm:$0x3f]
    %v1764 = vld [vmem:[%s6] sm:$0x7]
    %1766 = vst [vmem:[#allocation1] ss:$2 sm:$0xff] %v1764
    %v1767 = vld.sshfl [vmem:[#allocation1] sm:$0xff pattern:$0x75316420]
    %1768 = vrot.lane.b32.xlu0 %v1767, 56
    %v1769 = vpop.permute.xlu0 %1768
    %1775 = vrot.lane.b32.xlu0 %v1759, 94
    %v1776 = vpop.permute.xlu0 %1775
    %1777 = vrot.lane.b32.xlu0 %v1760, 94
    %v1778 = vpop.permute.xlu0 %1777
    %1779 = vrot.lane.b32.xlu0 %v1761, 94
    %v1780 = vpop.permute.xlu0 %1779
    %1781 = vrot.lane.b32.xlu0 %v1762, 94
    %v1782 = vpop.permute.xlu0 %1781
    %1783 = vrot.lane.b32.xlu0 %v1763, 94
    %v1784 = vpop.permute.xlu0 %1783
    %vm1785 = vcmask 769024
    %v1786 = vsel %vm1785, %v1776, %v1778
    %v1787 = vsel %vm1785, %v1778, %v1780
    %v1788 = vsel %vm1785, %v1780, %v1782
    %v1789 = vsel %vm1785, %v1782, %v1784
    %v1790 = vsel %vm328, %v1769, 0
    %v1792 = vsel %vm219, %v1786, 0
    %v1794 = vsel %vm219, %v1787, 0
    %v1796 = vsel %vm219, %v1788, 0
    %v1798 = vsel %vm219, %v1789, 0
    %1800 = vmatpush.msra.mxu0 0.0
    %1801 = vmatpush.msra.mxu0 0.0
    %1802 = vmatpush.msra.mxu0 0.0
    %1803 = vmatpush.msra.mxu0 0.0
    %1804 = vmatpush.msra.mxu0 0.0
    %1805 = vmatpush.msra.mxu0 0.0
    %1806 = vmatpush.msra.mxu0 0.0
    %1807 = vmatpush.msra.mxu0 0.0
    %1808 = vmatpush.msra.mxu0 0.0
    %1809 = vmatpush.msra.mxu0 0.0
    %1810 = vmatpush.msra.mxu0 0.0
    %1811 = vmatpush.msra.mxu0 0.0
    %1812 = vmatpush.msra.mxu0 0.0
    %1813 = vmatpush.msra.mxu0 0.0
    %1814 = vmatpush.msra.mxu0 0.0
    %1815 = vmatpush.msra.mxu0 %v1792
    %1816 = vmatmul.f32.gmra.mxu0 %v1790
    %v1817 = vpop.f32.mrf.mxu0
    %v1818 = vadd.f32 0.0, %v1817
    %1819 = vdwg.mxu0
    %1820 = vmatpush.msra.mxu0 0.0
    %1821 = vmatpush.msra.mxu0 0.0
    %1822 = vmatpush.msra.mxu0 0.0
    %1823 = vmatpush.msra.mxu0 0.0
    %1824 = vmatpush.msra.mxu0 0.0
    %1825 = vmatpush.msra.mxu0 0.0
    %1826 = vmatpush.msra.mxu0 0.0
    %1827 = vmatpush.msra.mxu0 0.0
    %1828 = vmatpush.msra.mxu0 0.0
    %1829 = vmatpush.msra.mxu0 0.0
    %1830 = vmatpush.msra.mxu0 0.0
    %1831 = vmatpush.msra.mxu0 0.0
    %1832 = vmatpush.msra.mxu0 0.0
    %1833 = vmatpush.msra.mxu0 0.0
    %1834 = vmatpush.msra.mxu0 0.0
    %1835 = vmatpush.msra.mxu0 %v1794
    %1836 = vmatmul.f32.gmra.mxu0 %v1790
    %v1837 = vpop.f32.mrf.mxu0
    %v1838 = vadd.f32 0.0, %v1837
    %1839 = vdwg.mxu0
    %1840 = vmatpush.msra.mxu0 0.0
    %1841 = vmatpush.msra.mxu0 0.0
    %1842 = vmatpush.msra.mxu0 0.0
    %1843 = vmatpush.msra.mxu0 0.0
    %1844 = vmatpush.msra.mxu0 0.0
    %1845 = vmatpush.msra.mxu0 0.0
    %1846 = vmatpush.msra.mxu0 0.0
    %1847 = vmatpush.msra.mxu0 0.0
    %1848 = vmatpush.msra.mxu0 0.0
    %1849 = vmatpush.msra.mxu0 0.0
    %1850 = vmatpush.msra.mxu0 0.0
    %1851 = vmatpush.msra.mxu0 0.0
    %1852 = vmatpush.msra.mxu0 0.0
    %1853 = vmatpush.msra.mxu0 0.0
    %1854 = vmatpush.msra.mxu0 0.0
    %1855 = vmatpush.msra.mxu0 %v1796
    %1856 = vmatmul.f32.gmra.mxu0 %v1790
    %v1857 = vpop.f32.mrf.mxu0
    %v1858 = vadd.f32 0.0, %v1857
    %1859 = vdwg.mxu0
    %1860 = vmatpush.msra.mxu0 0.0
    %1861 = vmatpush.msra.mxu0 0.0
    %1862 = vmatpush.msra.mxu0 0.0
    %1863 = vmatpush.msra.mxu0 0.0
    %1864 = vmatpush.msra.mxu0 0.0
    %1865 = vmatpush.msra.mxu0 0.0
    %1866 = vmatpush.msra.mxu0 0.0
    %1867 = vmatpush.msra.mxu0 0.0
    %1868 = vmatpush.msra.mxu0 0.0
    %1869 = vmatpush.msra.mxu0 0.0
    %1870 = vmatpush.msra.mxu0 0.0
    %1871 = vmatpush.msra.mxu0 0.0
    %1872 = vmatpush.msra.mxu0 0.0
    %1873 = vmatpush.msra.mxu0 0.0
    %1874 = vmatpush.msra.mxu0 0.0
    %1875 = vmatpush.msra.mxu0 %v1798
    %1876 = vmatmul.f32.gmra.mxu0 %v1790
    %v1877 = vpop.f32.mrf.mxu0
    %v1878 = vadd.f32 0.0, %v1877
    %1879 = vdwg.mxu0
    %v1880 = vadd.f32 %v1755, %v1818
    %v1881 = vadd.f32 %v1756, %v1838
    %v1882 = vadd.f32 %v1757, %v1858
    %v1883 = vadd.f32 %v1758, %v1878
    %v1884 = vld [vmem:[#allocation2] sm:$0x3f]
    %v1885 = vld [vmem:[#allocation2 + $0x8] sm:$0x3f]
    %v1886 = vld [vmem:[#allocation2 + $0x10] sm:$0x3f]
    %v1887 = vld [vmem:[#allocation2 + $0x18] sm:$0x3f]
    %v1888 = vld [vmem:[#allocation2 + $0x20] sm:$0x3f]
    %v1889 = vld [vmem:[%s6] sm:$0x7]
    %1891 = vst [vmem:[#allocation1] ss:$2 sm:$0xff] %v1889
    %v1892 = vld.sshfl [vmem:[#allocation1] sm:$0xff pattern:$0x75316420]
    %1893 = vrot.lane.b32.xlu0 %v1892, 50
    %v1894 = vpop.permute.xlu0 %1893
    %1900 = vrot.lane.b32.xlu0 %v1884, 93
    %v1901 = vpop.permute.xlu0 %1900
    %1902 = vrot.lane.b32.xlu0 %v1885, 93
    %v1903 = vpop.permute.xlu0 %1902
    %1904 = vrot.lane.b32.xlu0 %v1886, 93
    %v1905 = vpop.permute.xlu0 %1904
    %1906 = vrot.lane.b32.xlu0 %v1887, 93
    %v1907 = vpop.permute.xlu0 %1906
    %1908 = vrot.lane.b32.xlu0 %v1888, 93
    %v1909 = vpop.permute.xlu0 %1908
    %vm1910 = vcmask 760832
    %v1911 = vsel %vm1910, %v1901, %v1903
    %v1912 = vsel %vm1910, %v1903, %v1905
    %v1913 = vsel %vm1910, %v1905, %v1907
    %v1914 = vsel %vm1910, %v1907, %v1909
    %v1915 = vsel %vm328, %v1894, 0
    %v1917 = vsel %vm219, %v1911, 0
    %v1919 = vsel %vm219, %v1912, 0
    %v1921 = vsel %vm219, %v1913, 0
    %v1923 = vsel %vm219, %v1914, 0
    %1925 = vmatpush.msra.mxu0 0.0
    %1926 = vmatpush.msra.mxu0 0.0
    %1927 = vmatpush.msra.mxu0 0.0
    %1928 = vmatpush.msra.mxu0 0.0
    %1929 = vmatpush.msra.mxu0 0.0
    %1930 = vmatpush.msra.mxu0 0.0
    %1931 = vmatpush.msra.mxu0 0.0
    %1932 = vmatpush.msra.mxu0 0.0
    %1933 = vmatpush.msra.mxu0 0.0
    %1934 = vmatpush.msra.mxu0 0.0
    %1935 = vmatpush.msra.mxu0 0.0
    %1936 = vmatpush.msra.mxu0 0.0
    %1937 = vmatpush.msra.mxu0 0.0
    %1938 = vmatpush.msra.mxu0 0.0
    %1939 = vmatpush.msra.mxu0 0.0
    %1940 = vmatpush.msra.mxu0 %v1917
    %1941 = vmatmul.f32.gmra.mxu0 %v1915
    %v1942 = vpop.f32.mrf.mxu0
    %v1943 = vadd.f32 0.0, %v1942
    %1944 = vdwg.mxu0
    %1945 = vmatpush.msra.mxu0 0.0
    %1946 = vmatpush.msra.mxu0 0.0
    %1947 = vmatpush.msra.mxu0 0.0
    %1948 = vmatpush.msra.mxu0 0.0
    %1949 = vmatpush.msra.mxu0 0.0
    %1950 = vmatpush.msra.mxu0 0.0
    %1951 = vmatpush.msra.mxu0 0.0
    %1952 = vmatpush.msra.mxu0 0.0
    %1953 = vmatpush.msra.mxu0 0.0
    %1954 = vmatpush.msra.mxu0 0.0
    %1955 = vmatpush.msra.mxu0 0.0
    %1956 = vmatpush.msra.mxu0 0.0
    %1957 = vmatpush.msra.mxu0 0.0
    %1958 = vmatpush.msra.mxu0 0.0
    %1959 = vmatpush.msra.mxu0 0.0
    %1960 = vmatpush.msra.mxu0 %v1919
    %1961 = vmatmul.f32.gmra.mxu0 %v1915
    %v1962 = vpop.f32.mrf.mxu0
    %v1963 = vadd.f32 0.0, %v1962
    %1964 = vdwg.mxu0
    %1965 = vmatpush.msra.mxu0 0.0
    %1966 = vmatpush.msra.mxu0 0.0
    %1967 = vmatpush.msra.mxu0 0.0
    %1968 = vmatpush.msra.mxu0 0.0
    %1969 = vmatpush.msra.mxu0 0.0
    %1970 = vmatpush.msra.mxu0 0.0
    %1971 = vmatpush.msra.mxu0 0.0
    %1972 = vmatpush.msra.mxu0 0.0
    %1973 = vmatpush.msra.mxu0 0.0
    %1974 = vmatpush.msra.mxu0 0.0
    %1975 = vmatpush.msra.mxu0 0.0
    %1976 = vmatpush.msra.mxu0 0.0
    %1977 = vmatpush.msra.mxu0 0.0
    %1978 = vmatpush.msra.mxu0 0.0
    %1979 = vmatpush.msra.mxu0 0.0
    %1980 = vmatpush.msra.mxu0 %v1921
    %1981 = vmatmul.f32.gmra.mxu0 %v1915
    %v1982 = vpop.f32.mrf.mxu0
    %v1983 = vadd.f32 0.0, %v1982
    %1984 = vdwg.mxu0
    %1985 = vmatpush.msra.mxu0 0.0
    %1986 = vmatpush.msra.mxu0 0.0
    %1987 = vmatpush.msra.mxu0 0.0
    %1988 = vmatpush.msra.mxu0 0.0
    %1989 = vmatpush.msra.mxu0 0.0
    %1990 = vmatpush.msra.mxu0 0.0
    %1991 = vmatpush.msra.mxu0 0.0
    %1992 = vmatpush.msra.mxu0 0.0
    %1993 = vmatpush.msra.mxu0 0.0
    %1994 = vmatpush.msra.mxu0 0.0
    %1995 = vmatpush.msra.mxu0 0.0
    %1996 = vmatpush.msra.mxu0 0.0
    %1997 = vmatpush.msra.mxu0 0.0
    %1998 = vmatpush.msra.mxu0 0.0
    %1999 = vmatpush.msra.mxu0 0.0
    %2000 = vmatpush.msra.mxu0 %v1923
    %2001 = vmatmul.f32.gmra.mxu0 %v1915
    %v2002 = vpop.f32.mrf.mxu0
    %v2003 = vadd.f32 0.0, %v2002
    %2004 = vdwg.mxu0
    %v2005 = vadd.f32 %v1880, %v1943
    %v2006 = vadd.f32 %v1881, %v1963
    %v2007 = vadd.f32 %v1882, %v1983
    %v2008 = vadd.f32 %v1883, %v2003
    %v2009 = vld [vmem:[#allocation2] sm:$0x3f]
    %v2010 = vld [vmem:[#allocation2 + $0x8] sm:$0x3f]
    %v2011 = vld [vmem:[#allocation2 + $0x10] sm:$0x3f]
    %v2012 = vld [vmem:[#allocation2 + $0x18] sm:$0x3f]
    %v2013 = vld [vmem:[#allocation2 + $0x20] sm:$0x3f]
    %v2014 = vld [vmem:[%s6] sm:$0x7]
    %2016 = vst [vmem:[#allocation1] ss:$2 sm:$0xff] %v2014
    %v2017 = vld.sshfl [vmem:[#allocation1] sm:$0xff pattern:$0x75316420]
    %2018 = vrot.lane.b32.xlu0 %v2017, 44
    %v2019 = vpop.permute.xlu0 %2018
    %2025 = vrot.lane.b32.xlu0 %v2009, 92
    %v2026 = vpop.permute.xlu0 %2025
    %2027 = vrot.lane.b32.xlu0 %v2010, 92
    %v2028 = vpop.permute.xlu0 %2027
    %2029 = vrot.lane.b32.xlu0 %v2011, 92
    %v2030 = vpop.permute.xlu0 %2029
    %2031 = vrot.lane.b32.xlu0 %v2012, 92
    %v2032 = vpop.permute.xlu0 %2031
    %2033 = vrot.lane.b32.xlu0 %v2013, 92
    %v2034 = vpop.permute.xlu0 %2033
    %vm2035 = vcmask 752640
    %v2036 = vsel %vm2035, %v2026, %v2028
    %v2037 = vsel %vm2035, %v2028, %v2030
    %v2038 = vsel %vm2035, %v2030, %v2032
    %v2039 = vsel %vm2035, %v2032, %v2034
    %v2040 = vsel %vm328, %v2019, 0
    %v2042 = vsel %vm219, %v2036, 0
    %v2044 = vsel %vm219, %v2037, 0
    %v2046 = vsel %vm219, %v2038, 0
    %v2048 = vsel %vm219, %v2039, 0
    %2050 = vmatpush.msra.mxu0 0.0
    %2051 = vmatpush.msra.mxu0 0.0
    %2052 = vmatpush.msra.mxu0 0.0
    %2053 = vmatpush.msra.mxu0 0.0
    %2054 = vmatpush.msra.mxu0 0.0
    %2055 = vmatpush.msra.mxu0 0.0
    %2056 = vmatpush.msra.mxu0 0.0
    %2057 = vmatpush.msra.mxu0 0.0
    %2058 = vmatpush.msra.mxu0 0.0
    %2059 = vmatpush.msra.mxu0 0.0
    %2060 = vmatpush.msra.mxu0 0.0
    %2061 = vmatpush.msra.mxu0 0.0
    %2062 = vmatpush.msra.mxu0 0.0
    %2063 = vmatpush.msra.mxu0 0.0
    %2064 = vmatpush.msra.mxu0 0.0
    %2065 = vmatpush.msra.mxu0 %v2042
    %2066 = vmatmul.f32.gmra.mxu0 %v2040
    %v2067 = vpop.f32.mrf.mxu0
    %v2068 = vadd.f32 0.0, %v2067
    %2069 = vdwg.mxu0
    %2070 = vmatpush.msra.mxu0 0.0
    %2071 = vmatpush.msra.mxu0 0.0
    %2072 = vmatpush.msra.mxu0 0.0
    %2073 = vmatpush.msra.mxu0 0.0
    %2074 = vmatpush.msra.mxu0 0.0
    %2075 = vmatpush.msra.mxu0 0.0
    %2076 = vmatpush.msra.mxu0 0.0
    %2077 = vmatpush.msra.mxu0 0.0
    %2078 = vmatpush.msra.mxu0 0.0
    %2079 = vmatpush.msra.mxu0 0.0
    %2080 = vmatpush.msra.mxu0 0.0
    %2081 = vmatpush.msra.mxu0 0.0
    %2082 = vmatpush.msra.mxu0 0.0
    %2083 = vmatpush.msra.mxu0 0.0
    %2084 = vmatpush.msra.mxu0 0.0
    %2085 = vmatpush.msra.mxu0 %v2044
    %2086 = vmatmul.f32.gmra.mxu0 %v2040
    %v2087 = vpop.f32.mrf.mxu0
    %v2088 = vadd.f32 0.0, %v2087
    %2089 = vdwg.mxu0
    %2090 = vmatpush.msra.mxu0 0.0
    %2091 = vmatpush.msra.mxu0 0.0
    %2092 = vmatpush.msra.mxu0 0.0
    %2093 = vmatpush.msra.mxu0 0.0
    %2094 = vmatpush.msra.mxu0 0.0
    %2095 = vmatpush.msra.mxu0 0.0
    %2096 = vmatpush.msra.mxu0 0.0
    %2097 = vmatpush.msra.mxu0 0.0
    %2098 = vmatpush.msra.mxu0 0.0
    %2099 = vmatpush.msra.mxu0 0.0
    %2100 = vmatpush.msra.mxu0 0.0
    %2101 = vmatpush.msra.mxu0 0.0
    %2102 = vmatpush.msra.mxu0 0.0
    %2103 = vmatpush.msra.mxu0 0.0
    %2104 = vmatpush.msra.mxu0 0.0
    %2105 = vmatpush.msra.mxu0 %v2046
    %2106 = vmatmul.f32.gmra.mxu0 %v2040
    %v2107 = vpop.f32.mrf.mxu0
    %v2108 = vadd.f32 0.0, %v2107
    %2109 = vdwg.mxu0
    %2110 = vmatpush.msra.mxu0 0.0
    %2111 = vmatpush.msra.mxu0 0.0
    %2112 = vmatpush.msra.mxu0 0.0
    %2113 = vmatpush.msra.mxu0 0.0
    %2114 = vmatpush.msra.mxu0 0.0
    %2115 = vmatpush.msra.mxu0 0.0
    %2116 = vmatpush.msra.mxu0 0.0
    %2117 = vmatpush.msra.mxu0 0.0
    %2118 = vmatpush.msra.mxu0 0.0
    %2119 = vmatpush.msra.mxu0 0.0
    %2120 = vmatpush.msra.mxu0 0.0
    %2121 = vmatpush.msra.mxu0 0.0
    %2122 = vmatpush.msra.mxu0 0.0
    %2123 = vmatpush.msra.mxu0 0.0
    %2124 = vmatpush.msra.mxu0 0.0
    %2125 = vmatpush.msra.mxu0 %v2048
    %2126 = vmatmul.f32.gmra.mxu0 %v2040
    %v2127 = vpop.f32.mrf.mxu0
    %v2128 = vadd.f32 0.0, %v2127
    %2129 = vdwg.mxu0
    %v2130 = vadd.f32 %v2005, %v2068
    %v2131 = vadd.f32 %v2006, %v2088
    %v2132 = vadd.f32 %v2007, %v2108
    %v2133 = vadd.f32 %v2008, %v2128
    %v2134 = vld [vmem:[#allocation2] sm:$0x3f]
    %v2135 = vld [vmem:[#allocation2 + $0x8] sm:$0x3f]
    %v2136 = vld [vmem:[#allocation2 + $0x10] sm:$0x3f]
    %v2137 = vld [vmem:[#allocation2 + $0x18] sm:$0x3f]
    %v2138 = vld [vmem:[#allocation2 + $0x20] sm:$0x3f]
    %v2139 = vld [vmem:[%s6] sm:$0x7]
    %2141 = vst [vmem:[#allocation1] ss:$2 sm:$0xff] %v2139
    %v2142 = vld.sshfl [vmem:[#allocation1] sm:$0xff pattern:$0x75316420]
    %2143 = vrot.lane.b32.xlu0 %v2142, 38
    %v2144 = vpop.permute.xlu0 %2143
    %2150 = vrot.lane.b32.xlu0 %v2134, 80
    %v2151 = vpop.permute.xlu0 %2150
    %2152 = vrot.lane.b32.xlu0 %v2135, 80
    %v2153 = vpop.permute.xlu0 %2152
    %2154 = vrot.lane.b32.xlu0 %v2136, 80
    %v2155 = vpop.permute.xlu0 %2154
    %2156 = vrot.lane.b32.xlu0 %v2137, 80
    %v2157 = vpop.permute.xlu0 %2156
    %2158 = vrot.lane.b32.xlu0 %v2138, 80
    %v2159 = vpop.permute.xlu0 %2158
    %vm2160 = vcmask 654336
    %v2161 = vsel %vm2160, %v2151, %v2153
    %v2162 = vsel %vm2160, %v2153, %v2155
    %v2163 = vsel %vm2160, %v2155, %v2157
    %v2164 = vsel %vm2160, %v2157, %v2159
    %v2165 = vsel %vm328, %v2144, 0
    %v2167 = vsel %vm219, %v2161, 0
    %v2169 = vsel %vm219, %v2162, 0
    %v2171 = vsel %vm219, %v2163, 0
    %v2173 = vsel %vm219, %v2164, 0
    %2175 = vmatpush.msra.mxu0 0.0
    %2176 = vmatpush.msra.mxu0 0.0
    %2177 = vmatpush.msra.mxu0 0.0
    %2178 = vmatpush.msra.mxu0 0.0
    %2179 = vmatpush.msra.mxu0 0.0
    %2180 = vmatpush.msra.mxu0 0.0
    %2181 = vmatpush.msra.mxu0 0.0
    %2182 = vmatpush.msra.mxu0 0.0
    %2183 = vmatpush.msra.mxu0 0.0
    %2184 = vmatpush.msra.mxu0 0.0
    %2185 = vmatpush.msra.mxu0 0.0
    %2186 = vmatpush.msra.mxu0 0.0
    %2187 = vmatpush.msra.mxu0 0.0
    %2188 = vmatpush.msra.mxu0 0.0
    %2189 = vmatpush.msra.mxu0 0.0
    %2190 = vmatpush.msra.mxu0 %v2167
    %2191 = vmatmul.f32.gmra.mxu0 %v2165
    %v2192 = vpop.f32.mrf.mxu0
    %v2193 = vadd.f32 0.0, %v2192
    %2194 = vdwg.mxu0
    %2195 = vmatpush.msra.mxu0 0.0
    %2196 = vmatpush.msra.mxu0 0.0
    %2197 = vmatpush.msra.mxu0 0.0
    %2198 = vmatpush.msra.mxu0 0.0
    %2199 = vmatpush.msra.mxu0 0.0
    %2200 = vmatpush.msra.mxu0 0.0
    %2201 = vmatpush.msra.mxu0 0.0
    %2202 = vmatpush.msra.mxu0 0.0
    %2203 = vmatpush.msra.mxu0 0.0
    %2204 = vmatpush.msra.mxu0 0.0
    %2205 = vmatpush.msra.mxu0 0.0
    %2206 = vmatpush.msra.mxu0 0.0
    %2207 = vmatpush.msra.mxu0 0.0
    %2208 = vmatpush.msra.mxu0 0.0
    %2209 = vmatpush.msra.mxu0 0.0
    %2210 = vmatpush.msra.mxu0 %v2169
    %2211 = vmatmul.f32.gmra.mxu0 %v2165
    %v2212 = vpop.f32.mrf.mxu0
    %v2213 = vadd.f32 0.0, %v2212
    %2214 = vdwg.mxu0
    %2215 = vmatpush.msra.mxu0 0.0
    %2216 = vmatpush.msra.mxu0 0.0
    %2217 = vmatpush.msra.mxu0 0.0
    %2218 = vmatpush.msra.mxu0 0.0
    %2219 = vmatpush.msra.mxu0 0.0
    %2220 = vmatpush.msra.mxu0 0.0
    %2221 = vmatpush.msra.mxu0 0.0
    %2222 = vmatpush.msra.mxu0 0.0
    %2223 = vmatpush.msra.mxu0 0.0
    %2224 = vmatpush.msra.mxu0 0.0
    %2225 = vmatpush.msra.mxu0 0.0
    %2226 = vmatpush.msra.mxu0 0.0
    %2227 = vmatpush.msra.mxu0 0.0
    %2228 = vmatpush.msra.mxu0 0.0
    %2229 = vmatpush.msra.mxu0 0.0
    %2230 = vmatpush.msra.mxu0 %v2171
    %2231 = vmatmul.f32.gmra.mxu0 %v2165
    %v2232 = vpop.f32.mrf.mxu0
    %v2233 = vadd.f32 0.0, %v2232
    %2234 = vdwg.mxu0
    %2235 = vmatpush.msra.mxu0 0.0
    %2236 = vmatpush.msra.mxu0 0.0
    %2237 = vmatpush.msra.mxu0 0.0
    %2238 = vmatpush.msra.mxu0 0.0
    %2239 = vmatpush.msra.mxu0 0.0
    %2240 = vmatpush.msra.mxu0 0.0
    %2241 = vmatpush.msra.mxu0 0.0
    %2242 = vmatpush.msra.mxu0 0.0
    %2243 = vmatpush.msra.mxu0 0.0
    %2244 = vmatpush.msra.mxu0 0.0
    %2245 = vmatpush.msra.mxu0 0.0
    %2246 = vmatpush.msra.mxu0 0.0
    %2247 = vmatpush.msra.mxu0 0.0
    %2248 = vmatpush.msra.mxu0 0.0
    %2249 = vmatpush.msra.mxu0 0.0
    %2250 = vmatpush.msra.mxu0 %v2173
    %2251 = vmatmul.f32.gmra.mxu0 %v2165
    %v2252 = vpop.f32.mrf.mxu0
    %v2253 = vadd.f32 0.0, %v2252
    %2254 = vdwg.mxu0
    %v2255 = vadd.f32 %v2130, %v2193
    %v2256 = vadd.f32 %v2131, %v2213
    %v2257 = vadd.f32 %v2132, %v2233
    %v2258 = vadd.f32 %v2133, %v2253
    %v2259 = vld [vmem:[#allocation2] sm:$0x3f]
    %v2260 = vld [vmem:[#allocation2 + $0x8] sm:$0x3f]
    %v2261 = vld [vmem:[#allocation2 + $0x10] sm:$0x3f]
    %v2262 = vld [vmem:[#allocation2 + $0x18] sm:$0x3f]
    %v2263 = vld [vmem:[#allocation2 + $0x20] sm:$0x3f]
    %v2264 = vld [vmem:[%s6] sm:$0x7]
    %2266 = vst [vmem:[#allocation1] ss:$2 sm:$0xff] %v2264
    %v2267 = vld.sshfl [vmem:[#allocation1] sm:$0xff pattern:$0x75316420]
    %2268 = vrot.lane.b32.xlu0 %v2267, 32
    %v2269 = vpop.permute.xlu0 %2268
    %2275 = vrot.lane.b32.xlu0 %v2259, 79
    %v2276 = vpop.permute.xlu0 %2275
    %2277 = vrot.lane.b32.xlu0 %v2260, 79
    %v2278 = vpop.permute.xlu0 %2277
    %2279 = vrot.lane.b32.xlu0 %v2261, 79
    %v2280 = vpop.permute.xlu0 %2279
    %2281 = vrot.lane.b32.xlu0 %v2262, 79
    %v2282 = vpop.permute.xlu0 %2281
    %2283 = vrot.lane.b32.xlu0 %v2263, 79
    %v2284 = vpop.permute.xlu0 %2283
    %vm2285 = vcmask 646144
    %v2286 = vsel %vm2285, %v2276, %v2278
    %v2287 = vsel %vm2285, %v2278, %v2280
    %v2288 = vsel %vm2285, %v2280, %v2282
    %v2289 = vsel %vm2285, %v2282, %v2284
    %v2290 = vsel %vm328, %v2269, 0
    %v2292 = vsel %vm219, %v2286, 0
    %v2294 = vsel %vm219, %v2287, 0
    %v2296 = vsel %vm219, %v2288, 0
    %v2298 = vsel %vm219, %v2289, 0
    %2300 = vmatpush.msra.mxu0 0.0
    %2301 = vmatpush.msra.mxu0 0.0
    %2302 = vmatpush.msra.mxu0 0.0
    %2303 = vmatpush.msra.mxu0 0.0
    %2304 = vmatpush.msra.mxu0 0.0
    %2305 = vmatpush.msra.mxu0 0.0
    %2306 = vmatpush.msra.mxu0 0.0
    %2307 = vmatpush.msra.mxu0 0.0
    %2308 = vmatpush.msra.mxu0 0.0
    %2309 = vmatpush.msra.mxu0 0.0
    %2310 = vmatpush.msra.mxu0 0.0
    %2311 = vmatpush.msra.mxu0 0.0
    %2312 = vmatpush.msra.mxu0 0.0
    %2313 = vmatpush.msra.mxu0 0.0
    %2314 = vmatpush.msra.mxu0 0.0
    %2315 = vmatpush.msra.mxu0 %v2292
    %2316 = vmatmul.f32.gmra.mxu0 %v2290
    %v2317 = vpop.f32.mrf.mxu0
    %v2318 = vadd.f32 0.0, %v2317
    %2319 = vdwg.mxu0
    %2320 = vmatpush.msra.mxu0 0.0
    %2321 = vmatpush.msra.mxu0 0.0
    %2322 = vmatpush.msra.mxu0 0.0
    %2323 = vmatpush.msra.mxu0 0.0
    %2324 = vmatpush.msra.mxu0 0.0
    %2325 = vmatpush.msra.mxu0 0.0
    %2326 = vmatpush.msra.mxu0 0.0
    %2327 = vmatpush.msra.mxu0 0.0
    %2328 = vmatpush.msra.mxu0 0.0
    %2329 = vmatpush.msra.mxu0 0.0
    %2330 = vmatpush.msra.mxu0 0.0
    %2331 = vmatpush.msra.mxu0 0.0
    %2332 = vmatpush.msra.mxu0 0.0
    %2333 = vmatpush.msra.mxu0 0.0
    %2334 = vmatpush.msra.mxu0 0.0
    %2335 = vmatpush.msra.mxu0 %v2294
    %2336 = vmatmul.f32.gmra.mxu0 %v2290
    %v2337 = vpop.f32.mrf.mxu0
    %v2338 = vadd.f32 0.0, %v2337
    %2339 = vdwg.mxu0
    %2340 = vmatpush.msra.mxu0 0.0
    %2341 = vmatpush.msra.mxu0 0.0
    %2342 = vmatpush.msra.mxu0 0.0
    %2343 = vmatpush.msra.mxu0 0.0
    %2344 = vmatpush.msra.mxu0 0.0
    %2345 = vmatpush.msra.mxu0 0.0
    %2346 = vmatpush.msra.mxu0 0.0
    %2347 = vmatpush.msra.mxu0 0.0
    %2348 = vmatpush.msra.mxu0 0.0
    %2349 = vmatpush.msra.mxu0 0.0
    %2350 = vmatpush.msra.mxu0 0.0
    %2351 = vmatpush.msra.mxu0 0.0
    %2352 = vmatpush.msra.mxu0 0.0
    %2353 = vmatpush.msra.mxu0 0.0
    %2354 = vmatpush.msra.mxu0 0.0
    %2355 = vmatpush.msra.mxu0 %v2296
    %2356 = vmatmul.f32.gmra.mxu0 %v2290
    %v2357 = vpop.f32.mrf.mxu0
    %v2358 = vadd.f32 0.0, %v2357
    %2359 = vdwg.mxu0
    %2360 = vmatpush.msra.mxu0 0.0
    %2361 = vmatpush.msra.mxu0 0.0
    %2362 = vmatpush.msra.mxu0 0.0
    %2363 = vmatpush.msra.mxu0 0.0
    %2364 = vmatpush.msra.mxu0 0.0
    %2365 = vmatpush.msra.mxu0 0.0
    %2366 = vmatpush.msra.mxu0 0.0
    %2367 = vmatpush.msra.mxu0 0.0
    %2368 = vmatpush.msra.mxu0 0.0
    %2369 = vmatpush.msra.mxu0 0.0
    %2370 = vmatpush.msra.mxu0 0.0
    %2371 = vmatpush.msra.mxu0 0.0
    %2372 = vmatpush.msra.mxu0 0.0
    %2373 = vmatpush.msra.mxu0 0.0
    %2374 = vmatpush.msra.mxu0 0.0
    %2375 = vmatpush.msra.mxu0 %v2298
    %2376 = vmatmul.f32.gmra.mxu0 %v2290
    %v2377 = vpop.f32.mrf.mxu0
    %v2378 = vadd.f32 0.0, %v2377
    %2379 = vdwg.mxu0
    %v2380 = vadd.f32 %v2255, %v2318
    %v2381 = vadd.f32 %v2256, %v2338
    %v2382 = vadd.f32 %v2257, %v2358
    %v2383 = vadd.f32 %v2258, %v2378
    %v2384 = vld [vmem:[#allocation2] sm:$0x3f]
    %v2385 = vld [vmem:[#allocation2 + $0x8] sm:$0x3f]
    %v2386 = vld [vmem:[#allocation2 + $0x10] sm:$0x3f]
    %v2387 = vld [vmem:[#allocation2 + $0x18] sm:$0x3f]
    %v2388 = vld [vmem:[#allocation2 + $0x20] sm:$0x3f]
    %v2389 = vld [vmem:[%s6] sm:$0x7]
    %2391 = vst [vmem:[#allocation1] ss:$2 sm:$0xff] %v2389
    %v2392 = vld.sshfl [vmem:[#allocation1] sm:$0xff pattern:$0x75316420]
    %2393 = vrot.lane.b32.xlu0 %v2392, 26
    %v2394 = vpop.permute.xlu0 %2393
    %2400 = vrot.lane.b32.xlu0 %v2384, 78
    %v2401 = vpop.permute.xlu0 %2400
    %2402 = vrot.lane.b32.xlu0 %v2385, 78
    %v2403 = vpop.permute.xlu0 %2402
    %2404 = vrot.lane.b32.xlu0 %v2386, 78
    %v2405 = vpop.permute.xlu0 %2404
    %2406 = vrot.lane.b32.xlu0 %v2387, 78
    %v2407 = vpop.permute.xlu0 %2406
    %2408 = vrot.lane.b32.xlu0 %v2388, 78
    %v2409 = vpop.permute.xlu0 %2408
    %vm2410 = vcmask 637952
    %v2411 = vsel %vm2410, %v2401, %v2403
    %v2412 = vsel %vm2410, %v2403, %v2405
    %v2413 = vsel %vm2410, %v2405, %v2407
    %v2414 = vsel %vm2410, %v2407, %v2409
    %v2415 = vsel %vm328, %v2394, 0
    %v2417 = vsel %vm219, %v2411, 0
    %v2419 = vsel %vm219, %v2412, 0
    %v2421 = vsel %vm219, %v2413, 0
    %v2423 = vsel %vm219, %v2414, 0
    %2425 = vmatpush.msra.mxu0 0.0
    %2426 = vmatpush.msra.mxu0 0.0
    %2427 = vmatpush.msra.mxu0 0.0
    %2428 = vmatpush.msra.mxu0 0.0
    %2429 = vmatpush.msra.mxu0 0.0
    %2430 = vmatpush.msra.mxu0 0.0
    %2431 = vmatpush.msra.mxu0 0.0
    %2432 = vmatpush.msra.mxu0 0.0
    %2433 = vmatpush.msra.mxu0 0.0
    %2434 = vmatpush.msra.mxu0 0.0
    %2435 = vmatpush.msra.mxu0 0.0
    %2436 = vmatpush.msra.mxu0 0.0
    %2437 = vmatpush.msra.mxu0 0.0
    %2438 = vmatpush.msra.mxu0 0.0
    %2439 = vmatpush.msra.mxu0 0.0
    %2440 = vmatpush.msra.mxu0 %v2417
    %2441 = vmatmul.f32.gmra.mxu0 %v2415
    %v2442 = vpop.f32.mrf.mxu0
    %v2443 = vadd.f32 0.0, %v2442
    %2444 = vdwg.mxu0
    %2445 = vmatpush.msra.mxu0 0.0
    %2446 = vmatpush.msra.mxu0 0.0
    %2447 = vmatpush.msra.mxu0 0.0
    %2448 = vmatpush.msra.mxu0 0.0
    %2449 = vmatpush.msra.mxu0 0.0
    %2450 = vmatpush.msra.mxu0 0.0
    %2451 = vmatpush.msra.mxu0 0.0
    %2452 = vmatpush.msra.mxu0 0.0
    %2453 = vmatpush.msra.mxu0 0.0
    %2454 = vmatpush.msra.mxu0 0.0
    %2455 = vmatpush.msra.mxu0 0.0
    %2456 = vmatpush.msra.mxu0 0.0
    %2457 = vmatpush.msra.mxu0 0.0
    %2458 = vmatpush.msra.mxu0 0.0
    %2459 = vmatpush.msra.mxu0 0.0
    %2460 = vmatpush.msra.mxu0 %v2419
    %2461 = vmatmul.f32.gmra.mxu0 %v2415
    %v2462 = vpop.f32.mrf.mxu0
    %v2463 = vadd.f32 0.0, %v2462
    %2464 = vdwg.mxu0
    %2465 = vmatpush.msra.mxu0 0.0
    %2466 = vmatpush.msra.mxu0 0.0
    %2467 = vmatpush.msra.mxu0 0.0
    %2468 = vmatpush.msra.mxu0 0.0
    %2469 = vmatpush.msra.mxu0 0.0
    %2470 = vmatpush.msra.mxu0 0.0
    %2471 = vmatpush.msra.mxu0 0.0
    %2472 = vmatpush.msra.mxu0 0.0
    %2473 = vmatpush.msra.mxu0 0.0
    %2474 = vmatpush.msra.mxu0 0.0
    %2475 = vmatpush.msra.mxu0 0.0
    %2476 = vmatpush.msra.mxu0 0.0
    %2477 = vmatpush.msra.mxu0 0.0
    %2478 = vmatpush.msra.mxu0 0.0
    %2479 = vmatpush.msra.mxu0 0.0
    %2480 = vmatpush.msra.mxu0 %v2421
    %2481 = vmatmul.f32.gmra.mxu0 %v2415
    %v2482 = vpop.f32.mrf.mxu0
    %v2483 = vadd.f32 0.0, %v2482
    %2484 = vdwg.mxu0
    %2485 = vmatpush.msra.mxu0 0.0
    %2486 = vmatpush.msra.mxu0 0.0
    %2487 = vmatpush.msra.mxu0 0.0
    %2488 = vmatpush.msra.mxu0 0.0
    %2489 = vmatpush.msra.mxu0 0.0
    %2490 = vmatpush.msra.mxu0 0.0
    %2491 = vmatpush.msra.mxu0 0.0
    %2492 = vmatpush.msra.mxu0 0.0
    %2493 = vmatpush.msra.mxu0 0.0
    %2494 = vmatpush.msra.mxu0 0.0
    %2495 = vmatpush.msra.mxu0 0.0
    %2496 = vmatpush.msra.mxu0 0.0
    %2497 = vmatpush.msra.mxu0 0.0
    %2498 = vmatpush.msra.mxu0 0.0
    %2499 = vmatpush.msra.mxu0 0.0
    %2500 = vmatpush.msra.mxu0 %v2423
    %2501 = vmatmul.f32.gmra.mxu0 %v2415
    %v2502 = vpop.f32.mrf.mxu0
    %v2503 = vadd.f32 0.0, %v2502
    %2504 = vdwg.mxu0
    %v2505 = vadd.f32 %v2380, %v2443
    %v2506 = vadd.f32 %v2381, %v2463
    %v2507 = vadd.f32 %v2382, %v2483
    %v2508 = vadd.f32 %v2383, %v2503
    %v2509 = vld [vmem:[#allocation2] sm:$0x3f]
    %v2510 = vld [vmem:[#allocation2 + $0x8] sm:$0x3f]
    %v2511 = vld [vmem:[#allocation2 + $0x10] sm:$0x3f]
    %v2512 = vld [vmem:[#allocation2 + $0x18] sm:$0x3f]
    %v2513 = vld [vmem:[#allocation2 + $0x20] sm:$0x3f]
    %v2514 = vld [vmem:[%s6] sm:$0x7]
    %2516 = vst [vmem:[#allocation1] ss:$2 sm:$0xff] %v2514
    %v2517 = vld.sshfl [vmem:[#allocation1] sm:$0xff pattern:$0x75316420]
    %2518 = vrot.lane.b32.xlu0 %v2517, 20
    %v2519 = vpop.permute.xlu0 %2518
    %2525 = vrot.lane.b32.xlu0 %v2509, 77
    %v2526 = vpop.permute.xlu0 %2525
    %2527 = vrot.lane.b32.xlu0 %v2510, 77
    %v2528 = vpop.permute.xlu0 %2527
    %2529 = vrot.lane.b32.xlu0 %v2511, 77
    %v2530 = vpop.permute.xlu0 %2529
    %2531 = vrot.lane.b32.xlu0 %v2512, 77
    %v2532 = vpop.permute.xlu0 %2531
    %2533 = vrot.lane.b32.xlu0 %v2513, 77
    %v2534 = vpop.permute.xlu0 %2533
    %vm2535 = vcmask 629760
    %v2536 = vsel %vm2535, %v2526, %v2528
    %v2537 = vsel %vm2535, %v2528, %v2530
    %v2538 = vsel %vm2535, %v2530, %v2532
    %v2539 = vsel %vm2535, %v2532, %v2534
    %v2540 = vsel %vm328, %v2519, 0
    %v2542 = vsel %vm219, %v2536, 0
    %v2544 = vsel %vm219, %v2537, 0
    %v2546 = vsel %vm219, %v2538, 0
    %v2548 = vsel %vm219, %v2539, 0
    %2550 = vmatpush.msra.mxu0 0.0
    %2551 = vmatpush.msra.mxu0 0.0
    %2552 = vmatpush.msra.mxu0 0.0
    %2553 = vmatpush.msra.mxu0 0.0
    %2554 = vmatpush.msra.mxu0 0.0
    %2555 = vmatpush.msra.mxu0 0.0
    %2556 = vmatpush.msra.mxu0 0.0
    %2557 = vmatpush.msra.mxu0 0.0
    %2558 = vmatpush.msra.mxu0 0.0
    %2559 = vmatpush.msra.mxu0 0.0
    %2560 = vmatpush.msra.mxu0 0.0
    %2561 = vmatpush.msra.mxu0 0.0
    %2562 = vmatpush.msra.mxu0 0.0
    %2563 = vmatpush.msra.mxu0 0.0
    %2564 = vmatpush.msra.mxu0 0.0
    %2565 = vmatpush.msra.mxu0 %v2542
    %2566 = vmatmul.f32.gmra.mxu0 %v2540
    %v2567 = vpop.f32.mrf.mxu0
    %v2568 = vadd.f32 0.0, %v2567
    %2569 = vdwg.mxu0
    %2570 = vmatpush.msra.mxu0 0.0
    %2571 = vmatpush.msra.mxu0 0.0
    %2572 = vmatpush.msra.mxu0 0.0
    %2573 = vmatpush.msra.mxu0 0.0
    %2574 = vmatpush.msra.mxu0 0.0
    %2575 = vmatpush.msra.mxu0 0.0
    %2576 = vmatpush.msra.mxu0 0.0
    %2577 = vmatpush.msra.mxu0 0.0
    %2578 = vmatpush.msra.mxu0 0.0
    %2579 = vmatpush.msra.mxu0 0.0
    %2580 = vmatpush.msra.mxu0 0.0
    %2581 = vmatpush.msra.mxu0 0.0
    %2582 = vmatpush.msra.mxu0 0.0
    %2583 = vmatpush.msra.mxu0 0.0
    %2584 = vmatpush.msra.mxu0 0.0
    %2585 = vmatpush.msra.mxu0 %v2544
    %2586 = vmatmul.f32.gmra.mxu0 %v2540
    %v2587 = vpop.f32.mrf.mxu0
    %v2588 = vadd.f32 0.0, %v2587
    %2589 = vdwg.mxu0
    %2590 = vmatpush.msra.mxu0 0.0
    %2591 = vmatpush.msra.mxu0 0.0
    %2592 = vmatpush.msra.mxu0 0.0
    %2593 = vmatpush.msra.mxu0 0.0
    %2594 = vmatpush.msra.mxu0 0.0
    %2595 = vmatpush.msra.mxu0 0.0
    %2596 = vmatpush.msra.mxu0 0.0
    %2597 = vmatpush.msra.mxu0 0.0
    %2598 = vmatpush.msra.mxu0 0.0
    %2599 = vmatpush.msra.mxu0 0.0
    %2600 = vmatpush.msra.mxu0 0.0
    %2601 = vmatpush.msra.mxu0 0.0
    %2602 = vmatpush.msra.mxu0 0.0
    %2603 = vmatpush.msra.mxu0 0.0
    %2604 = vmatpush.msra.mxu0 0.0
    %2605 = vmatpush.msra.mxu0 %v2546
    %2606 = vmatmul.f32.gmra.mxu0 %v2540
    %v2607 = vpop.f32.mrf.mxu0
    %v2608 = vadd.f32 0.0, %v2607
    %2609 = vdwg.mxu0
    %2610 = vmatpush.msra.mxu0 0.0
    %2611 = vmatpush.msra.mxu0 0.0
    %2612 = vmatpush.msra.mxu0 0.0
    %2613 = vmatpush.msra.mxu0 0.0
    %2614 = vmatpush.msra.mxu0 0.0
    %2615 = vmatpush.msra.mxu0 0.0
    %2616 = vmatpush.msra.mxu0 0.0
    %2617 = vmatpush.msra.mxu0 0.0
    %2618 = vmatpush.msra.mxu0 0.0
    %2619 = vmatpush.msra.mxu0 0.0
    %2620 = vmatpush.msra.mxu0 0.0
    %2621 = vmatpush.msra.mxu0 0.0
    %2622 = vmatpush.msra.mxu0 0.0
    %2623 = vmatpush.msra.mxu0 0.0
    %2624 = vmatpush.msra.mxu0 0.0
    %2625 = vmatpush.msra.mxu0 %v2548
    %2626 = vmatmul.f32.gmra.mxu0 %v2540
    %v2627 = vpop.f32.mrf.mxu0
    %v2628 = vadd.f32 0.0, %v2627
    %2629 = vdwg.mxu0
    %v2630 = vadd.f32 %v2505, %v2568
    %v2631 = vadd.f32 %v2506, %v2588
    %v2632 = vadd.f32 %v2507, %v2608
    %v2633 = vadd.f32 %v2508, %v2628
    %v2634 = vld [vmem:[#allocation2] sm:$0x3f]
    %v2635 = vld [vmem:[#allocation2 + $0x8] sm:$0x3f]
    %v2636 = vld [vmem:[#allocation2 + $0x10] sm:$0x3f]
    %v2637 = vld [vmem:[#allocation2 + $0x18] sm:$0x3f]
    %v2638 = vld [vmem:[#allocation2 + $0x20] sm:$0x3f]
    %v2639 = vld [vmem:[%s6] sm:$0x7]
    %2641 = vst [vmem:[#allocation1] ss:$2 sm:$0xff] %v2639
    %v2642 = vld.sshfl [vmem:[#allocation1] sm:$0xff pattern:$0x75316420]
    %2643 = vrot.lane.b32.xlu0 %v2642, 14
    %v2644 = vpop.permute.xlu0 %2643
    %2650 = vrot.lane.b32.xlu0 %v2634, 76
    %v2651 = vpop.permute.xlu0 %2650
    %2652 = vrot.lane.b32.xlu0 %v2635, 76
    %v2653 = vpop.permute.xlu0 %2652
    %2654 = vrot.lane.b32.xlu0 %v2636, 76
    %v2655 = vpop.permute.xlu0 %2654
    %2656 = vrot.lane.b32.xlu0 %v2637, 76
    %v2657 = vpop.permute.xlu0 %2656
    %2658 = vrot.lane.b32.xlu0 %v2638, 76
    %v2659 = vpop.permute.xlu0 %2658
    %vm2660 = vcmask 621568
    %v2661 = vsel %vm2660, %v2651, %v2653
    %v2662 = vsel %vm2660, %v2653, %v2655
    %v2663 = vsel %vm2660, %v2655, %v2657
    %v2664 = vsel %vm2660, %v2657, %v2659
    %v2665 = vsel %vm328, %v2644, 0
    %v2667 = vsel %vm219, %v2661, 0
    %v2669 = vsel %vm219, %v2662, 0
    %v2671 = vsel %vm219, %v2663, 0
    %v2673 = vsel %vm219, %v2664, 0
    %2675 = vmatpush.msra.mxu0 0.0
    %2676 = vmatpush.msra.mxu0 0.0
    %2677 = vmatpush.msra.mxu0 0.0
    %2678 = vmatpush.msra.mxu0 0.0
    %2679 = vmatpush.msra.mxu0 0.0
    %2680 = vmatpush.msra.mxu0 0.0
    %2681 = vmatpush.msra.mxu0 0.0
    %2682 = vmatpush.msra.mxu0 0.0
    %2683 = vmatpush.msra.mxu0 0.0
    %2684 = vmatpush.msra.mxu0 0.0
    %2685 = vmatpush.msra.mxu0 0.0
    %2686 = vmatpush.msra.mxu0 0.0
    %2687 = vmatpush.msra.mxu0 0.0
    %2688 = vmatpush.msra.mxu0 0.0
    %2689 = vmatpush.msra.mxu0 0.0
    %2690 = vmatpush.msra.mxu0 %v2667
    %2691 = vmatmul.f32.gmra.mxu0 %v2665
    %v2692 = vpop.f32.mrf.mxu0
    %v2693 = vadd.f32 0.0, %v2692
    %2694 = vdwg.mxu0
    %2695 = vmatpush.msra.mxu0 0.0
    %2696 = vmatpush.msra.mxu0 0.0
    %2697 = vmatpush.msra.mxu0 0.0
    %2698 = vmatpush.msra.mxu0 0.0
    %2699 = vmatpush.msra.mxu0 0.0
    %2700 = vmatpush.msra.mxu0 0.0
    %2701 = vmatpush.msra.mxu0 0.0
    %2702 = vmatpush.msra.mxu0 0.0
    %2703 = vmatpush.msra.mxu0 0.0
    %2704 = vmatpush.msra.mxu0 0.0
    %2705 = vmatpush.msra.mxu0 0.0
    %2706 = vmatpush.msra.mxu0 0.0
    %2707 = vmatpush.msra.mxu0 0.0
    %2708 = vmatpush.msra.mxu0 0.0
    %2709 = vmatpush.msra.mxu0 0.0
    %2710 = vmatpush.msra.mxu0 %v2669
    %2711 = vmatmul.f32.gmra.mxu0 %v2665
    %v2712 = vpop.f32.mrf.mxu0
    %v2713 = vadd.f32 0.0, %v2712
    %2714 = vdwg.mxu0
    %2715 = vmatpush.msra.mxu0 0.0
    %2716 = vmatpush.msra.mxu0 0.0
    %2717 = vmatpush.msra.mxu0 0.0
    %2718 = vmatpush.msra.mxu0 0.0
    %2719 = vmatpush.msra.mxu0 0.0
    %2720 = vmatpush.msra.mxu0 0.0
    %2721 = vmatpush.msra.mxu0 0.0
    %2722 = vmatpush.msra.mxu0 0.0
    %2723 = vmatpush.msra.mxu0 0.0
    %2724 = vmatpush.msra.mxu0 0.0
    %2725 = vmatpush.msra.mxu0 0.0
    %2726 = vmatpush.msra.mxu0 0.0
    %2727 = vmatpush.msra.mxu0 0.0
    %2728 = vmatpush.msra.mxu0 0.0
    %2729 = vmatpush.msra.mxu0 0.0
    %2730 = vmatpush.msra.mxu0 %v2671
    %2731 = vmatmul.f32.gmra.mxu0 %v2665
    %v2732 = vpop.f32.mrf.mxu0
    %v2733 = vadd.f32 0.0, %v2732
    %2734 = vdwg.mxu0
    %2735 = vmatpush.msra.mxu0 0.0
    %2736 = vmatpush.msra.mxu0 0.0
    %2737 = vmatpush.msra.mxu0 0.0
    %2738 = vmatpush.msra.mxu0 0.0
    %2739 = vmatpush.msra.mxu0 0.0
    %2740 = vmatpush.msra.mxu0 0.0
    %2741 = vmatpush.msra.mxu0 0.0
    %2742 = vmatpush.msra.mxu0 0.0
    %2743 = vmatpush.msra.mxu0 0.0
    %2744 = vmatpush.msra.mxu0 0.0
    %2745 = vmatpush.msra.mxu0 0.0
    %2746 = vmatpush.msra.mxu0 0.0
    %2747 = vmatpush.msra.mxu0 0.0
    %2748 = vmatpush.msra.mxu0 0.0
    %2749 = vmatpush.msra.mxu0 0.0
    %2750 = vmatpush.msra.mxu0 %v2673
    %2751 = vmatmul.f32.gmra.mxu0 %v2665
    %v2752 = vpop.f32.mrf.mxu0
    %v2753 = vadd.f32 0.0, %v2752
    %2754 = vdwg.mxu0
    %v2755 = vadd.f32 %v2630, %v2693
    %v2756 = vadd.f32 %v2631, %v2713
    %v2757 = vadd.f32 %v2632, %v2733
    %v2758 = vadd.f32 %v2633, %v2753
    %v2759 = vld [vmem:[#allocation2] sm:$0x3f]
    %v2760 = vld [vmem:[#allocation2 + $0x8] sm:$0x3f]
    %v2761 = vld [vmem:[#allocation2 + $0x10] sm:$0x3f]
    %v2762 = vld [vmem:[#allocation2 + $0x18] sm:$0x3f]
    %v2763 = vld [vmem:[#allocation2 + $0x20] sm:$0x3f]
    %v2764 = vld [vmem:[%s6] sm:$0x7]
    %2766 = vst [vmem:[#allocation1] ss:$2 sm:$0xff] %v2764
    %v2767 = vld.sshfl [vmem:[#allocation1] sm:$0xff pattern:$0x75316420]
    %2768 = vrot.lane.b32.xlu0 %v2767, 8
    %v2769 = vpop.permute.xlu0 %2768
    %2775 = vrot.lane.b32.xlu0 %v2759, 64
    %v2776 = vpop.permute.xlu0 %2775
    %2777 = vrot.lane.b32.xlu0 %v2760, 64
    %v2778 = vpop.permute.xlu0 %2777
    %2779 = vrot.lane.b32.xlu0 %v2761, 64
    %v2780 = vpop.permute.xlu0 %2779
    %2781 = vrot.lane.b32.xlu0 %v2762, 64
    %v2782 = vpop.permute.xlu0 %2781
    %2783 = vrot.lane.b32.xlu0 %v2763, 64
    %v2784 = vpop.permute.xlu0 %2783
    %vm2785 = vcmask 523264
    %v2786 = vsel %vm2785, %v2776, %v2778
    %v2787 = vsel %vm2785, %v2778, %v2780
    %v2788 = vsel %vm2785, %v2780, %v2782
    %v2789 = vsel %vm2785, %v2782, %v2784
    %v2790 = vsel %vm328, %v2769, 0
    %v2792 = vsel %vm219, %v2786, 0
    %v2794 = vsel %vm219, %v2787, 0
    %v2796 = vsel %vm219, %v2788, 0
    %v2798 = vsel %vm219, %v2789, 0
    %2800 = vmatpush.msra.mxu0 0.0
    %2801 = vmatpush.msra.mxu0 0.0
    %2802 = vmatpush.msra.mxu0 0.0
    %2803 = vmatpush.msra.mxu0 0.0
    %2804 = vmatpush.msra.mxu0 0.0
    %2805 = vmatpush.msra.mxu0 0.0
    %2806 = vmatpush.msra.mxu0 0.0
    %2807 = vmatpush.msra.mxu0 0.0
    %2808 = vmatpush.msra.mxu0 0.0
    %2809 = vmatpush.msra.mxu0 0.0
    %2810 = vmatpush.msra.mxu0 0.0
    %2811 = vmatpush.msra.mxu0 0.0
    %2812 = vmatpush.msra.mxu0 0.0
    %2813 = vmatpush.msra.mxu0 0.0
    %2814 = vmatpush.msra.mxu0 0.0
    %2815 = vmatpush.msra.mxu0 %v2792
    %2816 = vmatmul.f32.gmra.mxu0 %v2790
    %v2817 = vpop.f32.mrf.mxu0
    %v2818 = vadd.f32 0.0, %v2817
    %2819 = vdwg.mxu0
    %2820 = vmatpush.msra.mxu0 0.0
    %2821 = vmatpush.msra.mxu0 0.0
    %2822 = vmatpush.msra.mxu0 0.0
    %2823 = vmatpush.msra.mxu0 0.0
    %2824 = vmatpush.msra.mxu0 0.0
    %2825 = vmatpush.msra.mxu0 0.0
    %2826 = vmatpush.msra.mxu0 0.0
    %2827 = vmatpush.msra.mxu0 0.0
    %2828 = vmatpush.msra.mxu0 0.0
    %2829 = vmatpush.msra.mxu0 0.0
    %2830 = vmatpush.msra.mxu0 0.0
    %2831 = vmatpush.msra.mxu0 0.0
    %2832 = vmatpush.msra.mxu0 0.0
    %2833 = vmatpush.msra.mxu0 0.0
    %2834 = vmatpush.msra.mxu0 0.0
    %2835 = vmatpush.msra.mxu0 %v2794
    %2836 = vmatmul.f32.gmra.mxu0 %v2790
    %v2837 = vpop.f32.mrf.mxu0
    %v2838 = vadd.f32 0.0, %v2837
    %2839 = vdwg.mxu0
    %2840 = vmatpush.msra.mxu0 0.0
    %2841 = vmatpush.msra.mxu0 0.0
    %2842 = vmatpush.msra.mxu0 0.0
    %2843 = vmatpush.msra.mxu0 0.0
    %2844 = vmatpush.msra.mxu0 0.0
    %2845 = vmatpush.msra.mxu0 0.0
    %2846 = vmatpush.msra.mxu0 0.0
    %2847 = vmatpush.msra.mxu0 0.0
    %2848 = vmatpush.msra.mxu0 0.0
    %2849 = vmatpush.msra.mxu0 0.0
    %2850 = vmatpush.msra.mxu0 0.0
    %2851 = vmatpush.msra.mxu0 0.0
    %2852 = vmatpush.msra.mxu0 0.0
    %2853 = vmatpush.msra.mxu0 0.0
    %2854 = vmatpush.msra.mxu0 0.0
    %2855 = vmatpush.msra.mxu0 %v2796
    %2856 = vmatmul.f32.gmra.mxu0 %v2790
    %v2857 = vpop.f32.mrf.mxu0
    %v2858 = vadd.f32 0.0, %v2857
    %2859 = vdwg.mxu0
    %2860 = vmatpush.msra.mxu0 0.0
    %2861 = vmatpush.msra.mxu0 0.0
    %2862 = vmatpush.msra.mxu0 0.0
    %2863 = vmatpush.msra.mxu0 0.0
    %2864 = vmatpush.msra.mxu0 0.0
    %2865 = vmatpush.msra.mxu0 0.0
    %2866 = vmatpush.msra.mxu0 0.0
    %2867 = vmatpush.msra.mxu0 0.0
    %2868 = vmatpush.msra.mxu0 0.0
    %2869 = vmatpush.msra.mxu0 0.0
    %2870 = vmatpush.msra.mxu0 0.0
    %2871 = vmatpush.msra.mxu0 0.0
    %2872 = vmatpush.msra.mxu0 0.0
    %2873 = vmatpush.msra.mxu0 0.0
    %2874 = vmatpush.msra.mxu0 0.0
    %2875 = vmatpush.msra.mxu0 %v2798
    %2876 = vmatmul.f32.gmra.mxu0 %v2790
    %v2877 = vpop.f32.mrf.mxu0
    %v2878 = vadd.f32 0.0, %v2877
    %2879 = vdwg.mxu0
    %v2880 = vadd.f32 %v2755, %v2818
    %v2881 = vadd.f32 %v2756, %v2838
    %v2882 = vadd.f32 %v2757, %v2858
    %v2883 = vadd.f32 %v2758, %v2878
    %v2884 = vld [vmem:[#allocation2] sm:$0x3f]
    %v2885 = vld [vmem:[#allocation2 + $0x8] sm:$0x3f]
    %v2886 = vld [vmem:[#allocation2 + $0x10] sm:$0x3f]
    %v2887 = vld [vmem:[#allocation2 + $0x18] sm:$0x3f]
    %v2888 = vld [vmem:[#allocation2 + $0x20] sm:$0x3f]
    %v2889 = vld [vmem:[%s6] sm:$0x77]
    %2891 = vst [vmem:[#allocation1] ss:$2 sm:$0xff] %v2889
    %v2892 = vld.sshfl [vmem:[#allocation1] sm:$0xff pattern:$0x75316420]
    %v2893 = vld.sshfl [vmem:[#allocation1 + $0x8] sm:$0xff pattern:$0x75316420]
    %2894 = vrot.lane.b32.xlu0 %v2892, 2
    %v2895 = vpop.permute.xlu0 %2894
    %2896 = vrot.lane.b32.xlu0 %v2893, 2
    %v2897 = vpop.permute.xlu0 %2896
    %vm2898 = vcmask 15360
    %v2899 = vsel %vm2898, %v2895, %v2897
    %2905 = vrot.lane.b32.xlu0 %v2884, 63
    %v2906 = vpop.permute.xlu0 %2905
    %2907 = vrot.lane.b32.xlu0 %v2885, 63
    %v2908 = vpop.permute.xlu0 %2907
    %2909 = vrot.lane.b32.xlu0 %v2886, 63
    %v2910 = vpop.permute.xlu0 %2909
    %2911 = vrot.lane.b32.xlu0 %v2887, 63
    %v2912 = vpop.permute.xlu0 %2911
    %2913 = vrot.lane.b32.xlu0 %v2888, 63
    %v2914 = vpop.permute.xlu0 %2913
    %vm2915 = vcmask 515072
    %v2916 = vsel %vm2915, %v2906, %v2908
    %v2917 = vsel %vm2915, %v2908, %v2910
    %v2918 = vsel %vm2915, %v2910, %v2912
    %v2919 = vsel %vm2915, %v2912, %v2914
    %v2920 = vsel %vm328, %v2899, 0
    %v2922 = vsel %vm219, %v2916, 0
    %v2924 = vsel %vm219, %v2917, 0
    %v2926 = vsel %vm219, %v2918, 0
    %v2928 = vsel %vm219, %v2919, 0
    %2930 = vmatpush.msra.mxu0 0.0
    %2931 = vmatpush.msra.mxu0 0.0
    %2932 = vmatpush.msra.mxu0 0.0
    %2933 = vmatpush.msra.mxu0 0.0
    %2934 = vmatpush.msra.mxu0 0.0
    %2935 = vmatpush.msra.mxu0 0.0
    %2936 = vmatpush.msra.mxu0 0.0
    %2937 = vmatpush.msra.mxu0 0.0
    %2938 = vmatpush.msra.mxu0 0.0
    %2939 = vmatpush.msra.mxu0 0.0
    %2940 = vmatpush.msra.mxu0 0.0
    %2941 = vmatpush.msra.mxu0 0.0
    %2942 = vmatpush.msra.mxu0 0.0
    %2943 = vmatpush.msra.mxu0 0.0
    %2944 = vmatpush.msra.mxu0 0.0
    %2945 = vmatpush.msra.mxu0 %v2922
    %2946 = vmatmul.f32.gmra.mxu0 %v2920
    %v2947 = vpop.f32.mrf.mxu0
    %v2948 = vadd.f32 0.0, %v2947
    %2949 = vdwg.mxu0
    %2950 = vmatpush.msra.mxu0 0.0
    %2951 = vmatpush.msra.mxu0 0.0
    %2952 = vmatpush.msra.mxu0 0.0
    %2953 = vmatpush.msra.mxu0 0.0
    %2954 = vmatpush.msra.mxu0 0.0
    %2955 = vmatpush.msra.mxu0 0.0
    %2956 = vmatpush.msra.mxu0 0.0
    %2957 = vmatpush.msra.mxu0 0.0
    %2958 = vmatpush.msra.mxu0 0.0
    %2959 = vmatpush.msra.mxu0 0.0
    %2960 = vmatpush.msra.mxu0 0.0
    %2961 = vmatpush.msra.mxu0 0.0
    %2962 = vmatpush.msra.mxu0 0.0
    %2963 = vmatpush.msra.mxu0 0.0
    %2964 = vmatpush.msra.mxu0 0.0
    %2965 = vmatpush.msra.mxu0 %v2924
    %2966 = vmatmul.f32.gmra.mxu0 %v2920
    %v2967 = vpop.f32.mrf.mxu0
    %v2968 = vadd.f32 0.0, %v2967
    %2969 = vdwg.mxu0
    %2970 = vmatpush.msra.mxu0 0.0
    %2971 = vmatpush.msra.mxu0 0.0
    %2972 = vmatpush.msra.mxu0 0.0
    %2973 = vmatpush.msra.mxu0 0.0
    %2974 = vmatpush.msra.mxu0 0.0
    %2975 = vmatpush.msra.mxu0 0.0
    %2976 = vmatpush.msra.mxu0 0.0
    %2977 = vmatpush.msra.mxu0 0.0
    %2978 = vmatpush.msra.mxu0 0.0
    %2979 = vmatpush.msra.mxu0 0.0
    %2980 = vmatpush.msra.mxu0 0.0
    %2981 = vmatpush.msra.mxu0 0.0
    %2982 = vmatpush.msra.mxu0 0.0
    %2983 = vmatpush.msra.mxu0 0.0
    %2984 = vmatpush.msra.mxu0 0.0
    %2985 = vmatpush.msra.mxu0 %v2926
    %2986 = vmatmul.f32.gmra.mxu0 %v2920
    %v2987 = vpop.f32.mrf.mxu0
    %v2988 = vadd.f32 0.0, %v2987
    %2989 = vdwg.mxu0
    %2990 = vmatpush.msra.mxu0 0.0
    %2991 = vmatpush.msra.mxu0 0.0
    %2992 = vmatpush.msra.mxu0 0.0
    %2993 = vmatpush.msra.mxu0 0.0
    %2994 = vmatpush.msra.mxu0 0.0
    %2995 = vmatpush.msra.mxu0 0.0
    %2996 = vmatpush.msra.mxu0 0.0
    %2997 = vmatpush.msra.mxu0 0.0
    %2998 = vmatpush.msra.mxu0 0.0
    %2999 = vmatpush.msra.mxu0 0.0
    %3000 = vmatpush.msra.mxu0 0.0
    %3001 = vmatpush.msra.mxu0 0.0
    %3002 = vmatpush.msra.mxu0 0.0
    %3003 = vmatpush.msra.mxu0 0.0
    %3004 = vmatpush.msra.mxu0 0.0
    %3005 = vmatpush.msra.mxu0 %v2928
    %3006 = vmatmul.f32.gmra.mxu0 %v2920
    %v3007 = vpop.f32.mrf.mxu0
    %v3008 = vadd.f32 0.0, %v3007
    %3009 = vdwg.mxu0
    %v3010 = vadd.f32 %v2880, %v2948
    %v3011 = vadd.f32 %v2881, %v2968
    %v3012 = vadd.f32 %v2882, %v2988
    %v3013 = vadd.f32 %v2883, %v3008
    %v3014 = vld [vmem:[#allocation2] sm:$0x3f]
    %v3015 = vld [vmem:[#allocation2 + $0x8] sm:$0x3f]
    %v3016 = vld [vmem:[#allocation2 + $0x10] sm:$0x3f]
    %v3017 = vld [vmem:[#allocation2 + $0x18] sm:$0x3f]
    %v3018 = vld [vmem:[#allocation2 + $0x20] sm:$0x3f]
    %v3019 = vld [vmem:[%s6 + $0x4] sm:$0x7]
    %3021 = vst [vmem:[#allocation1] ss:$2 sm:$0xff] %v3019
    %v3022 = vld.sshfl [vmem:[#allocation1] sm:$0xff pattern:$0x75316420]
    %3023 = vrot.lane.b32.xlu0 %v3022, 124
    %v3024 = vpop.permute.xlu0 %3023
    %3030 = vrot.lane.b32.xlu0 %v3014, 62
    %v3031 = vpop.permute.xlu0 %3030
    %3032 = vrot.lane.b32.xlu0 %v3015, 62
    %v3033 = vpop.permute.xlu0 %3032
    %3034 = vrot.lane.b32.xlu0 %v3016, 62
    %v3035 = vpop.permute.xlu0 %3034
    %3036 = vrot.lane.b32.xlu0 %v3017, 62
    %v3037 = vpop.permute.xlu0 %3036
    %3038 = vrot.lane.b32.xlu0 %v3018, 62
    %v3039 = vpop.permute.xlu0 %3038
    %vm3040 = vcmask 506880
    %v3041 = vsel %vm3040, %v3031, %v3033
    %v3042 = vsel %vm3040, %v3033, %v3035
    %v3043 = vsel %vm3040, %v3035, %v3037
    %v3044 = vsel %vm3040, %v3037, %v3039
    %v3045 = vsel %vm328, %v3024, 0
    %v3047 = vsel %vm219, %v3041, 0
    %v3049 = vsel %vm219, %v3042, 0
    %v3051 = vsel %vm219, %v3043, 0
    %v3053 = vsel %vm219, %v3044, 0
    %3055 = vmatpush.msra.mxu0 0.0
    %3056 = vmatpush.msra.mxu0 0.0
    %3057 = vmatpush.msra.mxu0 0.0
    %3058 = vmatpush.msra.mxu0 0.0
    %3059 = vmatpush.msra.mxu0 0.0
    %3060 = vmatpush.msra.mxu0 0.0
    %3061 = vmatpush.msra.mxu0 0.0
    %3062 = vmatpush.msra.mxu0 0.0
    %3063 = vmatpush.msra.mxu0 0.0
    %3064 = vmatpush.msra.mxu0 0.0
    %3065 = vmatpush.msra.mxu0 0.0
    %3066 = vmatpush.msra.mxu0 0.0
    %3067 = vmatpush.msra.mxu0 0.0
    %3068 = vmatpush.msra.mxu0 0.0
    %3069 = vmatpush.msra.mxu0 0.0
    %3070 = vmatpush.msra.mxu0 %v3047
    %3071 = vmatmul.f32.gmra.mxu0 %v3045
    %v3072 = vpop.f32.mrf.mxu0
    %v3073 = vadd.f32 0.0, %v3072
    %3074 = vdwg.mxu0
    %3075 = vmatpush.msra.mxu0 0.0
    %3076 = vmatpush.msra.mxu0 0.0
    %3077 = vmatpush.msra.mxu0 0.0
    %3078 = vmatpush.msra.mxu0 0.0
    %3079 = vmatpush.msra.mxu0 0.0
    %3080 = vmatpush.msra.mxu0 0.0
    %3081 = vmatpush.msra.mxu0 0.0
    %3082 = vmatpush.msra.mxu0 0.0
    %3083 = vmatpush.msra.mxu0 0.0
    %3084 = vmatpush.msra.mxu0 0.0
    %3085 = vmatpush.msra.mxu0 0.0
    %3086 = vmatpush.msra.mxu0 0.0
    %3087 = vmatpush.msra.mxu0 0.0
    %3088 = vmatpush.msra.mxu0 0.0
    %3089 = vmatpush.msra.mxu0 0.0
    %3090 = vmatpush.msra.mxu0 %v3049
    %3091 = vmatmul.f32.gmra.mxu0 %v3045
    %v3092 = vpop.f32.mrf.mxu0
    %v3093 = vadd.f32 0.0, %v3092
    %3094 = vdwg.mxu0
    %3095 = vmatpush.msra.mxu0 0.0
    %3096 = vmatpush.msra.mxu0 0.0
    %3097 = vmatpush.msra.mxu0 0.0
    %3098 = vmatpush.msra.mxu0 0.0
    %3099 = vmatpush.msra.mxu0 0.0
    %3100 = vmatpush.msra.mxu0 0.0
    %3101 = vmatpush.msra.mxu0 0.0
    %3102 = vmatpush.msra.mxu0 0.0
    %3103 = vmatpush.msra.mxu0 0.0
    %3104 = vmatpush.msra.mxu0 0.0
    %3105 = vmatpush.msra.mxu0 0.0
    %3106 = vmatpush.msra.mxu0 0.0
    %3107 = vmatpush.msra.mxu0 0.0
    %3108 = vmatpush.msra.mxu0 0.0
    %3109 = vmatpush.msra.mxu0 0.0
    %3110 = vmatpush.msra.mxu0 %v3051
    %3111 = vmatmul.f32.gmra.mxu0 %v3045
    %v3112 = vpop.f32.mrf.mxu0
    %v3113 = vadd.f32 0.0, %v3112
    %3114 = vdwg.mxu0
    %3115 = vmatpush.msra.mxu0 0.0
    %3116 = vmatpush.msra.mxu0 0.0
    %3117 = vmatpush.msra.mxu0 0.0
    %3118 = vmatpush.msra.mxu0 0.0
    %3119 = vmatpush.msra.mxu0 0.0
    %3120 = vmatpush.msra.mxu0 0.0
    %3121 = vmatpush.msra.mxu0 0.0
    %3122 = vmatpush.msra.mxu0 0.0
    %3123 = vmatpush.msra.mxu0 0.0
    %3124 = vmatpush.msra.mxu0 0.0
    %3125 = vmatpush.msra.mxu0 0.0
    %3126 = vmatpush.msra.mxu0 0.0
    %3127 = vmatpush.msra.mxu0 0.0
    %3128 = vmatpush.msra.mxu0 0.0
    %3129 = vmatpush.msra.mxu0 0.0
    %3130 = vmatpush.msra.mxu0 %v3053
    %3131 = vmatmul.f32.gmra.mxu0 %v3045
    %v3132 = vpop.f32.mrf.mxu0
    %v3133 = vadd.f32 0.0, %v3132
    %3134 = vdwg.mxu0
    %v3135 = vadd.f32 %v3010, %v3073
    %v3136 = vadd.f32 %v3011, %v3093
    %v3137 = vadd.f32 %v3012, %v3113
    %v3138 = vadd.f32 %v3013, %v3133
    %v3139 = vld [vmem:[#allocation2] sm:$0x3f]
    %v3140 = vld [vmem:[#allocation2 + $0x8] sm:$0x3f]
    %v3141 = vld [vmem:[#allocation2 + $0x10] sm:$0x3f]
    %v3142 = vld [vmem:[#allocation2 + $0x18] sm:$0x3f]
    %v3143 = vld [vmem:[#allocation2 + $0x20] sm:$0x3f]
    %v3144 = vld [vmem:[%s6 + $0x4] sm:$0x7]
    %3146 = vst [vmem:[#allocation1] ss:$2 sm:$0xff] %v3144
    %v3147 = vld.sshfl [vmem:[#allocation1] sm:$0xff pattern:$0x75316420]
    %3148 = vrot.lane.b32.xlu0 %v3147, 118
    %v3149 = vpop.permute.xlu0 %3148
    %3155 = vrot.lane.b32.xlu0 %v3139, 61
    %v3156 = vpop.permute.xlu0 %3155
    %3157 = vrot.lane.b32.xlu0 %v3140, 61
    %v3158 = vpop.permute.xlu0 %3157
    %3159 = vrot.lane.b32.xlu0 %v3141, 61
    %v3160 = vpop.permute.xlu0 %3159
    %3161 = vrot.lane.b32.xlu0 %v3142, 61
    %v3162 = vpop.permute.xlu0 %3161
    %3163 = vrot.lane.b32.xlu0 %v3143, 61
    %v3164 = vpop.permute.xlu0 %3163
    %vm3165 = vcmask 498688
    %v3166 = vsel %vm3165, %v3156, %v3158
    %v3167 = vsel %vm3165, %v3158, %v3160
    %v3168 = vsel %vm3165, %v3160, %v3162
    %v3169 = vsel %vm3165, %v3162, %v3164
    %v3170 = vsel %vm328, %v3149, 0
    %v3172 = vsel %vm219, %v3166, 0
    %v3174 = vsel %vm219, %v3167, 0
    %v3176 = vsel %vm219, %v3168, 0
    %v3178 = vsel %vm219, %v3169, 0
    %3180 = vmatpush.msra.mxu0 0.0
    %3181 = vmatpush.msra.mxu0 0.0
    %3182 = vmatpush.msra.mxu0 0.0
    %3183 = vmatpush.msra.mxu0 0.0
    %3184 = vmatpush.msra.mxu0 0.0
    %3185 = vmatpush.msra.mxu0 0.0
    %3186 = vmatpush.msra.mxu0 0.0
    %3187 = vmatpush.msra.mxu0 0.0
    %3188 = vmatpush.msra.mxu0 0.0
    %3189 = vmatpush.msra.mxu0 0.0
    %3190 = vmatpush.msra.mxu0 0.0
    %3191 = vmatpush.msra.mxu0 0.0
    %3192 = vmatpush.msra.mxu0 0.0
    %3193 = vmatpush.msra.mxu0 0.0
    %3194 = vmatpush.msra.mxu0 0.0
    %3195 = vmatpush.msra.mxu0 %v3172
    %3196 = vmatmul.f32.gmra.mxu0 %v3170
    %v3197 = vpop.f32.mrf.mxu0
    %v3198 = vadd.f32 0.0, %v3197
    %3199 = vdwg.mxu0
    %3200 = vmatpush.msra.mxu0 0.0
    %3201 = vmatpush.msra.mxu0 0.0
    %3202 = vmatpush.msra.mxu0 0.0
    %3203 = vmatpush.msra.mxu0 0.0
    %3204 = vmatpush.msra.mxu0 0.0
    %3205 = vmatpush.msra.mxu0 0.0
    %3206 = vmatpush.msra.mxu0 0.0
    %3207 = vmatpush.msra.mxu0 0.0
    %3208 = vmatpush.msra.mxu0 0.0
    %3209 = vmatpush.msra.mxu0 0.0
    %3210 = vmatpush.msra.mxu0 0.0
    %3211 = vmatpush.msra.mxu0 0.0
    %3212 = vmatpush.msra.mxu0 0.0
    %3213 = vmatpush.msra.mxu0 0.0
    %3214 = vmatpush.msra.mxu0 0.0
    %3215 = vmatpush.msra.mxu0 %v3174
    %3216 = vmatmul.f32.gmra.mxu0 %v3170
    %v3217 = vpop.f32.mrf.mxu0
    %v3218 = vadd.f32 0.0, %v3217
    %3219 = vdwg.mxu0
    %3220 = vmatpush.msra.mxu0 0.0
    %3221 = vmatpush.msra.mxu0 0.0
    %3222 = vmatpush.msra.mxu0 0.0
    %3223 = vmatpush.msra.mxu0 0.0
    %3224 = vmatpush.msra.mxu0 0.0
    %3225 = vmatpush.msra.mxu0 0.0
    %3226 = vmatpush.msra.mxu0 0.0
    %3227 = vmatpush.msra.mxu0 0.0
    %3228 = vmatpush.msra.mxu0 0.0
    %3229 = vmatpush.msra.mxu0 0.0
    %3230 = vmatpush.msra.mxu0 0.0
    %3231 = vmatpush.msra.mxu0 0.0
    %3232 = vmatpush.msra.mxu0 0.0
    %3233 = vmatpush.msra.mxu0 0.0
    %3234 = vmatpush.msra.mxu0 0.0
    %3235 = vmatpush.msra.mxu0 %v3176
    %3236 = vmatmul.f32.gmra.mxu0 %v3170
    %v3237 = vpop.f32.mrf.mxu0
    %v3238 = vadd.f32 0.0, %v3237
    %3239 = vdwg.mxu0
    %3240 = vmatpush.msra.mxu0 0.0
    %3241 = vmatpush.msra.mxu0 0.0
    %3242 = vmatpush.msra.mxu0 0.0
    %3243 = vmatpush.msra.mxu0 0.0
    %3244 = vmatpush.msra.mxu0 0.0
    %3245 = vmatpush.msra.mxu0 0.0
    %3246 = vmatpush.msra.mxu0 0.0
    %3247 = vmatpush.msra.mxu0 0.0
    %3248 = vmatpush.msra.mxu0 0.0
    %3249 = vmatpush.msra.mxu0 0.0
    %3250 = vmatpush.msra.mxu0 0.0
    %3251 = vmatpush.msra.mxu0 0.0
    %3252 = vmatpush.msra.mxu0 0.0
    %3253 = vmatpush.msra.mxu0 0.0
    %3254 = vmatpush.msra.mxu0 0.0
    %3255 = vmatpush.msra.mxu0 %v3178
    %3256 = vmatmul.f32.gmra.mxu0 %v3170
    %v3257 = vpop.f32.mrf.mxu0
    %v3258 = vadd.f32 0.0, %v3257
    %3259 = vdwg.mxu0
    %v3260 = vadd.f32 %v3135, %v3198
    %v3261 = vadd.f32 %v3136, %v3218
    %v3262 = vadd.f32 %v3137, %v3238
    %v3263 = vadd.f32 %v3138, %v3258
    %v3264 = vld [vmem:[#allocation2] sm:$0x3f]
    %v3265 = vld [vmem:[#allocation2 + $0x8] sm:$0x3f]
    %v3266 = vld [vmem:[#allocation2 + $0x10] sm:$0x3f]
    %v3267 = vld [vmem:[#allocation2 + $0x18] sm:$0x3f]
    %v3268 = vld [vmem:[#allocation2 + $0x20] sm:$0x3f]
    %v3269 = vld [vmem:[%s6 + $0x4] sm:$0x7]
    %3271 = vst [vmem:[#allocation1] ss:$2 sm:$0xff] %v3269
    %v3272 = vld.sshfl [vmem:[#allocation1] sm:$0xff pattern:$0x75316420]
    %3273 = vrot.lane.b32.xlu0 %v3272, 112
    %v3274 = vpop.permute.xlu0 %3273
    %3280 = vrot.lane.b32.xlu0 %v3264, 60
    %v3281 = vpop.permute.xlu0 %3280
    %3282 = vrot.lane.b32.xlu0 %v3265, 60
    %v3283 = vpop.permute.xlu0 %3282
    %3284 = vrot.lane.b32.xlu0 %v3266, 60
    %v3285 = vpop.permute.xlu0 %3284
    %3286 = vrot.lane.b32.xlu0 %v3267, 60
    %v3287 = vpop.permute.xlu0 %3286
    %3288 = vrot.lane.b32.xlu0 %v3268, 60
    %v3289 = vpop.permute.xlu0 %3288
    %vm3290 = vcmask 490496
    %v3291 = vsel %vm3290, %v3281, %v3283
    %v3292 = vsel %vm3290, %v3283, %v3285
    %v3293 = vsel %vm3290, %v3285, %v3287
    %v3294 = vsel %vm3290, %v3287, %v3289
    %v3295 = vsel %vm328, %v3274, 0
    %v3297 = vsel %vm219, %v3291, 0
    %v3299 = vsel %vm219, %v3292, 0
    %v3301 = vsel %vm219, %v3293, 0
    %v3303 = vsel %vm219, %v3294, 0
    %3305 = vmatpush.msra.mxu0 0.0
    %3306 = vmatpush.msra.mxu0 0.0
    %3307 = vmatpush.msra.mxu0 0.0
    %3308 = vmatpush.msra.mxu0 0.0
    %3309 = vmatpush.msra.mxu0 0.0
    %3310 = vmatpush.msra.mxu0 0.0
    %3311 = vmatpush.msra.mxu0 0.0
    %3312 = vmatpush.msra.mxu0 0.0
    %3313 = vmatpush.msra.mxu0 0.0
    %3314 = vmatpush.msra.mxu0 0.0
    %3315 = vmatpush.msra.mxu0 0.0
    %3316 = vmatpush.msra.mxu0 0.0
    %3317 = vmatpush.msra.mxu0 0.0
    %3318 = vmatpush.msra.mxu0 0.0
    %3319 = vmatpush.msra.mxu0 0.0
    %3320 = vmatpush.msra.mxu0 %v3297
    %3321 = vmatmul.f32.gmra.mxu0 %v3295
    %v3322 = vpop.f32.mrf.mxu0
    %v3323 = vadd.f32 0.0, %v3322
    %3324 = vdwg.mxu0
    %3325 = vmatpush.msra.mxu0 0.0
    %3326 = vmatpush.msra.mxu0 0.0
    %3327 = vmatpush.msra.mxu0 0.0
    %3328 = vmatpush.msra.mxu0 0.0
    %3329 = vmatpush.msra.mxu0 0.0
    %3330 = vmatpush.msra.mxu0 0.0
    %3331 = vmatpush.msra.mxu0 0.0
    %3332 = vmatpush.msra.mxu0 0.0
    %3333 = vmatpush.msra.mxu0 0.0
    %3334 = vmatpush.msra.mxu0 0.0
    %3335 = vmatpush.msra.mxu0 0.0
    %3336 = vmatpush.msra.mxu0 0.0
    %3337 = vmatpush.msra.mxu0 0.0
    %3338 = vmatpush.msra.mxu0 0.0
    %3339 = vmatpush.msra.mxu0 0.0
    %3340 = vmatpush.msra.mxu0 %v3299
    %3341 = vmatmul.f32.gmra.mxu0 %v3295
    %v3342 = vpop.f32.mrf.mxu0
    %v3343 = vadd.f32 0.0, %v3342
    %3344 = vdwg.mxu0
    %3345 = vmatpush.msra.mxu0 0.0
    %3346 = vmatpush.msra.mxu0 0.0
    %3347 = vmatpush.msra.mxu0 0.0
    %3348 = vmatpush.msra.mxu0 0.0
    %3349 = vmatpush.msra.mxu0 0.0
    %3350 = vmatpush.msra.mxu0 0.0
    %3351 = vmatpush.msra.mxu0 0.0
    %3352 = vmatpush.msra.mxu0 0.0
    %3353 = vmatpush.msra.mxu0 0.0
    %3354 = vmatpush.msra.mxu0 0.0
    %3355 = vmatpush.msra.mxu0 0.0
    %3356 = vmatpush.msra.mxu0 0.0
    %3357 = vmatpush.msra.mxu0 0.0
    %3358 = vmatpush.msra.mxu0 0.0
    %3359 = vmatpush.msra.mxu0 0.0
    %3360 = vmatpush.msra.mxu0 %v3301
    %3361 = vmatmul.f32.gmra.mxu0 %v3295
    %v3362 = vpop.f32.mrf.mxu0
    %v3363 = vadd.f32 0.0, %v3362
    %3364 = vdwg.mxu0
    %3365 = vmatpush.msra.mxu0 0.0
    %3366 = vmatpush.msra.mxu0 0.0
    %3367 = vmatpush.msra.mxu0 0.0
    %3368 = vmatpush.msra.mxu0 0.0
    %3369 = vmatpush.msra.mxu0 0.0
    %3370 = vmatpush.msra.mxu0 0.0
    %3371 = vmatpush.msra.mxu0 0.0
    %3372 = vmatpush.msra.mxu0 0.0
    %3373 = vmatpush.msra.mxu0 0.0
    %3374 = vmatpush.msra.mxu0 0.0
    %3375 = vmatpush.msra.mxu0 0.0
    %3376 = vmatpush.msra.mxu0 0.0
    %3377 = vmatpush.msra.mxu0 0.0
    %3378 = vmatpush.msra.mxu0 0.0
    %3379 = vmatpush.msra.mxu0 0.0
    %3380 = vmatpush.msra.mxu0 %v3303
    %3381 = vmatmul.f32.gmra.mxu0 %v3295
    %v3382 = vpop.f32.mrf.mxu0
    %v3383 = vadd.f32 0.0, %v3382
    %3384 = vdwg.mxu0
    %v3385 = vadd.f32 %v3260, %v3323
    %v3386 = vadd.f32 %v3261, %v3343
    %v3387 = vadd.f32 %v3262, %v3363
    %v3388 = vadd.f32 %v3263, %v3383
    %v3389 = vld [vmem:[%s7] sm:$0x7]
    %3391 = vset.pattern.permute.xlu0 0
    %3392 = vperm.xlu0 %3391, %v3389
    %v3393 = vpop.permute.xlu0 %3392
    %v3395 = vadd.f32 %v3385, %v3393
    %v3396 = vadd.f32 %v3386, %v3393
    %v3397 = vadd.f32 %v3387, %v3393
    %v3398 = vadd.f32 %v3388, %v3393
    %v3399 = vld [vmem:[%s10] sm:$0xf]
    %v3401 = vperm.slane %v3399, 0
    %v3402 = vperm.slane %v3399, 1
    %v3403 = vperm.slane %v3399, 2
    %v3404 = vperm.slane %v3399, 3
    %v3409 = vmul.f32 %v3395, %v3401
    %v3410 = vmul.f32 %v3396, %v3402
    %v3411 = vmul.f32 %v3397, %v3403
    %v3412 = vmul.f32 %v3398, %v3404
    %vm3413 = vcmask 1042432
    %v3414 = vsel %vm3413, %v3409, 0.0
    %v3415 = vsel %vm3413, %v3410, 0.0
    %v3416 = vadd.f32 %v3414, %v3415
    %v3417 = vsel %vm3413, %v3411, 0.0
    %v3418 = vadd.f32 %v3416, %v3417
    %v3419 = vsel %vm3413, %v3412, 0.0
    %v3420 = vadd.f32 %v3418, %v3419
    %3421 = vadd.xlane.f32.xlu0 %v3420
    %v3422 = vpop.xlane.xlu0 %3421
    %v3423 = vmul.f32 %v3422, 0.0078125
    %v3424 = vmul.f32 %v3409, %v3395
    %v3425 = vmul.f32 %v3410, %v3396
    %v3426 = vmul.f32 %v3411, %v3397
    %v3427 = vmul.f32 %v3412, %v3398
    %v3428 = vsel %vm3413, %v3424, 0.0
    %v3429 = vsel %vm3413, %v3425, 0.0
    %v3430 = vadd.f32 %v3428, %v3429
    %v3431 = vsel %vm3413, %v3426, 0.0
    %v3432 = vadd.f32 %v3430, %v3431
    %v3433 = vsel %vm3413, %v3427, 0.0
    %v3434 = vadd.f32 %v3432, %v3433
    %3435 = vadd.xlane.f32.xlu0 %v3434
    %v3436 = vpop.xlane.xlu0 %3435
    %v3437 = vmul.f32 %v3436, 0.0078125
    %v3438 = vmul.f32 %v3423, %v3423
    %v3439 = vsub.f32 %v3437, %v3438
    %v3440 = vld [vmem:[%s8] sm:$0x7]
    %v3441 = vadd.f32 %v3439, 1e-05
    %v3442 = vrsqrt.pop %v3441
    %v3443 = vmul.f32 %v3442, %v3441
    %v3444 = vmul.f32 %v3443, %v3442
    %v3445 = vmul.f32 0.5, %v3444
    %v3446 = vsub.f32 1.5, %v3445
    %v3447 = vmul.f32 %v3442, %v3446
    %vm3448 = vweird.f32 %v3441
    %vm3449 = vweird.f32 %v3442
    %vm3450 = vmor %vm3448, %vm3449
    %v3451 = vsel %vm3450, %v3442, %v3447
    %v3452 = vmul.f32 %v3440, %v3451
    %v3453 = vld [vmem:[%s9] sm:$0x7]
    %v3454 = vmul.f32 %v3423, %v3452
    %v3455 = vsub.f32 %v3453, %v3454
    %3457 = vset.pattern.permute.xlu0 0
    %3458 = vperm.xlu0 %3457, %v3452
    %v3459 = vpop.permute.xlu0 %3458
    %v3461 = vmul.f32 %v3395, %v3459
    %v3462 = vmul.f32 %v3396, %v3459
    %v3463 = vmul.f32 %v3397, %v3459
    %v3464 = vmul.f32 %v3398, %v3459
    %3466 = vset.pattern.permute.xlu0 0
    %3467 = vperm.xlu0 %3466, %v3455
    %v3468 = vpop.permute.xlu0 %3467
    %v3470 = vadd.f32 %v3461, %v3468
    %v3471 = vadd.f32 %v3462, %v3468
    %v3472 = vadd.f32 %v3463, %v3468
    %v3473 = vadd.f32 %v3464, %v3468
    %v3474 = vmax.f32 %v3470, 0.0
    %v3475 = vmax.f32 %v3471, 0.0
    %v3476 = vmax.f32 %v3472, 0.0
    %v3477 = vmax.f32 %v3473, 0.0
    %v3482 = vrot.slane %v3475, 4
    %v3483 = vrot.slane %v3477, 4
    %vm3484 = vcmask 1043456
    %v3485 = vsel %vm3484, %v3474, %v3482
    %v3486 = vsel %vm3484, %v3476, %v3483
    %3489 = vst [vmem:[#allocation6] sm:$0x77] %v3485
    %3490 = vst [vmem:[#allocation6 + $0x8] sm:$0x77] %v3486
    // Predicated region
    $region50: #{tpu_custom_call.1} parent=1 // pred_check
      _
    $region51: #{tpu_custom_call.1} parent=1 // pred_check_branch
      %3492 = sbr.rel (0) target = $region53
    $region52: #{tpu_custom_call.1} parent=1 // pred_region
      %3494 = vsyncadd [#allocation5], 0
      %s3496 = sshll.u32 [#allocation6], 4
      %s3497 = int_to_ptr.vmem [resolvable:$true] %s3496
      %s3498 = sshll.u32 %s11, 4
      %s3499 = int_to_ptr.hbm [resolvable:$true] %s3498
      %3501 = dma.vmem_to_hbm [thread:$0]  %s3497, 256, %s3499, [#allocation5]
    $region53: #{tpu_custom_call.1} parent=1 // pred_fallthru
      _
    // Predicated region
    $region54: #{tpu_custom_call.1} parent=1 // pred_check
      _
    $region55: #{tpu_custom_call.1} parent=1 // pred_check_branch
      %3503 = sbr.rel (0) target = $region57
    $region56: #{tpu_custom_call.1} parent=1 // pred_region
      %3505 = dma.done [#allocation5], 256
    $region57: #{tpu_custom_call.1} parent=1 // pred_fallthru
      _
    %3506 = vsyncpa [#allocation4], 1
    %3507 = vsyncpa [#allocation5], 1

</llo_original>
